<compile_context>
chip_gen: v7x
topology: tpu7x:2x2x1
jax: 0.10.0
libtpu: 0.0.40
codegen_flags: <defaults>
</compile_context>

<pallas_src>
import math

import jax
import jax.numpy as jnp
from jax import lax
from jax.experimental import pallas as pl
from jax.experimental.pallas import tpu as pltpu


# ----------------------------------------------------------------------------
# Pallas kernel: one batch block (bb batch elements) per grid step.
# ----------------------------------------------------------------------------
def _enformer_block_kernel(x_ref, pos_ref,
                           g1_ref, be1_ref,
                           wqkv_ref, bo_ref,
                           wr_ref, rcb_ref, rpb_ref, wo3_ref,
                           g2_ref, be2_ref, w1_ref, b1_ref, w2_ref, b2_ref,
                           o_ref):
    bb, L, C = x_ref.shape
    H, K = rcb_ref.shape              # heads, key_len
    D = C // H                        # dim_value
    HK = H * K
    eps = 1e-5
    scale = 1.0 / math.sqrt(K)
    cdt = wqkv_ref.dtype              # MXU compute dtype (bf16), f32 accumulation

    # ---- flatten the batch block to a single (bb*L, C) row slab ----
    x = jnp.concatenate([x_ref[b] for b in range(bb)], axis=0)      # (R, C) f32

    def layer_norm(t, g, b):
        mu = jnp.mean(t, axis=-1, keepdims=True)
        var = jnp.mean((t - mu) ** 2, axis=-1, keepdims=True)
        return (t - mu) * lax.rsqrt(var + eps) * g + b              # rsqrt -> EUP

    xn = layer_norm(x, g1_ref[...], be1_ref[...])

    # ---- fused Q|K|V projection: one MXU matmul (bf16 in, f32 accum) ----
    qkv = jnp.dot(xn.astype(cdt), wqkv_ref[...],
                  preferred_element_type=jnp.float32)               # (R, 2HK + C)
    q = qkv[:, :HK] * scale
    k = qkv[:, HK:2 * HK]
    v = qkv[:, 2 * HK:]

    # ---- relative-position keys (parameter-only matmul, once per step) ----
    rel_k = jnp.dot(pos_ref[...], wr_ref[...],
                    preferred_element_type=jnp.float32)             # (2L-1, HK)

    def split_heads(t, w):            # (rows, H*w) -> (H, rows, w)
        return jnp.stack([t[:, h * w:(h + 1) * w] for h in range(H)], axis=0)

    q3 = split_heads(q, K)                                          # (H, R, K) f32
    k3 = split_heads(k, K).astype(cdt)                              # (H, R, K)
    v3 = split_heads(v, D).astype(cdt)                              # (H, R, D)
    rk3 = split_heads(rel_k, K).astype(cdt)                         # (H, 2L-1, K)

    qc = (q3 + rcb_ref[...][:, None, :]).astype(cdt)                # content queries
    qp = (q3 + rpb_ref[...][:, None, :]).astype(cdt)                # positional queries

    wo3 = wo3_ref[...]                                              # (H, D, C)

    def rel_shift(r):                 # (H, L, 2L-1) -> (H, L, L)
        # out[:, i, j] = r[:, i, L-1-i+j]  (torch relative_shift semantics)
        rows = [r[:, i:i + 1, L - 1 - i:2 * L - 1 - i] for i in range(L)]
        return jnp.concatenate(rows, axis=1)

    outs = []
    for b in range(bb):               # static, small batch block per step
        rs = slice(b * L, (b + 1) * L)        # 8-aligned sublane slice
        content = jnp.einsum('hik,hjk->hij', qc[:, rs], k3[:, rs],
                             preferred_element_type=jnp.float32)    # (H, L, L)
        rel = jnp.einsum('hik,hjk->hij', qp[:, rs], rk3,
                         preferred_element_type=jnp.float32)        # (H, L, 2L-1)
        logits = content + rel_shift(rel)
        logits = logits - jnp.max(logits, axis=-1, keepdims=True)
        p = jnp.exp(logits)
        attn = p * pl.reciprocal(jnp.sum(p, axis=-1, keepdims=True),
                                 approx=True)                        # softmax
        av = jnp.einsum('hij,hjd->hid', attn.astype(cdt), v3[:, rs],
                        preferred_element_type=jnp.float32)          # (H, L, D)
        # per-head output projection + head sum  ==  concat(heads) @ wo
        proj = jnp.einsum('hid,hdc->hic', av.astype(cdt), wo3,
                          preferred_element_type=jnp.float32)        # (H, L, C)
        outs.append(jnp.sum(proj, axis=0))                           # (L, C)

    attn_out = jnp.concatenate(outs, axis=0) + bo_ref[...]           # (R, C)

    # residual 1  (attn / pos dropout are Identity: p = 0)
    x1 = x + attn_out

    # ---- FFN: LayerNorm -> Linear(C, 2C) -> ReLU -> Linear(2C, C) ----
    x1n = layer_norm(x1, g2_ref[...], be2_ref[...])
    h1 = jnp.dot(x1n.astype(cdt), w1_ref[...],
                 preferred_element_type=jnp.float32) + b1_ref[...]
    h1 = jnp.maximum(h1, 0.0)
    ffn = jnp.dot(h1.astype(cdt), w2_ref[...],
                  preferred_element_type=jnp.float32) + b2_ref[...]

    # residual 2  (ff dropout is Identity: p = 0)
    y = x1 + ffn
    for b in range(bb):
        o_ref[b] = y[b * L:(b + 1) * L, :].astype(o_ref.dtype)


# ----------------------------------------------------------------------------
# Wrapper
# ----------------------------------------------------------------------------
def enformer_transformer_block(x, params, pos_emb, *, batch_block=None,
                               compute_dtype=jnp.bfloat16):
    N, L, C = x.shape
    H, K = params["rcb"].shape
    D = C // H
    bb = N if batch_block is None else batch_block   # default: whole batch in
    assert N % bb == 0                               # one grid step (single-TC
    cdt = compute_dtype                              # chips); use bb=N//2 on v7x.

    # parameter prep (one-time, outside the kernel)
    wqkv = jnp.concatenate([params["wq"], params["wk"], params["wv"]],
                           axis=1).astype(cdt)                # (C, 2HK + C)
    wo3 = params["wo"].reshape(H, D, C).astype(cdt)           # per-head out proj

    args = (pos_emb.astype(cdt),
            params["g1"], params["be1"],
            wqkv, params["bo"],
            params["wr"].astype(cdt), params["rcb"], params["rpb"], wo3,
            params["g2"], params["be2"],
            params["w1"].astype(cdt), params["b1"],
            params["w2"].astype(cdt), params["b2"])

    def full_spec(a):
        nd = a.ndim
        # constant index_map: weights are revisited (no re-DMA) across steps.
        return pl.BlockSpec(a.shape, lambda g, _nd=nd: (0,) * _nd)

    in_specs = [pl.BlockSpec((bb, L, C), lambda g: (g, 0, 0))]
    in_specs += [full_spec(a) for a in args]
    out_spec = pl.BlockSpec((bb, L, C), lambda g: (g, 0, 0))

    return pl.pallas_call(
        _enformer_block_kernel,
        out_shape=jax.ShapeDtypeStruct((N, L, C), x.dtype),
        grid_spec=pltpu.PrefetchScalarGridSpec(
            num_scalar_prefetch=0,
            grid=(N // bb,),
            in_specs=in_specs,
            out_specs=out_spec),
        compiler_params=pltpu.CompilerParams(
            dimension_semantics=("parallel",),
            vmem_limit_bytes=32 * 1024 * 1024),
    )(x, *args)


# ----------------------------------------------------------------------------
# Positional feature table (plain JAX glue; needs lgamma -> built outside).
# ----------------------------------------------------------------------------
def get_positional_embed(seq_len, feature_size):
    num_components = 6
    assert feature_size % num_components == 0
    nb = feature_size // num_components

    distances = jnp.arange(-seq_len + 1, seq_len)                 # (2L-1,)
    abs_d = jnp.abs(distances).astype(jnp.float32)[:, None]       # (2L-1, 1)

    # exponential
    max_range = math.log(seq_len) / math.log(2.0)
    half_life = 2.0 ** jnp.linspace(3.0, max_range, nb)
    f_exp = jnp.exp(-math.log(2.0) / half_life[None, :] * abs_d)

    # central mask
    center_widths = 2.0 ** jnp.arange(1, nb + 1).astype(jnp.float32) - 1.0
    f_cm = (center_widths[None, :] > abs_d).astype(jnp.float32)

    # gamma pdf
    stddev = seq_len / (2.0 * nb)
    start_mean = seq_len / nb
    mean = jnp.linspace(start_mean, float(seq_len), nb)[None, :]
    concentration = (mean / stddev) ** 2
    rate = mean / stddev ** 2
    log_unnorm = jax.scipy.special.xlogy(concentration - 1.0, abs_d) - rate * abs_d
    log_norm = jax.scipy.special.gammaln(concentration) - concentration * jnp.log(rate)
    prob = jnp.exp(log_unnorm - log_norm) + 1e-8
    f_gamma = prob / jnp.max(prob, axis=-1, keepdims=True)

    emb = jnp.concatenate([f_exp, f_cm, f_gamma], axis=-1)        # (2L-1, 3*nb)
    sign = jnp.sign(distances).astype(jnp.float32)[:, None]
    return jnp.concatenate([emb, sign * emb], axis=-1)            # (2L-1, 6*nb)


# ----------------------------------------------------------------------------
# Pure-JAX reference (same math and same bf16-in / f32-accum precision policy)
# ----------------------------------------------------------------------------
def reference_block(x, p, pos_emb, compute_dtype=jnp.bfloat16):
    N, L, C = x.shape
    H, K = p["rcb"].shape
    D = C // H
    cdt = compute_dtype
    scale = K ** -0.5

    def ln(t, g, b):
        mu = t.mean(-1, keepdims=True)
        var = ((t - mu) ** 2).mean(-1, keepdims=True)
        return (t - mu) * lax.rsqrt(var + 1e-5) * g + b

    def mm(a, w):
        return jnp.matmul(a.astype(cdt), w.astype(cdt),
                          preferred_element_type=jnp.float32)

    xn = ln(x, p["g1"], p["be1"])
    q = mm(xn, p["wq"]).reshape(N, L, H, K).transpose(0, 2, 1, 3) * scale
    k = mm(xn, p["wk"]).reshape(N, L, H, K).transpose(0, 2, 1, 3)
    v = mm(xn, p["wv"]).reshape(N, L, H, D).transpose(0, 2, 1, 3)
    rel_k = mm(pos_emb, p["wr"]).reshape(2 * L - 1, H, K).transpose(1, 0, 2)

    qc = (q + p["rcb"][None, :, None, :]).astype(cdt)
    qp = (q + p["rpb"][None, :, None, :]).astype(cdt)
    content = jnp.einsum("bhik,bhjk->bhij", qc, k.astype(cdt),
                         preferred_element_type=jnp.float32)
    rel_logits = jnp.einsum("bhik,hjk->bhij", qp, rel_k.astype(cdt),
                            preferred_element_type=jnp.float32)

    pad = jnp.zeros_like(rel_logits[..., :1])
    t = jnp.concatenate([pad, rel_logits], axis=-1)               # (N,H,L,2L)
    t = t.reshape(N, H, 2 * L, L)[:, :, 1:, :].reshape(N, H, L, 2 * L - 1)
    shifted = t[..., :L]

    logits = content + shifted
    logits = logits - logits.max(-1, keepdims=True)
    e = jnp.exp(logits)
    attn = e / e.sum(-1, keepdims=True)
    out = jnp.einsum("bhij,bhjd->bhid", attn.astype(cdt), v.astype(cdt),
                     preferred_element_type=jnp.float32)
    out = out.transpose(0, 2, 1, 3).reshape(N, L, C)
    out = mm(out, p["wo"]) + p["bo"]
    x1 = x + out
    h = jnp.maximum(mm(ln(x1, p["g2"], p["be2"]), p["w1"]) + p["b1"], 0.0)
    return x1 + mm(h, p["w2"]) + p["b2"]


# ----------------------------------------------------------------------------
if __name__ == "__main__":
    # Small shapes: in_len=48, n_heads=4, key_len=16
    # -> dim_value = num_rel_pos_features = 48 // 4 = 12 (divisible by 6).
    N, L, C = 2, 8, 48
    H, K = 4, 16
    P = C // H

    key = jax.random.PRNGKey(0)
    kx, *pk = jax.random.split(key, 17)

    def nrm(k_, shape, s=0.05):
        return s * jax.random.normal(k_, shape, jnp.float32)

    params = {
        "g1": 1.0 + 0.1 * jax.random.normal(pk[0], (1, C), jnp.float32),
        "be1": 0.1 * jax.random.normal(pk[1], (1, C), jnp.float32),
        "wq": nrm(pk[2], (C, H * K)),
        "wk": nrm(pk[3], (C, H * K)),
        "wv": nrm(pk[4], (C, C)),
        # note: real Enformer zero-inits to_out; random here for a non-trivial test
        "wo": nrm(pk[5], (C, C)),
        "bo": nrm(pk[6], (1, C)),
        "wr": nrm(pk[7], (P, H * K)),
        "rcb": nrm(pk[8], (H, K), 0.5),
        "rpb": nrm(pk[9], (H, K), 0.5),
        "g2": 1.0 + 0.1 * jax.random.normal(pk[10], (1, C), jnp.float32),
        "be2": 0.1 * jax.random.normal(pk[11], (1, C), jnp.float32),
        "w1": nrm(pk[12], (C, 2 * C)),
        "b1": nrm(pk[13], (1, 2 * C)),
        "w2": nrm(pk[14], (2 * C, C)),
        "b2": nrm(pk[15], (1, C)),
    }

    x = jax.random.normal(kx, (N, L, C), jnp.float32)
    pos_emb = get_positional_embed(L, P)

    out = enformer_transformer_block(x, params, pos_emb)
    out = jax.block_until_ready(out)

    ref = reference_block(x, params, pos_emb)
    assert out.shape == (N, L, C)
    max_err = float(jnp.max(jnp.abs(out - ref)))
    assert jnp.allclose(out, ref, atol=2e-2, rtol=2e-2), f"max_err={max_err}"

    print("KERNEL_OK")
</pallas_src>

<mosaic_0001>
module attributes {stable_mosaic.version = 11 : i64} {
  func.func @_enformer_block_kernel(%arg0: i32, %arg1: memref<2x8x48xf32, #tpu.memory_space<vmem>>, %arg2: memref<15x12xbf16, #tpu.memory_space<vmem>>, %arg3: memref<1x48xf32, #tpu.memory_space<vmem>>, %arg4: memref<1x48xf32, #tpu.memory_space<vmem>>, %arg5: memref<48x176xbf16, #tpu.memory_space<vmem>>, %arg6: memref<1x48xf32, #tpu.memory_space<vmem>>, %arg7: memref<12x64xbf16, #tpu.memory_space<vmem>>, %arg8: memref<4x16xf32, #tpu.memory_space<vmem>>, %arg9: memref<4x16xf32, #tpu.memory_space<vmem>>, %arg10: memref<4x12x48xbf16, #tpu.memory_space<vmem>>, %arg11: memref<1x48xf32, #tpu.memory_space<vmem>>, %arg12: memref<1x48xf32, #tpu.memory_space<vmem>>, %arg13: memref<48x96xbf16, #tpu.memory_space<vmem>>, %arg14: memref<1x96xf32, #tpu.memory_space<vmem>>, %arg15: memref<96x48xbf16, #tpu.memory_space<vmem>>, %arg16: memref<1x48xf32, #tpu.memory_space<vmem>>, %arg17: memref<2x8x48xf32, #tpu.memory_space<vmem>>) attributes {dimension_semantics = [#tpu.dimension_semantics<parallel>], iteration_bounds = array<i64: 1>, scalar_prefetch = 0 : i64, scratch_operands = 0 : i64, tpu.core_type = #tpu.core_type<tc>, window_params = [{transform_indices = @transform_0, window_bounds = array<i64: 2, 8, 48>}, {pipeline_mode = #tpu.pipeline_mode<synchronous>, transform_indices = @transform_1, window_bounds = array<i64: 15, 12>}, {pipeline_mode = #tpu.pipeline_mode<synchronous>, transform_indices = @transform_2, window_bounds = array<i64: 1, 48>}, {pipeline_mode = #tpu.pipeline_mode<synchronous>, transform_indices = @transform_3, window_bounds = array<i64: 1, 48>}, {pipeline_mode = #tpu.pipeline_mode<synchronous>, transform_indices = @transform_4, window_bounds = array<i64: 48, 176>}, {pipeline_mode = #tpu.pipeline_mode<synchronous>, transform_indices = @transform_5, window_bounds = array<i64: 1, 48>}, {pipeline_mode = #tpu.pipeline_mode<synchronous>, transform_indices = @transform_6, window_bounds = array<i64: 12, 64>}, {pipeline_mode = #tpu.pipeline_mode<synchronous>, transform_indices = @transform_7, window_bounds = array<i64: 4, 16>}, {pipeline_mode = #tpu.pipeline_mode<synchronous>, transform_indices = @transform_8, window_bounds = array<i64: 4, 16>}, {pipeline_mode = #tpu.pipeline_mode<synchronous>, transform_indices = @transform_9, window_bounds = array<i64: 4, 12, 48>}, {pipeline_mode = #tpu.pipeline_mode<synchronous>, transform_indices = @transform_10, window_bounds = array<i64: 1, 48>}, {pipeline_mode = #tpu.pipeline_mode<synchronous>, transform_indices = @transform_11, window_bounds = array<i64: 1, 48>}, {pipeline_mode = #tpu.pipeline_mode<synchronous>, transform_indices = @transform_12, window_bounds = array<i64: 48, 96>}, {pipeline_mode = #tpu.pipeline_mode<synchronous>, transform_indices = @transform_13, window_bounds = array<i64: 1, 96>}, {pipeline_mode = #tpu.pipeline_mode<synchronous>, transform_indices = @transform_14, window_bounds = array<i64: 96, 48>}, {pipeline_mode = #tpu.pipeline_mode<synchronous>, transform_indices = @transform_15, window_bounds = array<i64: 1, 48>}, {transform_indices = @transform_16, window_bounds = array<i64: 2, 8, 48>}]} {
    %c0 = arith.constant 0 : index
    %c0_0 = arith.constant 0 : index
    %c0_1 = arith.constant 0 : index
    %0 = vector.load %arg1[%c0, %c0_0, %c0_1] : memref<2x8x48xf32, #tpu.memory_space<vmem>>, vector<1x8x48xf32>
    %1 = vector.shape_cast %0 : vector<1x8x48xf32> to vector<8x48xf32>
    %c1 = arith.constant 1 : index
    %c0_2 = arith.constant 0 : index
    %c0_3 = arith.constant 0 : index
    %2 = vector.load %arg1[%c1, %c0_2, %c0_3] : memref<2x8x48xf32, #tpu.memory_space<vmem>>, vector<1x8x48xf32>
    %3 = vector.shape_cast %2 : vector<1x8x48xf32> to vector<8x48xf32>
    %4 = tpu.concatenate %1, %3 in 0 : vector<8x48xf32>, vector<8x48xf32> -> vector<16x48xf32>
    %c0_4 = arith.constant 0 : index
    %c0_5 = arith.constant 0 : index
    %5 = vector.load %arg3[%c0_4, %c0_5] : memref<1x48xf32, #tpu.memory_space<vmem>>, vector<1x48xf32>
    %c0_6 = arith.constant 0 : index
    %c0_7 = arith.constant 0 : index
    %6 = vector.load %arg4[%c0_6, %c0_7] : memref<1x48xf32, #tpu.memory_space<vmem>>, vector<1x48xf32>
    %cst = arith.constant dense<0.000000e+00> : vector<16xf32>
    %7 = vector.multi_reduction <add>, %4, %cst [1] : vector<16x48xf32> to vector<16xf32>
    %8 = vector.shape_cast %7 : vector<16xf32> to vector<16x1xf32>
    %cst_8 = arith.constant 4.800000e+01 : f32
    %9 = vector.broadcast %cst_8 : f32 to vector<16x1xf32>
    %10 = arith.divf %8, %9 : vector<16x1xf32>
    %11 = vector.broadcast %10 : vector<16x1xf32> to vector<16x48xf32>
    %12 = arith.subf %4, %11 : vector<16x48xf32>
    %13 = arith.mulf %12, %12 : vector<16x48xf32>
    %cst_9 = arith.constant dense<0.000000e+00> : vector<16xf32>
    %14 = vector.multi_reduction <add>, %13, %cst_9 [1] : vector<16x48xf32> to vector<16xf32>
    %15 = vector.shape_cast %14 : vector<16xf32> to vector<16x1xf32>
    %cst_10 = arith.constant 4.800000e+01 : f32
    %16 = vector.broadcast %cst_10 : f32 to vector<16x1xf32>
    %17 = arith.divf %15, %16 : vector<16x1xf32>
    %18 = vector.broadcast %10 : vector<16x1xf32> to vector<16x48xf32>
    %19 = arith.subf %4, %18 : vector<16x48xf32>
    %cst_11 = arith.constant 9.99999974E-6 : f32
    %20 = vector.broadcast %cst_11 : f32 to vector<16x1xf32>
    %21 = arith.addf %17, %20 : vector<16x1xf32>
    %22 = math.rsqrt %21 : vector<16x1xf32>
    %23 = vector.broadcast %22 : vector<16x1xf32> to vector<16x48xf32>
    %24 = arith.mulf %19, %23 : vector<16x48xf32>
    %25 = vector.broadcast %5 : vector<1x48xf32> to vector<16x48xf32>
    %26 = arith.mulf %24, %25 : vector<16x48xf32>
    %27 = vector.broadcast %6 : vector<1x48xf32> to vector<16x48xf32>
    %28 = arith.addf %26, %27 : vector<16x48xf32>
    %29 = arith.truncf %28 : vector<16x48xf32> to vector<16x48xbf16>
    %c0_12 = arith.constant 0 : index
    %c0_13 = arith.constant 0 : index
    %30 = vector.load %arg5[%c0_12, %c0_13] : memref<48x176xbf16, #tpu.memory_space<vmem>>, vector<48x176xbf16>
    %cst_14 = arith.constant dense<0.000000e+00> : vector<16x176xf32>
    %31 = tpu.matmul %29, %30, %cst_14 {dimension_numbers = #tpu.dot_dimension_numbers<[1], [0], [0], [1], [0, 0, 1, 1], [], []>} : vector<16x48xbf16>, vector<48x176xbf16>, vector<16x176xf32> -> vector<16x176xf32>
    %32 = vector.extract_strided_slice %31 {offsets = [0, 0], sizes = [16, 64], strides = [1, 1]} : vector<16x176xf32> to vector<16x64xf32>
    %cst_15 = arith.constant 2.500000e-01 : f32
    %33 = vector.broadcast %cst_15 : f32 to vector<16x64xf32>
    %34 = arith.mulf %32, %33 : vector<16x64xf32>
    %35 = vector.extract_strided_slice %31 {offsets = [0, 64], sizes = [16, 64], strides = [1, 1]} : vector<16x176xf32> to vector<16x64xf32>
    %36 = vector.extract_strided_slice %31 {offsets = [0, 128], sizes = [16, 48], strides = [1, 1]} : vector<16x176xf32> to vector<16x48xf32>
    %c0_16 = arith.constant 0 : index
    %c0_17 = arith.constant 0 : index
    %37 = vector.load %arg2[%c0_16, %c0_17] : memref<15x12xbf16, #tpu.memory_space<vmem>>, vector<15x12xbf16>
    %c0_18 = arith.constant 0 : index
    %c0_19 = arith.constant 0 : index
    %38 = vector.load %arg7[%c0_18, %c0_19] : memref<12x64xbf16, #tpu.memory_space<vmem>>, vector<12x64xbf16>
    %cst_20 = arith.constant dense<0.000000e+00> : vector<15x64xf32>
    %39 = tpu.matmul %37, %38, %cst_20 {dimension_numbers = #tpu.dot_dimension_numbers<[1], [0], [0], [1], [0, 0, 1, 1], [], []>} : vector<15x12xbf16>, vector<12x64xbf16>, vector<15x64xf32> -> vector<15x64xf32>
    %40 = vector.extract_strided_slice %34 {offsets = [0, 0], sizes = [16, 16], strides = [1, 1]} : vector<16x64xf32> to vector<16x16xf32>
    %41 = vector.extract_strided_slice %34 {offsets = [0, 16], sizes = [16, 16], strides = [1, 1]} : vector<16x64xf32> to vector<16x16xf32>
    %42 = vector.extract_strided_slice %34 {offsets = [0, 32], sizes = [16, 16], strides = [1, 1]} : vector<16x64xf32> to vector<16x16xf32>
    %43 = vector.extract_strided_slice %34 {offsets = [0, 48], sizes = [16, 16], strides = [1, 1]} : vector<16x64xf32> to vector<16x16xf32>
    %44 = vector.shape_cast %40 : vector<16x16xf32> to vector<1x16x16xf32>
    %45 = vector.shape_cast %41 : vector<16x16xf32> to vector<1x16x16xf32>
    %46 = vector.shape_cast %42 : vector<16x16xf32> to vector<1x16x16xf32>
    %47 = vector.shape_cast %43 : vector<16x16xf32> to vector<1x16x16xf32>
    %48 = tpu.concatenate %44, %45, %46, %47 in 0 : vector<1x16x16xf32>, vector<1x16x16xf32>, vector<1x16x16xf32>, vector<1x16x16xf32> -> vector<4x16x16xf32>
    %49 = vector.extract_strided_slice %35 {offsets = [0, 0], sizes = [16, 16], strides = [1, 1]} : vector<16x64xf32> to vector<16x16xf32>
    %50 = vector.extract_strided_slice %35 {offsets = [0, 16], sizes = [16, 16], strides = [1, 1]} : vector<16x64xf32> to vector<16x16xf32>
    %51 = vector.extract_strided_slice %35 {offsets = [0, 32], sizes = [16, 16], strides = [1, 1]} : vector<16x64xf32> to vector<16x16xf32>
    %52 = vector.extract_strided_slice %35 {offsets = [0, 48], sizes = [16, 16], strides = [1, 1]} : vector<16x64xf32> to vector<16x16xf32>
    %53 = vector.shape_cast %49 : vector<16x16xf32> to vector<1x16x16xf32>
    %54 = vector.shape_cast %50 : vector<16x16xf32> to vector<1x16x16xf32>
    %55 = vector.shape_cast %51 : vector<16x16xf32> to vector<1x16x16xf32>
    %56 = vector.shape_cast %52 : vector<16x16xf32> to vector<1x16x16xf32>
    %57 = tpu.concatenate %53, %54, %55, %56 in 0 : vector<1x16x16xf32>, vector<1x16x16xf32>, vector<1x16x16xf32>, vector<1x16x16xf32> -> vector<4x16x16xf32>
    %58 = arith.truncf %57 : vector<4x16x16xf32> to vector<4x16x16xbf16>
    %59 = vector.extract_strided_slice %36 {offsets = [0, 0], sizes = [16, 12], strides = [1, 1]} : vector<16x48xf32> to vector<16x12xf32>
    %60 = vector.extract_strided_slice %36 {offsets = [0, 12], sizes = [16, 12], strides = [1, 1]} : vector<16x48xf32> to vector<16x12xf32>
    %61 = vector.extract_strided_slice %36 {offsets = [0, 24], sizes = [16, 12], strides = [1, 1]} : vector<16x48xf32> to vector<16x12xf32>
    %62 = vector.extract_strided_slice %36 {offsets = [0, 36], sizes = [16, 12], strides = [1, 1]} : vector<16x48xf32> to vector<16x12xf32>
    %63 = vector.shape_cast %59 : vector<16x12xf32> to vector<1x16x12xf32>
    %64 = vector.shape_cast %60 : vector<16x12xf32> to vector<1x16x12xf32>
    %65 = vector.shape_cast %61 : vector<16x12xf32> to vector<1x16x12xf32>
    %66 = vector.shape_cast %62 : vector<16x12xf32> to vector<1x16x12xf32>
    %67 = tpu.concatenate %63, %64, %65, %66 in 0 : vector<1x16x12xf32>, vector<1x16x12xf32>, vector<1x16x12xf32>, vector<1x16x12xf32> -> vector<4x16x12xf32>
    %68 = arith.truncf %67 : vector<4x16x12xf32> to vector<4x16x12xbf16>
    %69 = vector.extract_strided_slice %39 {offsets = [0, 0], sizes = [15, 16], strides = [1, 1]} : vector<15x64xf32> to vector<15x16xf32>
    %70 = vector.extract_strided_slice %39 {offsets = [0, 16], sizes = [15, 16], strides = [1, 1]} : vector<15x64xf32> to vector<15x16xf32>
    %71 = vector.extract_strided_slice %39 {offsets = [0, 32], sizes = [15, 16], strides = [1, 1]} : vector<15x64xf32> to vector<15x16xf32>
    %72 = vector.extract_strided_slice %39 {offsets = [0, 48], sizes = [15, 16], strides = [1, 1]} : vector<15x64xf32> to vector<15x16xf32>
    %73 = vector.shape_cast %69 : vector<15x16xf32> to vector<1x15x16xf32>
    %74 = vector.shape_cast %70 : vector<15x16xf32> to vector<1x15x16xf32>
    %75 = vector.shape_cast %71 : vector<15x16xf32> to vector<1x15x16xf32>
    %76 = vector.shape_cast %72 : vector<15x16xf32> to vector<1x15x16xf32>
    %77 = tpu.concatenate %73, %74, %75, %76 in 0 : vector<1x15x16xf32>, vector<1x15x16xf32>, vector<1x15x16xf32>, vector<1x15x16xf32> -> vector<4x15x16xf32>
    %78 = arith.truncf %77 : vector<4x15x16xf32> to vector<4x15x16xbf16>
    %c0_21 = arith.constant 0 : index
    %c0_22 = arith.constant 0 : index
    %79 = vector.load %arg8[%c0_21, %c0_22] : memref<4x16xf32, #tpu.memory_space<vmem>>, vector<4x16xf32>
    %80 = vector.shape_cast %79 : vector<4x16xf32> to vector<4x1x16xf32>
    %81 = vector.broadcast %80 : vector<4x1x16xf32> to vector<4x16x16xf32>
    %82 = arith.addf %48, %81 : vector<4x16x16xf32>
    %83 = arith.truncf %82 : vector<4x16x16xf32> to vector<4x16x16xbf16>
    %c0_23 = arith.constant 0 : index
    %c0_24 = arith.constant 0 : index
    %84 = vector.load %arg9[%c0_23, %c0_24] : memref<4x16xf32, #tpu.memory_space<vmem>>, vector<4x16xf32>
    %85 = vector.shape_cast %84 : vector<4x16xf32> to vector<4x1x16xf32>
    %86 = vector.broadcast %85 : vector<4x1x16xf32> to vector<4x16x16xf32>
    %87 = arith.addf %48, %86 : vector<4x16x16xf32>
    %88 = arith.truncf %87 : vector<4x16x16xf32> to vector<4x16x16xbf16>
    %c0_25 = arith.constant 0 : index
    %c0_26 = arith.constant 0 : index
    %c0_27 = arith.constant 0 : index
    %89 = vector.load %arg10[%c0_25, %c0_26, %c0_27] : memref<4x12x48xbf16, #tpu.memory_space<vmem>>, vector<4x12x48xbf16>
    %90 = vector.extract_strided_slice %83 {offsets = [0, 0, 0], sizes = [4, 8, 16], strides = [1, 1, 1]} : vector<4x16x16xbf16> to vector<4x8x16xbf16>
    %91 = vector.extract_strided_slice %58 {offsets = [0, 0, 0], sizes = [4, 8, 16], strides = [1, 1, 1]} : vector<4x16x16xbf16> to vector<4x8x16xbf16>
    "tpu.trace_start"() <{level = 10 : i32, message = "hik,hjk->hij"}> : () -> ()
    %cst_28 = arith.constant dense<0.000000e+00> : vector<4x8x8xf32>
    %92 = tpu.matmul %90, %91, %cst_28 {dimension_numbers = #tpu.dot_dimension_numbers<[2], [2], [1], [1], [0, 0, 0, 1, 1, 1], [0], [0]>} : vector<4x8x16xbf16>, vector<4x8x16xbf16>, vector<4x8x8xf32> -> vector<4x8x8xf32>
    "tpu.trace_stop"() : () -> ()
    %93 = vector.extract_strided_slice %88 {offsets = [0, 0, 0], sizes = [4, 8, 16], strides = [1, 1, 1]} : vector<4x16x16xbf16> to vector<4x8x16xbf16>
    "tpu.trace_start"() <{level = 10 : i32, message = "hik,hjk->hij"}> : () -> ()
    %cst_29 = arith.constant dense<0.000000e+00> : vector<4x8x15xf32>
    %94 = tpu.matmul %93, %78, %cst_29 {dimension_numbers = #tpu.dot_dimension_numbers<[2], [2], [1], [1], [0, 0, 0, 1, 1, 1], [0], [0]>} : vector<4x8x16xbf16>, vector<4x15x16xbf16>, vector<4x8x15xf32> -> vector<4x8x15xf32>
    "tpu.trace_stop"() : () -> ()
    %95 = vector.extract_strided_slice %94 {offsets = [0, 0, 7], sizes = [4, 1, 8], strides = [1, 1, 1]} : vector<4x8x15xf32> to vector<4x1x8xf32>
    %96 = vector.extract_strided_slice %94 {offsets = [0, 1, 6], sizes = [4, 1, 8], strides = [1, 1, 1]} : vector<4x8x15xf32> to vector<4x1x8xf32>
    %97 = vector.extract_strided_slice %94 {offsets = [0, 2, 5], sizes = [4, 1, 8], strides = [1, 1, 1]} : vector<4x8x15xf32> to vector<4x1x8xf32>
    %98 = vector.extract_strided_slice %94 {offsets = [0, 3, 4], sizes = [4, 1, 8], strides = [1, 1, 1]} : vector<4x8x15xf32> to vector<4x1x8xf32>
    %99 = vector.extract_strided_slice %94 {offsets = [0, 4, 3], sizes = [4, 1, 8], strides = [1, 1, 1]} : vector<4x8x15xf32> to vector<4x1x8xf32>
    %100 = vector.extract_strided_slice %94 {offsets = [0, 5, 2], sizes = [4, 1, 8], strides = [1, 1, 1]} : vector<4x8x15xf32> to vector<4x1x8xf32>
    %101 = vector.extract_strided_slice %94 {offsets = [0, 6, 1], sizes = [4, 1, 8], strides = [1, 1, 1]} : vector<4x8x15xf32> to vector<4x1x8xf32>
    %102 = vector.extract_strided_slice %94 {offsets = [0, 7, 0], sizes = [4, 1, 8], strides = [1, 1, 1]} : vector<4x8x15xf32> to vector<4x1x8xf32>
    %103 = tpu.concatenate %95, %96, %97, %98, %99, %100, %101, %102 in 1 : vector<4x1x8xf32>, vector<4x1x8xf32>, vector<4x1x8xf32>, vector<4x1x8xf32>, vector<4x1x8xf32>, vector<4x1x8xf32>, vector<4x1x8xf32>, vector<4x1x8xf32> -> vector<4x8x8xf32>
    %104 = arith.addf %92, %103 : vector<4x8x8xf32>
    %cst_30 = arith.constant dense<0xFF800000> : vector<4x8xf32>
    %105 = vector.multi_reduction <maximumf>, %104, %cst_30 [2] : vector<4x8x8xf32> to vector<4x8xf32>
    %106 = vector.shape_cast %105 : vector<4x8xf32> to vector<4x8x1xf32>
    %107 = vector.broadcast %106 : vector<4x8x1xf32> to vector<4x8x8xf32>
    %108 = arith.subf %104, %107 : vector<4x8x8xf32>
    %109 = math.exp %108 : vector<4x8x8xf32>
    %cst_31 = arith.constant dense<0.000000e+00> : vector<4x8xf32>
    %110 = vector.multi_reduction <add>, %109, %cst_31 [2] : vector<4x8x8xf32> to vector<4x8xf32>
    %111 = vector.shape_cast %110 : vector<4x8xf32> to vector<4x8x1xf32>
    %112 = tpu.reciprocal %111 {approx = true} : vector<4x8x1xf32> -> vector<4x8x1xf32>
    %113 = vector.broadcast %112 : vector<4x8x1xf32> to vector<4x8x8xf32>
    %114 = arith.mulf %109, %113 : vector<4x8x8xf32>
    %115 = arith.truncf %114 : vector<4x8x8xf32> to vector<4x8x8xbf16>
    %116 = vector.extract_strided_slice %68 {offsets = [0, 0, 0], sizes = [4, 8, 12], strides = [1, 1, 1]} : vector<4x16x12xbf16> to vector<4x8x12xbf16>
    "tpu.trace_start"() <{level = 10 : i32, message = "hij,hjd->hid"}> : () -> ()
    %cst_32 = arith.constant dense<0.000000e+00> : vector<4x8x12xf32>
    %117 = tpu.matmul %115, %116, %cst_32 {dimension_numbers = #tpu.dot_dimension_numbers<[2], [1], [1], [2], [0, 0, 0, 1, 1, 2], [0], [0]>} : vector<4x8x8xbf16>, vector<4x8x12xbf16>, vector<4x8x12xf32> -> vector<4x8x12xf32>
    "tpu.trace_stop"() : () -> ()
    %118 = arith.truncf %117 : vector<4x8x12xf32> to vector<4x8x12xbf16>
    "tpu.trace_start"() <{level = 10 : i32, message = "hid,hdc->hic"}> : () -> ()
    %cst_33 = arith.constant dense<0.000000e+00> : vector<4x8x48xf32>
    %119 = tpu.matmul %118, %89, %cst_33 {dimension_numbers = #tpu.dot_dimension_numbers<[2], [1], [1], [2], [0, 0, 0, 1, 1, 2], [0], [0]>} : vector<4x8x12xbf16>, vector<4x12x48xbf16>, vector<4x8x48xf32> -> vector<4x8x48xf32>
    "tpu.trace_stop"() : () -> ()
    %cst_34 = arith.constant dense<0.000000e+00> : vector<8x48xf32>
    %120 = vector.multi_reduction <add>, %119, %cst_34 [0] : vector<4x8x48xf32> to vector<8x48xf32>
    %121 = vector.extract_strided_slice %83 {offsets = [0, 8, 0], sizes = [4, 8, 16], strides = [1, 1, 1]} : vector<4x16x16xbf16> to vector<4x8x16xbf16>
    %122 = vector.extract_strided_slice %58 {offsets = [0, 8, 0], sizes = [4, 8, 16], strides = [1, 1, 1]} : vector<4x16x16xbf16> to vector<4x8x16xbf16>
    "tpu.trace_start"() <{level = 10 : i32, message = "hik,hjk->hij"}> : () -> ()
    %cst_35 = arith.constant dense<0.000000e+00> : vector<4x8x8xf32>
    %123 = tpu.matmul %121, %122, %cst_35 {dimension_numbers = #tpu.dot_dimension_numbers<[2], [2], [1], [1], [0, 0, 0, 1, 1, 1], [0], [0]>} : vector<4x8x16xbf16>, vector<4x8x16xbf16>, vector<4x8x8xf32> -> vector<4x8x8xf32>
    "tpu.trace_stop"() : () -> ()
    %124 = vector.extract_strided_slice %88 {offsets = [0, 8, 0], sizes = [4, 8, 16], strides = [1, 1, 1]} : vector<4x16x16xbf16> to vector<4x8x16xbf16>
    "tpu.trace_start"() <{level = 10 : i32, message = "hik,hjk->hij"}> : () -> ()
    %cst_36 = arith.constant dense<0.000000e+00> : vector<4x8x15xf32>
    %125 = tpu.matmul %124, %78, %cst_36 {dimension_numbers = #tpu.dot_dimension_numbers<[2], [2], [1], [1], [0, 0, 0, 1, 1, 1], [0], [0]>} : vector<4x8x16xbf16>, vector<4x15x16xbf16>, vector<4x8x15xf32> -> vector<4x8x15xf32>
    "tpu.trace_stop"() : () -> ()
    %126 = vector.extract_strided_slice %125 {offsets = [0, 0, 7], sizes = [4, 1, 8], strides = [1, 1, 1]} : vector<4x8x15xf32> to vector<4x1x8xf32>
    %127 = vector.extract_strided_slice %125 {offsets = [0, 1, 6], sizes = [4, 1, 8], strides = [1, 1, 1]} : vector<4x8x15xf32> to vector<4x1x8xf32>
    %128 = vector.extract_strided_slice %125 {offsets = [0, 2, 5], sizes = [4, 1, 8], strides = [1, 1, 1]} : vector<4x8x15xf32> to vector<4x1x8xf32>
    %129 = vector.extract_strided_slice %125 {offsets = [0, 3, 4], sizes = [4, 1, 8], strides = [1, 1, 1]} : vector<4x8x15xf32> to vector<4x1x8xf32>
    %130 = vector.extract_strided_slice %125 {offsets = [0, 4, 3], sizes = [4, 1, 8], strides = [1, 1, 1]} : vector<4x8x15xf32> to vector<4x1x8xf32>
    %131 = vector.extract_strided_slice %125 {offsets = [0, 5, 2], sizes = [4, 1, 8], strides = [1, 1, 1]} : vector<4x8x15xf32> to vector<4x1x8xf32>
    %132 = vector.extract_strided_slice %125 {offsets = [0, 6, 1], sizes = [4, 1, 8], strides = [1, 1, 1]} : vector<4x8x15xf32> to vector<4x1x8xf32>
    %133 = vector.extract_strided_slice %125 {offsets = [0, 7, 0], sizes = [4, 1, 8], strides = [1, 1, 1]} : vector<4x8x15xf32> to vector<4x1x8xf32>
    %134 = tpu.concatenate %126, %127, %128, %129, %130, %131, %132, %133 in 1 : vector<4x1x8xf32>, vector<4x1x8xf32>, vector<4x1x8xf32>, vector<4x1x8xf32>, vector<4x1x8xf32>, vector<4x1x8xf32>, vector<4x1x8xf32>, vector<4x1x8xf32> -> vector<4x8x8xf32>
    %135 = arith.addf %123, %134 : vector<4x8x8xf32>
    %cst_37 = arith.constant dense<0xFF800000> : vector<4x8xf32>
    %136 = vector.multi_reduction <maximumf>, %135, %cst_37 [2] : vector<4x8x8xf32> to vector<4x8xf32>
    %137 = vector.shape_cast %136 : vector<4x8xf32> to vector<4x8x1xf32>
    %138 = vector.broadcast %137 : vector<4x8x1xf32> to vector<4x8x8xf32>
    %139 = arith.subf %135, %138 : vector<4x8x8xf32>
    %140 = math.exp %139 : vector<4x8x8xf32>
    %cst_38 = arith.constant dense<0.000000e+00> : vector<4x8xf32>
    %141 = vector.multi_reduction <add>, %140, %cst_38 [2] : vector<4x8x8xf32> to vector<4x8xf32>
    %142 = vector.shape_cast %141 : vector<4x8xf32> to vector<4x8x1xf32>
    %143 = tpu.reciprocal %142 {approx = true} : vector<4x8x1xf32> -> vector<4x8x1xf32>
    %144 = vector.broadcast %143 : vector<4x8x1xf32> to vector<4x8x8xf32>
    %145 = arith.mulf %140, %144 : vector<4x8x8xf32>
    %146 = arith.truncf %145 : vector<4x8x8xf32> to vector<4x8x8xbf16>
    %147 = vector.extract_strided_slice %68 {offsets = [0, 8, 0], sizes = [4, 8, 12], strides = [1, 1, 1]} : vector<4x16x12xbf16> to vector<4x8x12xbf16>
    "tpu.trace_start"() <{level = 10 : i32, message = "hij,hjd->hid"}> : () -> ()
    %cst_39 = arith.constant dense<0.000000e+00> : vector<4x8x12xf32>
    %148 = tpu.matmul %146, %147, %cst_39 {dimension_numbers = #tpu.dot_dimension_numbers<[2], [1], [1], [2], [0, 0, 0, 1, 1, 2], [0], [0]>} : vector<4x8x8xbf16>, vector<4x8x12xbf16>, vector<4x8x12xf32> -> vector<4x8x12xf32>
    "tpu.trace_stop"() : () -> ()
    %149 = arith.truncf %148 : vector<4x8x12xf32> to vector<4x8x12xbf16>
    "tpu.trace_start"() <{level = 10 : i32, message = "hid,hdc->hic"}> : () -> ()
    %cst_40 = arith.constant dense<0.000000e+00> : vector<4x8x48xf32>
    %150 = tpu.matmul %149, %89, %cst_40 {dimension_numbers = #tpu.dot_dimension_numbers<[2], [1], [1], [2], [0, 0, 0, 1, 1, 2], [0], [0]>} : vector<4x8x12xbf16>, vector<4x12x48xbf16>, vector<4x8x48xf32> -> vector<4x8x48xf32>
    "tpu.trace_stop"() : () -> ()
    %cst_41 = arith.constant dense<0.000000e+00> : vector<8x48xf32>
    %151 = vector.multi_reduction <add>, %150, %cst_41 [0] : vector<4x8x48xf32> to vector<8x48xf32>
    %152 = tpu.concatenate %120, %151 in 0 : vector<8x48xf32>, vector<8x48xf32> -> vector<16x48xf32>
    %c0_42 = arith.constant 0 : index
    %c0_43 = arith.constant 0 : index
    %153 = vector.load %arg6[%c0_42, %c0_43] : memref<1x48xf32, #tpu.memory_space<vmem>>, vector<1x48xf32>
    %154 = vector.broadcast %153 : vector<1x48xf32> to vector<16x48xf32>
    %155 = arith.addf %152, %154 : vector<16x48xf32>
    %156 = arith.addf %4, %155 : vector<16x48xf32>
    %c0_44 = arith.constant 0 : index
    %c0_45 = arith.constant 0 : index
    %157 = vector.load %arg11[%c0_44, %c0_45] : memref<1x48xf32, #tpu.memory_space<vmem>>, vector<1x48xf32>
    %c0_46 = arith.constant 0 : index
    %c0_47 = arith.constant 0 : index
    %158 = vector.load %arg12[%c0_46, %c0_47] : memref<1x48xf32, #tpu.memory_space<vmem>>, vector<1x48xf32>
    %cst_48 = arith.constant dense<0.000000e+00> : vector<16xf32>
    %159 = vector.multi_reduction <add>, %156, %cst_48 [1] : vector<16x48xf32> to vector<16xf32>
    %160 = vector.shape_cast %159 : vector<16xf32> to vector<16x1xf32>
    %cst_49 = arith.constant 4.800000e+01 : f32
    %161 = vector.broadcast %cst_49 : f32 to vector<16x1xf32>
    %162 = arith.divf %160, %161 : vector<16x1xf32>
    %163 = vector.broadcast %162 : vector<16x1xf32> to vector<16x48xf32>
    %164 = arith.subf %156, %163 : vector<16x48xf32>
    %165 = arith.mulf %164, %164 : vector<16x48xf32>
    %cst_50 = arith.constant dense<0.000000e+00> : vector<16xf32>
    %166 = vector.multi_reduction <add>, %165, %cst_50 [1] : vector<16x48xf32> to vector<16xf32>
    %167 = vector.shape_cast %166 : vector<16xf32> to vector<16x1xf32>
    %cst_51 = arith.constant 4.800000e+01 : f32
    %168 = vector.broadcast %cst_51 : f32 to vector<16x1xf32>
    %169 = arith.divf %167, %168 : vector<16x1xf32>
    %170 = vector.broadcast %162 : vector<16x1xf32> to vector<16x48xf32>
    %171 = arith.subf %156, %170 : vector<16x48xf32>
    %cst_52 = arith.constant 9.99999974E-6 : f32
    %172 = vector.broadcast %cst_52 : f32 to vector<16x1xf32>
    %173 = arith.addf %169, %172 : vector<16x1xf32>
    %174 = math.rsqrt %173 : vector<16x1xf32>
    %175 = vector.broadcast %174 : vector<16x1xf32> to vector<16x48xf32>
    %176 = arith.mulf %171, %175 : vector<16x48xf32>
    %177 = vector.broadcast %157 : vector<1x48xf32> to vector<16x48xf32>
    %178 = arith.mulf %176, %177 : vector<16x48xf32>
    %179 = vector.broadcast %158 : vector<1x48xf32> to vector<16x48xf32>
    %180 = arith.addf %178, %179 : vector<16x48xf32>
    %181 = arith.truncf %180 : vector<16x48xf32> to vector<16x48xbf16>
    %c0_53 = arith.constant 0 : index
    %c0_54 = arith.constant 0 : index
    %182 = vector.load %arg13[%c0_53, %c0_54] : memref<48x96xbf16, #tpu.memory_space<vmem>>, vector<48x96xbf16>
    %cst_55 = arith.constant dense<0.000000e+00> : vector<16x96xf32>
    %183 = tpu.matmul %181, %182, %cst_55 {dimension_numbers = #tpu.dot_dimension_numbers<[1], [0], [0], [1], [0, 0, 1, 1], [], []>} : vector<16x48xbf16>, vector<48x96xbf16>, vector<16x96xf32> -> vector<16x96xf32>
    %c0_56 = arith.constant 0 : index
    %c0_57 = arith.constant 0 : index
    %184 = vector.load %arg14[%c0_56, %c0_57] : memref<1x96xf32, #tpu.memory_space<vmem>>, vector<1x96xf32>
    %185 = vector.broadcast %184 : vector<1x96xf32> to vector<16x96xf32>
    %186 = arith.addf %183, %185 : vector<16x96xf32>
    %cst_58 = arith.constant 0.000000e+00 : f32
    %187 = vector.broadcast %cst_58 : f32 to vector<16x96xf32>
    %188 = arith.maximumf %186, %187 : vector<16x96xf32>
    %189 = arith.truncf %188 : vector<16x96xf32> to vector<16x96xbf16>
    %c0_59 = arith.constant 0 : index
    %c0_60 = arith.constant 0 : index
    %190 = vector.load %arg15[%c0_59, %c0_60] : memref<96x48xbf16, #tpu.memory_space<vmem>>, vector<96x48xbf16>
    %cst_61 = arith.constant dense<0.000000e+00> : vector<16x48xf32>
    %191 = tpu.matmul %189, %190, %cst_61 {dimension_numbers = #tpu.dot_dimension_numbers<[1], [0], [0], [1], [0, 0, 1, 1], [], []>} : vector<16x96xbf16>, vector<96x48xbf16>, vector<16x48xf32> -> vector<16x48xf32>
    %c0_62 = arith.constant 0 : index
    %c0_63 = arith.constant 0 : index
    %192 = vector.load %arg16[%c0_62, %c0_63] : memref<1x48xf32, #tpu.memory_space<vmem>>, vector<1x48xf32>
    %193 = vector.broadcast %192 : vector<1x48xf32> to vector<16x48xf32>
    %194 = arith.addf %191, %193 : vector<16x48xf32>
    %195 = arith.addf %156, %194 : vector<16x48xf32>
    %196 = vector.extract_strided_slice %195 {offsets = [0, 0], sizes = [8, 48], strides = [1, 1]} : vector<16x48xf32> to vector<8x48xf32>
    %c0_64 = arith.constant 0 : index
    %c0_65 = arith.constant 0 : index
    %c0_66 = arith.constant 0 : index
    %197 = vector.load %arg17[%c0_64, %c0_65, %c0_66] : memref<2x8x48xf32, #tpu.memory_space<vmem>>, vector<1x8x48xf32>
    %198 = vector.shape_cast %197 : vector<1x8x48xf32> to vector<8x48xf32>
    %199 = vector.shape_cast %196 : vector<8x48xf32> to vector<1x8x48xf32>
    tpu.vector_store %arg17[%c0_64, %c0_65, %c0_66], %199 {strides = array<i32>} : memref<2x8x48xf32, #tpu.memory_space<vmem>>, vector<1x8x48xf32>,
    %200 = vector.extract_strided_slice %195 {offsets = [8, 0], sizes = [8, 48], strides = [1, 1]} : vector<16x48xf32> to vector<8x48xf32>
    %c1_67 = arith.constant 1 : index
    %c0_68 = arith.constant 0 : index
    %c0_69 = arith.constant 0 : index
    %201 = vector.load %arg17[%c1_67, %c0_68, %c0_69] : memref<2x8x48xf32, #tpu.memory_space<vmem>>, vector<1x8x48xf32>
    %202 = vector.shape_cast %201 : vector<1x8x48xf32> to vector<8x48xf32>
    %203 = vector.shape_cast %200 : vector<8x48xf32> to vector<1x8x48xf32>
    tpu.vector_store %arg17[%c1_67, %c0_68, %c0_69], %203 {strides = array<i32>} : memref<2x8x48xf32, #tpu.memory_space<vmem>>, vector<1x8x48xf32>,
    return
  }
  func.func @transform_0(%arg0: i32) -> (i32, i32, i32) {
    %c0_i32 = arith.constant 0 : i32
    %c0_i32_0 = arith.constant 0 : i32
    %c0_i32_1 = arith.constant 0 : i32
    return %arg0, %c0_i32, %c0_i32_0 : i32, i32, i32
  }
  func.func @transform_1(%arg0: i32) -> (i32, i32) {
    %c0_i32 = arith.constant 0 : i32
    %c0_i32_0 = arith.constant 0 : i32
    %c0_i32_1 = arith.constant 0 : i32
    return %c0_i32, %c0_i32_0 : i32, i32
  }
  func.func @transform_2(%arg0: i32) -> (i32, i32) {
    %c0_i32 = arith.constant 0 : i32
    %c0_i32_0 = arith.constant 0 : i32
    %c0_i32_1 = arith.constant 0 : i32
    return %c0_i32, %c0_i32_0 : i32, i32
  }
  func.func @transform_3(%arg0: i32) -> (i32, i32) {
    %c0_i32 = arith.constant 0 : i32
    %c0_i32_0 = arith.constant 0 : i32
    %c0_i32_1 = arith.constant 0 : i32
    return %c0_i32, %c0_i32_0 : i32, i32
  }
  func.func @transform_4(%arg0: i32) -> (i32, i32) {
    %c0_i32 = arith.constant 0 : i32
    %c0_i32_0 = arith.constant 0 : i32
    %c0_i32_1 = arith.constant 0 : i32
    return %c0_i32, %c0_i32_0 : i32, i32
  }
  func.func @transform_5(%arg0: i32) -> (i32, i32) {
    %c0_i32 = arith.constant 0 : i32
    %c0_i32_0 = arith.constant 0 : i32
    %c0_i32_1 = arith.constant 0 : i32
    return %c0_i32, %c0_i32_0 : i32, i32
  }
  func.func @transform_6(%arg0: i32) -> (i32, i32) {
    %c0_i32 = arith.constant 0 : i32
    %c0_i32_0 = arith.constant 0 : i32
    %c0_i32_1 = arith.constant 0 : i32
    return %c0_i32, %c0_i32_0 : i32, i32
  }
  func.func @transform_7(%arg0: i32) -> (i32, i32) {
    %c0_i32 = arith.constant 0 : i32
    %c0_i32_0 = arith.constant 0 : i32
    %c0_i32_1 = arith.constant 0 : i32
    return %c0_i32, %c0_i32_0 : i32, i32
  }
  func.func @transform_8(%arg0: i32) -> (i32, i32) {
    %c0_i32 = arith.constant 0 : i32
    %c0_i32_0 = arith.constant 0 : i32
    %c0_i32_1 = arith.constant 0 : i32
    return %c0_i32, %c0_i32_0 : i32, i32
  }
  func.func @transform_9(%arg0: i32) -> (i32, i32, i32) {
    %c0_i32 = arith.constant 0 : i32
    %c0_i32_0 = arith.constant 0 : i32
    %c0_i32_1 = arith.constant 0 : i32
    %c0_i32_2 = arith.constant 0 : i32
    return %c0_i32, %c0_i32_0, %c0_i32_1 : i32, i32, i32
  }
  func.func @transform_10(%arg0: i32) -> (i32, i32) {
    %c0_i32 = arith.constant 0 : i32
    %c0_i32_0 = arith.constant 0 : i32
    %c0_i32_1 = arith.constant 0 : i32
    return %c0_i32, %c0_i32_0 : i32, i32
  }
  func.func @transform_11(%arg0: i32) -> (i32, i32) {
    %c0_i32 = arith.constant 0 : i32
    %c0_i32_0 = arith.constant 0 : i32
    %c0_i32_1 = arith.constant 0 : i32
    return %c0_i32, %c0_i32_0 : i32, i32
  }
  func.func @transform_12(%arg0: i32) -> (i32, i32) {
    %c0_i32 = arith.constant 0 : i32
    %c0_i32_0 = arith.constant 0 : i32
    %c0_i32_1 = arith.constant 0 : i32
    return %c0_i32, %c0_i32_0 : i32, i32
  }
  func.func @transform_13(%arg0: i32) -> (i32, i32) {
    %c0_i32 = arith.constant 0 : i32
    %c0_i32_0 = arith.constant 0 : i32
    %c0_i32_1 = arith.constant 0 : i32
    return %c0_i32, %c0_i32_0 : i32, i32
  }
  func.func @transform_14(%arg0: i32) -> (i32, i32) {
    %c0_i32 = arith.constant 0 : i32
    %c0_i32_0 = arith.constant 0 : i32
    %c0_i32_1 = arith.constant 0 : i32
    return %c0_i32, %c0_i32_0 : i32, i32
  }
  func.func @transform_15(%arg0: i32) -> (i32, i32) {
    %c0_i32 = arith.constant 0 : i32
    %c0_i32_0 = arith.constant 0 : i32
    %c0_i32_1 = arith.constant 0 : i32
    return %c0_i32, %c0_i32_0 : i32, i32
  }
  func.func @transform_16(%arg0: i32) -> (i32, i32, i32) {
    %c0_i32 = arith.constant 0 : i32
    %c0_i32_0 = arith.constant 0 : i32
    %c0_i32_1 = arith.constant 0 : i32
    return %arg0, %c0_i32, %c0_i32_0 : i32, i32, i32
  }
}

</mosaic_0001>

<llo_original>
// kernel: tpu_custom_call.1
$region0: #{tpu_custom_call.1}
  #allocation0 [shape = 'u32[]', space=smem, size = 0x4, offset = 0x4, fixed_abs, tag = 'smem constant byte address 0x4 - core index']
  #allocation1 [shape = 'u32[144,128]{1,0:T(1,128)}', space=vmem, size = 0x12000, scoped, tag = 'internal scratch']
  %s0 = inlined_call_operand.vmem [shape: f32[2,8,48], index: 0, kind: input, shape index: {}]
  %s1 = inlined_call_operand.vmem [shape: bf16[15,12], index: 1, kind: input, shape index: {}]
  %s2 = inlined_call_operand.vmem [shape: f32[1,48], index: 2, kind: input, shape index: {}]
  %s3 = inlined_call_operand.vmem [shape: f32[1,48], index: 3, kind: input, shape index: {}]
  %s4 = inlined_call_operand.vmem [shape: bf16[48,176], index: 4, kind: input, shape index: {}]
  %s5 = inlined_call_operand.hbm [shape: f32[1,48], index: 5, kind: input, shape index: {}]
  %s6 = inlined_call_operand.vmem [shape: bf16[12,64], index: 6, kind: input, shape index: {}]
  %s7 = inlined_call_operand.vmem [shape: f32[4,16], index: 7, kind: input, shape index: {}]
  %s8 = inlined_call_operand.vmem [shape: f32[4,16], index: 8, kind: input, shape index: {}]
  %s9 = inlined_call_operand.vmem [shape: bf16[4,12,48], index: 9, kind: input, shape index: {}]
  %s10 = inlined_call_operand.vmem [shape: f32[1,48], index: 10, kind: input, shape index: {}]
  %s11 = inlined_call_operand.vmem [shape: f32[1,48], index: 11, kind: input, shape index: {}]
  %s12 = inlined_call_operand.vmem [shape: bf16[48,96], index: 12, kind: input, shape index: {}]
  %s13 = inlined_call_operand.vmem [shape: f32[1,96], index: 13, kind: input, shape index: {}]
  %s14 = inlined_call_operand.vmem [shape: bf16[96,48], index: 14, kind: input, shape index: {}]
  %s15 = inlined_call_operand.vmem [shape: f32[1,48], index: 15, kind: input, shape index: {}]
  %s16 = inlined_call_operand.hbm [shape: f32[2,8,48], index: 16, kind: output, shape index: {}]
  %s17 = sld [smem:[#allocation0]]
  $region78: #{tpu_custom_call.1} parent=0
    _
  %s19 = ssub.s32 1, %s17
  %s20 = scalar_select 0, %s19, %s17
  $region1: #{tpu_custom_call.1} parent=0
    #allocation2 [shape = 'u8[512]{0}', space=vmem, size = 0x400, scoped, tag = 'input window, operand 5, single buffered']
    #allocation3 [shape = 's32[1]{0}', space=sflag, size = 0x4, scoped, tag = 'scoped memory for tpu_custom_call.1']
    #allocation4 [shape = 's32[1]{0}', space=sflag, size = 0x4, scoped, tag = 'scoped memory for tpu_custom_call.1']
    #allocation5 [shape = 'u8[8192]{0}', space=vmem, size = 0x2000, scoped, tag = 'output window, operand 0, single buffered']
    %21 = vsyncpa [#allocation3], 0
    %22 = vsyncpa [#allocation4], 0
    // Predicated region
    $region2: #{tpu_custom_call.1} parent=1 // pred_check
      _
    $region3: #{tpu_custom_call.1} parent=1 // pred_check_branch
      %24 = sbr.rel (0) target = $region5
    $region4: #{tpu_custom_call.1} parent=1 // pred_region
      _
    $region5: #{tpu_custom_call.1} parent=1 // pred_fallthru
      _
    // Predicated region
    $region6: #{tpu_custom_call.1} parent=1 // pred_check
      _
    $region7: #{tpu_custom_call.1} parent=1 // pred_check_branch
      %26 = sbr.rel (0) target = $region9
    $region8: #{tpu_custom_call.1} parent=1 // pred_region
      _
    $region9: #{tpu_custom_call.1} parent=1 // pred_fallthru
      _
    // Predicated region
    $region10: #{tpu_custom_call.1} parent=1 // pred_check
      _
    $region11: #{tpu_custom_call.1} parent=1 // pred_check_branch
      %28 = sbr.rel (0) target = $region13
    $region12: #{tpu_custom_call.1} parent=1 // pred_region
      _
    $region13: #{tpu_custom_call.1} parent=1 // pred_fallthru
      _
    // Predicated region
    $region14: #{tpu_custom_call.1} parent=1 // pred_check
      _
    $region15: #{tpu_custom_call.1} parent=1 // pred_check_branch
      %30 = sbr.rel (0) target = $region17
    $region16: #{tpu_custom_call.1} parent=1 // pred_region
      _
    $region17: #{tpu_custom_call.1} parent=1 // pred_fallthru
      _
    // Predicated region
    $region18: #{tpu_custom_call.1} parent=1 // pred_check
      _
    $region19: #{tpu_custom_call.1} parent=1 // pred_check_branch
      %32 = sbr.rel (0) target = $region21
    $region20: #{tpu_custom_call.1} parent=1 // pred_region
      _
    $region21: #{tpu_custom_call.1} parent=1 // pred_fallthru
      _
    // Predicated region
    $region22: #{tpu_custom_call.1} parent=1 // pred_check
      _
    $region23: #{tpu_custom_call.1} parent=1 // pred_check_branch
      %34 = sbr.rel (0) target = $region25
    $region24: #{tpu_custom_call.1} parent=1 // pred_region
      %s36 = ssub.s32 16, 16
      %37 = vsyncadd [#allocation3], %s36
      %s39 = sshll.u32 [#allocation2], 4
      %s40 = int_to_ptr.vmem [resolvable:$true] %s39
      %42 = dma.hbm_to_vmem [thread:$0]  %s5, 16, %s40, [#allocation3]
    $region25: #{tpu_custom_call.1} parent=1 // pred_fallthru
      _
    // Predicated region
    $region26: #{tpu_custom_call.1} parent=1 // pred_check
      _
    $region27: #{tpu_custom_call.1} parent=1 // pred_check_branch
      %44 = sbr.rel (0) target = $region29
    $region28: #{tpu_custom_call.1} parent=1 // pred_region
      _
    $region29: #{tpu_custom_call.1} parent=1 // pred_fallthru
      _
    // Predicated region
    $region30: #{tpu_custom_call.1} parent=1 // pred_check
      _
    $region31: #{tpu_custom_call.1} parent=1 // pred_check_branch
      %46 = sbr.rel (0) target = $region33
    $region32: #{tpu_custom_call.1} parent=1 // pred_region
      _
    $region33: #{tpu_custom_call.1} parent=1 // pred_fallthru
      _
    // Predicated region
    $region34: #{tpu_custom_call.1} parent=1 // pred_check
      _
    $region35: #{tpu_custom_call.1} parent=1 // pred_check_branch
      %48 = sbr.rel (0) target = $region37
    $region36: #{tpu_custom_call.1} parent=1 // pred_region
      _
    $region37: #{tpu_custom_call.1} parent=1 // pred_fallthru
      _
    // Predicated region
    $region38: #{tpu_custom_call.1} parent=1 // pred_check
      _
    $region39: #{tpu_custom_call.1} parent=1 // pred_check_branch
      %50 = sbr.rel (0) target = $region41
    $region40: #{tpu_custom_call.1} parent=1 // pred_region
      _
    $region41: #{tpu_custom_call.1} parent=1 // pred_fallthru
      _
    // Predicated region
    $region42: #{tpu_custom_call.1} parent=1 // pred_check
      _
    $region43: #{tpu_custom_call.1} parent=1 // pred_check_branch
      %52 = sbr.rel (0) target = $region45
    $region44: #{tpu_custom_call.1} parent=1 // pred_region
      _
    $region45: #{tpu_custom_call.1} parent=1 // pred_fallthru
      _
    // Predicated region
    $region46: #{tpu_custom_call.1} parent=1 // pred_check
      _
    $region47: #{tpu_custom_call.1} parent=1 // pred_check_branch
      %54 = sbr.rel (0) target = $region49
    $region48: #{tpu_custom_call.1} parent=1 // pred_region
      _
    $region49: #{tpu_custom_call.1} parent=1 // pred_fallthru
      _
    // Predicated region
    $region50: #{tpu_custom_call.1} parent=1 // pred_check
      _
    $region51: #{tpu_custom_call.1} parent=1 // pred_check_branch
      %56 = sbr.rel (0) target = $region53
    $region52: #{tpu_custom_call.1} parent=1 // pred_region
      _
    $region53: #{tpu_custom_call.1} parent=1 // pred_fallthru
      _
    // Predicated region
    $region54: #{tpu_custom_call.1} parent=1 // pred_check
      _
    $region55: #{tpu_custom_call.1} parent=1 // pred_check_branch
      %58 = sbr.rel (0) target = $region57
    $region56: #{tpu_custom_call.1} parent=1 // pred_region
      _
    $region57: #{tpu_custom_call.1} parent=1 // pred_fallthru
      _
    // Predicated region
    $region58: #{tpu_custom_call.1} parent=1 // pred_check
      _
    $region59: #{tpu_custom_call.1} parent=1 // pred_check_branch
      %60 = sbr.rel (0) target = $region61
    $region60: #{tpu_custom_call.1} parent=1 // pred_region
      _
    $region61: #{tpu_custom_call.1} parent=1 // pred_fallthru
      _
    // Predicated region
    $region62: #{tpu_custom_call.1} parent=1 // pred_check
      _
    $region63: #{tpu_custom_call.1} parent=1 // pred_check_branch
      %62 = sbr.rel (0) target = $region65
    $region64: #{tpu_custom_call.1} parent=1 // pred_region
      _
    $region65: #{tpu_custom_call.1} parent=1 // pred_fallthru
      _
    // Predicated region
    $region66: #{tpu_custom_call.1} parent=1 // pred_check
      _
    $region67: #{tpu_custom_call.1} parent=1 // pred_check_branch
      %64 = sbr.rel (0) target = $region69
    $region68: #{tpu_custom_call.1} parent=1 // pred_region
      %65 = dma.done [#allocation3], 16
    $region69: #{tpu_custom_call.1} parent=1 // pred_fallthru
      _
    %v67 = vld [vmem:[%s0] sm:$0xff]
    %s68 = scalar_lea.vmem %s0, 8
    %v69 = vld [vmem:[%s68] sm:$0xff]
    %v70 = vld [vmem:[%s2] sm:$0x1]
    %v71 = vld [vmem:[%s3] sm:$0x1]
    %vm72 = vcmask 392192
    %v73 = vsel %vm72, %v67, 0.0
    %74 = vadd.xlane.f32.xlu0 %v73
    %v75 = vpop.xlane.xlu0 %74
    %v76 = vsel %vm72, %v69, 0.0
    %77 = vadd.xlane.f32.xlu0 %v76
    %v78 = vpop.xlane.xlu0 %77
    %v79 = vrcp.pop 48.0
    %v80 = vmul.f32 %v75, %v79
    %v81 = vmul.f32 %v78, %v79
    %v82 = vsub.f32 %v67, %v80
    %v83 = vsub.f32 %v69, %v81
    %v84 = vmul.f32 %v82, %v82
    %v85 = vmul.f32 %v83, %v83
    %v86 = vsel %vm72, %v84, 0.0
    %87 = vadd.xlane.f32.xlu0 %v86
    %v88 = vpop.xlane.xlu0 %87
    %v89 = vsel %vm72, %v85, 0.0
    %90 = vadd.xlane.f32.xlu0 %v89
    %v91 = vpop.xlane.xlu0 %90
    %v92 = vmul.f32 %v88, %v79
    %v93 = vmul.f32 %v91, %v79
    %v94 = vadd.f32 %v92, 1e-05
    %v95 = vadd.f32 %v93, 1e-05
    %v96 = vrsqrt.pop %v94
    %v97 = vrsqrt.pop %v95
    %v98 = vmul.f32 %v82, %v96
    %v99 = vmul.f32 %v83, %v97
    %v101 = vlaneseq
    %v102 = vshrl.u32 %v101, 7
    %v103 = vsub.s32 0, %v102
    %v104 = vrot.slane %v70, %v103
    %v106 = vmul.f32 %v98, %v104
    %v107 = vmul.f32 %v99, %v104
    %v109 = vlaneseq
    %v110 = vshrl.u32 %v109, 7
    %v111 = vsub.s32 0, %v110
    %v112 = vrot.slane %v71, %v111
    %v114 = vadd.f32 %v106, %v112
    %v115 = vadd.f32 %v107, %v112
    %v116 = vpack.c.bf16 %v115, %v114
    %v117 = vld [vmem:[%s4] sm:$0xff]
    %v118 = vld [vmem:[%s4 + $0x8] sm:$0xff]
    %v119 = vld [vmem:[%s4 + $0x10] sm:$0xff]
    %v120 = vld [vmem:[%s4 + $0x18] sm:$0xff]
    %v121 = vld [vmem:[%s4 + $0x20] sm:$0xff]
    %v122 = vld [vmem:[%s4 + $0x28] sm:$0xff]
    %v129 = vunpack.c.l.b16 %v117
    %v130 = vunpack.c.h.b16 %v117
    %v131 = vunpack.c.l.b16 %v118
    %v132 = vunpack.c.h.b16 %v118
    %v133 = vunpack.c.l.b16 %v119
    %v134 = vunpack.c.h.b16 %v119
    %v135 = vunpack.c.l.b16 %v120
    %v136 = vunpack.c.h.b16 %v120
    %v137 = vunpack.c.l.b16 %v121
    %v138 = vunpack.c.h.b16 %v121
    %v139 = vunpack.c.l.b16 %v122
    %v140 = vunpack.c.h.b16 %v122
    %v141 = vpack.c.b16 %v131, %v129
    %v142 = vpack.c.b16 %v132, %v130
    %v143 = vpack.c.b16 %v135, %v133
    %v144 = vpack.c.b16 %v136, %v134
    %v145 = vpack.c.b16 %v139, %v137
    %v146 = vpack.c.b16 %v140, %v138
    %v154 = vsel %vm72, %v116, 0
    %156 = vmatprep.subr.bf16.mxu0 %v142
    %157 = vmatpush1.bf16.msra.mxu0 %v141
    %158 = vmatprep.subr.bf16.mxu0 %v144
    %159 = vmatpush1.bf16.msra.mxu0 %v143
    %160 = vmatprep.subr.bf16.mxu0 %v146
    %161 = vmatpush1.bf16.msra.mxu0 %v145
    %162 = vmatprep.subr.bf16.mxu0 0
    %163 = vmatpush1.bf16.msra.mxu0 0
    %164 = vmatprep.subr.bf16.mxu0 0
    %165 = vmatpush1.bf16.msra.mxu0 0
    %166 = vmatprep.subr.bf16.mxu0 0
    %167 = vmatpush1.bf16.msra.mxu0 0
    %168 = vmatprep.subr.bf16.mxu0 0
    %169 = vmatpush1.bf16.msra.mxu0 0
    %170 = vmatprep.subr.bf16.mxu0 0
    %171 = vmatpush1.bf16.msra.mxu0 0
    %172 = vmatprep.subr.bf16.mxu0 0
    %173 = vmatpush1.bf16.msra.mxu0 0
    %174 = vmatprep.subr.bf16.mxu0 0
    %175 = vmatpush1.bf16.msra.mxu0 0
    %176 = vmatprep.subr.bf16.mxu0 0
    %177 = vmatpush1.bf16.msra.mxu0 0
    %178 = vmatprep.subr.bf16.mxu0 0
    %179 = vmatpush1.bf16.msra.mxu0 0
    %180 = vmatprep.subr.bf16.mxu0 0
    %181 = vmatpush1.bf16.msra.mxu0 0
    %182 = vmatprep.subr.bf16.mxu0 0
    %183 = vmatpush1.bf16.msra.mxu0 0
    %184 = vmatprep.subr.bf16.mxu0 0
    %185 = vmatpush1.bf16.msra.mxu0 0
    %186 = vmatprep.subr.bf16.mxu0 0
    %187 = vmatpush1.bf16.msra.mxu0 0
    %188 = vmatprep.mubr.bf16.mxu0 0
    %189 = vmatmul.mubr.bf16.gmra.mrb[0].mxu0 %v154
    %v190 = vpop.f32.mrb[0].mxu0
    %v191 = vadd.f32 0.0, %v190
    %v192 = vpop.f32.mrb[0].mxu0
    %v193 = vadd.f32 0.0, %v192
    %v194 = vpop.f32.mrb[0].mxu0
    %v195 = vadd.f32 0.0, %v194
    %v196 = vpop.f32.mrb[0].mxu0
    %v197 = vadd.f32 0.0, %v196
    %198 = vdwg.mxu0
    %v199 = vmul.f32 %v191, 0.25
    %v200 = vmul.f32 %v195, 0.25
    %v201 = vld [vmem:[%s1] sm:$0xf]
    %v202 = vld [vmem:[%s1 + $0x4] sm:$0xf]
    %v203 = vld [vmem:[%s6] sm:$0xf]
    %v204 = vld [vmem:[%s6 + $0x4] sm:$0x3]
    %v207 = vunpack.c.l.b16 %v201
    %v208 = vunpack.c.l.b16 %v202
    %v209 = vpack.c.b16 %v208, %v207
    %v212 = vunpack.c.l.b16 %v203
    %v213 = vunpack.c.l.b16 %v204
    %v214 = vpack.c.b16 %v213, %v212
    %vm215 = vcmask 97280
    %v217 = vsel %vm215, %v209, 0
    %vm219 = vcmask 1045504
    %v221 = vsel %vm219, %v214, 0
    %223 = vmatprep.subr.bf16.mxu0 0
    %224 = vmatpush1.bf16.msra.mxu0 %v221
    %225 = vmatprep.subr.bf16.mxu0 0
    %226 = vmatpush1.bf16.msra.mxu0 0
    %227 = vmatprep.subr.bf16.mxu0 0
    %228 = vmatpush1.bf16.msra.mxu0 0
    %229 = vmatprep.subr.bf16.mxu0 0
    %230 = vmatpush1.bf16.msra.mxu0 0
    %231 = vmatprep.subr.bf16.mxu0 0
    %232 = vmatpush1.bf16.msra.mxu0 0
    %233 = vmatprep.subr.bf16.mxu0 0
    %234 = vmatpush1.bf16.msra.mxu0 0
    %235 = vmatprep.subr.bf16.mxu0 0
    %236 = vmatpush1.bf16.msra.mxu0 0
    %237 = vmatprep.subr.bf16.mxu0 0
    %238 = vmatpush1.bf16.msra.mxu0 0
    %239 = vmatprep.subr.bf16.mxu0 0
    %240 = vmatpush1.bf16.msra.mxu0 0
    %241 = vmatprep.subr.bf16.mxu0 0
    %242 = vmatpush1.bf16.msra.mxu0 0
    %243 = vmatprep.subr.bf16.mxu0 0
    %244 = vmatpush1.bf16.msra.mxu0 0
    %245 = vmatprep.subr.bf16.mxu0 0
    %246 = vmatpush1.bf16.msra.mxu0 0
    %247 = vmatprep.subr.bf16.mxu0 0
    %248 = vmatpush1.bf16.msra.mxu0 0
    %249 = vmatprep.subr.bf16.mxu0 0
    %250 = vmatpush1.bf16.msra.mxu0 0
    %251 = vmatprep.subr.bf16.mxu0 0
    %252 = vmatpush1.bf16.msra.mxu0 0
    %253 = vmatprep.subr.bf16.mxu0 0
    %254 = vmatpush1.bf16.msra.mxu0 0
    %255 = vmatprep.mubr.bf16.mxu0 0
    %256 = vmatmul.mubr.bf16.gmra.mrb[0].mxu0 %v217
    %v257 = vpop.f32.mrb[0].mxu0
    %v258 = vadd.f32 0.0, %v257
    %v259 = vpop.f32.mrb[0].mxu0
    %v260 = vpop.f32.mrb[0].mxu0
    %v261 = vadd.f32 0.0, %v260
    %v262 = vpop.f32.mrb[0].mxu0
    %263 = vdwg.mxu0
    %266 = vrot.lane.b32.xlu0 %v199, 112
    %v267 = vpop.permute.xlu0 %266
    %268 = vrot.lane.b32.xlu0 %v200, 112
    %v269 = vpop.permute.xlu0 %268
    %272 = vrot.lane.b32.xlu0 %v199, 96
    %v273 = vpop.permute.xlu0 %272
    %274 = vrot.lane.b32.xlu0 %v200, 96
    %v275 = vpop.permute.xlu0 %274
    %278 = vrot.lane.b32.xlu0 %v199, 80
    %v279 = vpop.permute.xlu0 %278
    %280 = vrot.lane.b32.xlu0 %v200, 80
    %v281 = vpop.permute.xlu0 %280
    %286 = vrot.lane.b32.xlu0 %v191, 112
    %v287 = vpop.permute.xlu0 %286
    %288 = vrot.lane.b32.xlu0 %v195, 112
    %v289 = vpop.permute.xlu0 %288
    %292 = vrot.lane.b32.xlu0 %v191, 96
    %v293 = vpop.permute.xlu0 %292
    %294 = vrot.lane.b32.xlu0 %v195, 96
    %v295 = vpop.permute.xlu0 %294
    %298 = vrot.lane.b32.xlu0 %v191, 80
    %v299 = vpop.permute.xlu0 %298
    %300 = vrot.lane.b32.xlu0 %v195, 80
    %v301 = vpop.permute.xlu0 %300
    %v304 = vpack.c.bf16 %v195, %v191
    %v305 = vpack.c.bf16 %v289, %v287
    %v306 = vpack.c.bf16 %v295, %v293
    %v307 = vpack.c.bf16 %v301, %v299
    %310 = vrot.lane.b32.xlu0 %v193, 116
    %v311 = vpop.permute.xlu0 %310
    %312 = vrot.lane.b32.xlu0 %v197, 116
    %v313 = vpop.permute.xlu0 %312
    %316 = vrot.lane.b32.xlu0 %v193, 104
    %v317 = vpop.permute.xlu0 %316
    %318 = vrot.lane.b32.xlu0 %v197, 104
    %v319 = vpop.permute.xlu0 %318
    %322 = vrot.lane.b32.xlu0 %v193, 92
    %v323 = vpop.permute.xlu0 %322
    %324 = vrot.lane.b32.xlu0 %v197, 92
    %v325 = vpop.permute.xlu0 %324
    %v328 = vpack.c.bf16 %v197, %v193
    %v329 = vpack.c.bf16 %v313, %v311
    %v330 = vpack.c.bf16 %v319, %v317
    %v331 = vpack.c.bf16 %v325, %v323
    %334 = vrot.lane.b32.xlu0 %v258, 112
    %v335 = vpop.permute.xlu0 %334
    %336 = vrot.lane.b32.xlu0 %v261, 112
    %v337 = vpop.permute.xlu0 %336
    %340 = vrot.lane.b32.xlu0 %v258, 96
    %v341 = vpop.permute.xlu0 %340
    %342 = vrot.lane.b32.xlu0 %v261, 96
    %v343 = vpop.permute.xlu0 %342
    %346 = vrot.lane.b32.xlu0 %v258, 80
    %v347 = vpop.permute.xlu0 %346
    %348 = vrot.lane.b32.xlu0 %v261, 80
    %v349 = vpop.permute.xlu0 %348
    %v352 = vpack.c.bf16 %v261, %v258
    %v353 = vpack.c.bf16 %v337, %v335
    %v354 = vpack.c.bf16 %v343, %v341
    %v355 = vpack.c.bf16 %v349, %v347
    %v356 = vld [vmem:[%s7] sm:$0xf]
    %v359 = vunpack.c.l.s4 1966171168
    %v360 = vunpack.c.0.s8 %v359
    %v361 = vlaneseq
    %v362 = vshrl.u32 %v361, 7
    %v363 = vsub.s32 %v360, %v362
    %v364 = vrot.slane %v356, %v363
    %v365 = vcombine.high %v364, %v364
    %v367 = vunpack.c.l.s4 1966171168
    %v368 = vunpack.c.0.s8 %v367
    %v369 = vlaneseq
    %v370 = vshrl.u32 %v369, 7
    %v371 = vsub.s32 %v368, %v370
    %v372 = vrot.slane %v364, %v371
    %v374 = vunpack.c.l.s4 1966171168
    %v375 = vunpack.c.0.s8 %v374
    %v376 = vlaneseq
    %v377 = vshrl.u32 %v376, 7
    %v378 = vsub.s32 %v375, %v377
    %v379 = vrot.slane %v365, %v378
    %v380 = vcombine.high %v372, %v372
    %v381 = vcombine.high %v379, %v379
    %v382 = vlaneseq
    %v383 = vshrl.u32 %v382, 7
    %v384 = vsub.s32 0, %v383
    %v385 = vrot.slane %v372, %v384
    %v386 = vlaneseq
    %v387 = vshrl.u32 %v386, 7
    %v388 = vsub.s32 0, %v387
    %v389 = vrot.slane %v379, %v388
    %v390 = vlaneseq
    %v391 = vshrl.u32 %v390, 7
    %v392 = vsub.s32 0, %v391
    %v393 = vrot.slane %v380, %v392
    %v394 = vlaneseq
    %v395 = vshrl.u32 %v394, 7
    %v396 = vsub.s32 0, %v395
    %v397 = vrot.slane %v381, %v396
    %v402 = vadd.f32 %v199, %v385
    %v403 = vadd.f32 %v200, %v385
    %v404 = vadd.f32 %v267, %v389
    %v405 = vadd.f32 %v269, %v389
    %v406 = vadd.f32 %v273, %v393
    %v407 = vadd.f32 %v275, %v393
    %v408 = vadd.f32 %v279, %v397
    %v409 = vadd.f32 %v281, %v397
    %v410 = vpack.c.bf16 %v403, %v402
    %v411 = vpack.c.bf16 %v405, %v404
    %v412 = vpack.c.bf16 %v407, %v406
    %v413 = vpack.c.bf16 %v409, %v408
    %v414 = vld [vmem:[%s8] sm:$0xf]
    %v417 = vunpack.c.l.s4 1966171168
    %v418 = vunpack.c.0.s8 %v417
    %v419 = vlaneseq
    %v420 = vshrl.u32 %v419, 7
    %v421 = vsub.s32 %v418, %v420
    %v422 = vrot.slane %v414, %v421
    %v423 = vcombine.high %v422, %v422
    %v425 = vunpack.c.l.s4 1966171168
    %v426 = vunpack.c.0.s8 %v425
    %v427 = vlaneseq
    %v428 = vshrl.u32 %v427, 7
    %v429 = vsub.s32 %v426, %v428
    %v430 = vrot.slane %v422, %v429
    %v432 = vunpack.c.l.s4 1966171168
    %v433 = vunpack.c.0.s8 %v432
    %v434 = vlaneseq
    %v435 = vshrl.u32 %v434, 7
    %v436 = vsub.s32 %v433, %v435
    %v437 = vrot.slane %v423, %v436
    %v438 = vcombine.high %v430, %v430
    %v439 = vcombine.high %v437, %v437
    %v440 = vlaneseq
    %v441 = vshrl.u32 %v440, 7
    %v442 = vsub.s32 0, %v441
    %v443 = vrot.slane %v430, %v442
    %v444 = vlaneseq
    %v445 = vshrl.u32 %v444, 7
    %v446 = vsub.s32 0, %v445
    %v447 = vrot.slane %v437, %v446
    %v448 = vlaneseq
    %v449 = vshrl.u32 %v448, 7
    %v450 = vsub.s32 0, %v449
    %v451 = vrot.slane %v438, %v450
    %v452 = vlaneseq
    %v453 = vshrl.u32 %v452, 7
    %v454 = vsub.s32 0, %v453
    %v455 = vrot.slane %v439, %v454
    %v460 = vadd.f32 %v199, %v443
    %v461 = vadd.f32 %v200, %v443
    %v462 = vadd.f32 %v267, %v447
    %v463 = vadd.f32 %v269, %v447
    %v464 = vadd.f32 %v273, %v451
    %v465 = vadd.f32 %v275, %v451
    %v466 = vadd.f32 %v279, %v455
    %v467 = vadd.f32 %v281, %v455
    %v468 = vpack.c.bf16 %v461, %v460
    %v469 = vpack.c.bf16 %v463, %v462
    %v470 = vpack.c.bf16 %v465, %v464
    %v471 = vpack.c.bf16 %v467, %v466
    %v472 = vld [vmem:[%s9] sm:$0xf]
    %v473 = vld [vmem:[%s9 + $0x4] sm:$0x3]
    %v474 = vld [vmem:[%s9 + $0x8] sm:$0xf]
    %v475 = vld [vmem:[%s9 + $0xc] sm:$0x3]
    %v476 = vld [vmem:[%s9 + $0x10] sm:$0xf]
    %v477 = vld [vmem:[%s9 + $0x14] sm:$0x3]
    %v478 = vld [vmem:[%s9 + $0x18] sm:$0xf]
    %v479 = vld [vmem:[%s9 + $0x1c] sm:$0x3]
    %vm480 = vcmask 130048
    %v482 = vsel %vm480, %v468, 0
    %v485 = vsel %vm480, %v352, 0
    %487 = vmatprep.subr.bf16.mxu0 0
    %488 = vmatpush1.bf16.xpose.msra.mxu0 %v485
    %489 = vmatprep.subr.bf16.mxu0 0
    %490 = vmatpush1.bf16.xpose.msra.mxu0 0
    %491 = vmatprep.subr.bf16.mxu0 0
    %492 = vmatpush1.bf16.xpose.msra.mxu0 0
    %493 = vmatprep.subr.bf16.mxu0 0
    %494 = vmatpush1.bf16.xpose.msra.mxu0 0
    %495 = vmatprep.subr.bf16.mxu0 0
    %496 = vmatpush1.bf16.xpose.msra.mxu0 0
    %497 = vmatprep.subr.bf16.mxu0 0
    %498 = vmatpush1.bf16.xpose.msra.mxu0 0
    %499 = vmatprep.subr.bf16.mxu0 0
    %500 = vmatpush1.bf16.xpose.msra.mxu0 0
    %501 = vmatprep.subr.bf16.mxu0 0
    %502 = vmatpush1.bf16.xpose.msra.mxu0 0
    %503 = vmatprep.subr.bf16.mxu0 0
    %504 = vmatpush1.bf16.xpose.msra.mxu0 0
    %505 = vmatprep.subr.bf16.mxu0 0
    %506 = vmatpush1.bf16.xpose.msra.mxu0 0
    %507 = vmatprep.subr.bf16.mxu0 0
    %508 = vmatpush1.bf16.xpose.msra.mxu0 0
    %509 = vmatprep.subr.bf16.mxu0 0
    %510 = vmatpush1.bf16.xpose.msra.mxu0 0
    %511 = vmatprep.subr.bf16.mxu0 0
    %512 = vmatpush1.bf16.xpose.msra.mxu0 0
    %513 = vmatprep.subr.bf16.mxu0 0
    %514 = vmatpush1.bf16.xpose.msra.mxu0 0
    %515 = vmatprep.subr.bf16.mxu0 0
    %516 = vmatpush1.bf16.xpose.msra.mxu0 0
    %517 = vmatprep.subr.bf16.mxu0 0
    %518 = vmatpush1.bf16.xpose.msra.mxu0 0
    %519 = vmatprep.mubr.bf16.mxu0 0
    %520 = vmatmul.mubr.bf16.gmra.mrb[0].mxu0 %v482
    %v521 = vpop.f32.mrb[0].mxu0
    %v522 = vadd.f32 0.0, %v521
    %v523 = vpop.f32.mrb[0].mxu0
    %v524 = vpop.f32.mrb[0].mxu0
    %v525 = vpop.f32.mrb[0].mxu0
    %526 = vdwg.mxu0
    %v528 = vsel %vm480, %v469, 0
    %v531 = vsel %vm480, %v353, 0
    %533 = vmatprep.subr.bf16.mxu0 0
    %534 = vmatpush1.bf16.xpose.msra.mxu0 %v531
    %535 = vmatprep.subr.bf16.mxu0 0
    %536 = vmatpush1.bf16.xpose.msra.mxu0 0
    %537 = vmatprep.subr.bf16.mxu0 0
    %538 = vmatpush1.bf16.xpose.msra.mxu0 0
    %539 = vmatprep.subr.bf16.mxu0 0
    %540 = vmatpush1.bf16.xpose.msra.mxu0 0
    %541 = vmatprep.subr.bf16.mxu0 0
    %542 = vmatpush1.bf16.xpose.msra.mxu0 0
    %543 = vmatprep.subr.bf16.mxu0 0
    %544 = vmatpush1.bf16.xpose.msra.mxu0 0
    %545 = vmatprep.subr.bf16.mxu0 0
    %546 = vmatpush1.bf16.xpose.msra.mxu0 0
    %547 = vmatprep.subr.bf16.mxu0 0
    %548 = vmatpush1.bf16.xpose.msra.mxu0 0
    %549 = vmatprep.subr.bf16.mxu0 0
    %550 = vmatpush1.bf16.xpose.msra.mxu0 0
    %551 = vmatprep.subr.bf16.mxu0 0
    %552 = vmatpush1.bf16.xpose.msra.mxu0 0
    %553 = vmatprep.subr.bf16.mxu0 0
    %554 = vmatpush1.bf16.xpose.msra.mxu0 0
    %555 = vmatprep.subr.bf16.mxu0 0
    %556 = vmatpush1.bf16.xpose.msra.mxu0 0
    %557 = vmatprep.subr.bf16.mxu0 0
    %558 = vmatpush1.bf16.xpose.msra.mxu0 0
    %559 = vmatprep.subr.bf16.mxu0 0
    %560 = vmatpush1.bf16.xpose.msra.mxu0 0
    %561 = vmatprep.subr.bf16.mxu0 0
    %562 = vmatpush1.bf16.xpose.msra.mxu0 0
    %563 = vmatprep.subr.bf16.mxu0 0
    %564 = vmatpush1.bf16.xpose.msra.mxu0 0
    %565 = vmatprep.mubr.bf16.mxu0 0
    %566 = vmatmul.mubr.bf16.gmra.mrb[0].mxu0 %v528
    %v567 = vpop.f32.mrb[0].mxu0
    %v568 = vadd.f32 0.0, %v567
    %v569 = vpop.f32.mrb[0].mxu0
    %v570 = vpop.f32.mrb[0].mxu0
    %v571 = vpop.f32.mrb[0].mxu0
    %572 = vdwg.mxu0
    %v574 = vsel %vm480, %v470, 0
    %v577 = vsel %vm480, %v354, 0
    %579 = vmatprep.subr.bf16.mxu0 0
    %580 = vmatpush1.bf16.xpose.msra.mxu0 %v577
    %581 = vmatprep.subr.bf16.mxu0 0
    %582 = vmatpush1.bf16.xpose.msra.mxu0 0
    %583 = vmatprep.subr.bf16.mxu0 0
    %584 = vmatpush1.bf16.xpose.msra.mxu0 0
    %585 = vmatprep.subr.bf16.mxu0 0
    %586 = vmatpush1.bf16.xpose.msra.mxu0 0
    %587 = vmatprep.subr.bf16.mxu0 0
    %588 = vmatpush1.bf16.xpose.msra.mxu0 0
    %589 = vmatprep.subr.bf16.mxu0 0
    %590 = vmatpush1.bf16.xpose.msra.mxu0 0
    %591 = vmatprep.subr.bf16.mxu0 0
    %592 = vmatpush1.bf16.xpose.msra.mxu0 0
    %593 = vmatprep.subr.bf16.mxu0 0
    %594 = vmatpush1.bf16.xpose.msra.mxu0 0
    %595 = vmatprep.subr.bf16.mxu0 0
    %596 = vmatpush1.bf16.xpose.msra.mxu0 0
    %597 = vmatprep.subr.bf16.mxu0 0
    %598 = vmatpush1.bf16.xpose.msra.mxu0 0
    %599 = vmatprep.subr.bf16.mxu0 0
    %600 = vmatpush1.bf16.xpose.msra.mxu0 0
    %601 = vmatprep.subr.bf16.mxu0 0
    %602 = vmatpush1.bf16.xpose.msra.mxu0 0
    %603 = vmatprep.subr.bf16.mxu0 0
    %604 = vmatpush1.bf16.xpose.msra.mxu0 0
    %605 = vmatprep.subr.bf16.mxu0 0
    %606 = vmatpush1.bf16.xpose.msra.mxu0 0
    %607 = vmatprep.subr.bf16.mxu0 0
    %608 = vmatpush1.bf16.xpose.msra.mxu0 0
    %609 = vmatprep.subr.bf16.mxu0 0
    %610 = vmatpush1.bf16.xpose.msra.mxu0 0
    %611 = vmatprep.mubr.bf16.mxu0 0
    %612 = vmatmul.mubr.bf16.gmra.mrb[0].mxu0 %v574
    %v613 = vpop.f32.mrb[0].mxu0
    %v614 = vadd.f32 0.0, %v613
    %v615 = vpop.f32.mrb[0].mxu0
    %v616 = vpop.f32.mrb[0].mxu0
    %v617 = vpop.f32.mrb[0].mxu0
    %618 = vdwg.mxu0
    %v620 = vsel %vm480, %v471, 0
    %v623 = vsel %vm480, %v355, 0
    %625 = vmatprep.subr.bf16.mxu0 0
    %626 = vmatpush1.bf16.xpose.msra.mxu0 %v623
    %627 = vmatprep.subr.bf16.mxu0 0
    %628 = vmatpush1.bf16.xpose.msra.mxu0 0
    %629 = vmatprep.subr.bf16.mxu0 0
    %630 = vmatpush1.bf16.xpose.msra.mxu0 0
    %631 = vmatprep.subr.bf16.mxu0 0
    %632 = vmatpush1.bf16.xpose.msra.mxu0 0
    %633 = vmatprep.subr.bf16.mxu0 0
    %634 = vmatpush1.bf16.xpose.msra.mxu0 0
    %635 = vmatprep.subr.bf16.mxu0 0
    %636 = vmatpush1.bf16.xpose.msra.mxu0 0
    %637 = vmatprep.subr.bf16.mxu0 0
    %638 = vmatpush1.bf16.xpose.msra.mxu0 0
    %639 = vmatprep.subr.bf16.mxu0 0
    %640 = vmatpush1.bf16.xpose.msra.mxu0 0
    %641 = vmatprep.subr.bf16.mxu0 0
    %642 = vmatpush1.bf16.xpose.msra.mxu0 0
    %643 = vmatprep.subr.bf16.mxu0 0
    %644 = vmatpush1.bf16.xpose.msra.mxu0 0
    %645 = vmatprep.subr.bf16.mxu0 0
    %646 = vmatpush1.bf16.xpose.msra.mxu0 0
    %647 = vmatprep.subr.bf16.mxu0 0
    %648 = vmatpush1.bf16.xpose.msra.mxu0 0
    %649 = vmatprep.subr.bf16.mxu0 0
    %650 = vmatpush1.bf16.xpose.msra.mxu0 0
    %651 = vmatprep.subr.bf16.mxu0 0
    %652 = vmatpush1.bf16.xpose.msra.mxu0 0
    %653 = vmatprep.subr.bf16.mxu0 0
    %654 = vmatpush1.bf16.xpose.msra.mxu0 0
    %655 = vmatprep.subr.bf16.mxu0 0
    %656 = vmatpush1.bf16.xpose.msra.mxu0 0
    %657 = vmatprep.mubr.bf16.mxu0 0
    %658 = vmatmul.mubr.bf16.gmra.mrb[0].mxu0 %v620
    %v659 = vpop.f32.mrb[0].mxu0
    %v660 = vadd.f32 0.0, %v659
    %v661 = vpop.f32.mrb[0].mxu0
    %v662 = vpop.f32.mrb[0].mxu0
    %v663 = vpop.f32.mrb[0].mxu0
    %664 = vdwg.mxu0
    %669 = vrot.lane.b32.xlu0 %v522, 1
    %v670 = vpop.permute.xlu0 %669
    %671 = vrot.lane.b32.xlu0 %v568, 1
    %v672 = vpop.permute.xlu0 %671
    %673 = vrot.lane.b32.xlu0 %v614, 1
    %v674 = vpop.permute.xlu0 %673
    %675 = vrot.lane.b32.xlu0 %v660, 1
    %v676 = vpop.permute.xlu0 %675
    %681 = vrot.lane.b32.xlu0 %v522, 2
    %v682 = vpop.permute.xlu0 %681
    %683 = vrot.lane.b32.xlu0 %v568, 2
    %v684 = vpop.permute.xlu0 %683
    %685 = vrot.lane.b32.xlu0 %v614, 2
    %v686 = vpop.permute.xlu0 %685
    %687 = vrot.lane.b32.xlu0 %v660, 2
    %v688 = vpop.permute.xlu0 %687
    %693 = vrot.lane.b32.xlu0 %v522, 3
    %v694 = vpop.permute.xlu0 %693
    %695 = vrot.lane.b32.xlu0 %v568, 3
    %v696 = vpop.permute.xlu0 %695
    %697 = vrot.lane.b32.xlu0 %v614, 3
    %v698 = vpop.permute.xlu0 %697
    %699 = vrot.lane.b32.xlu0 %v660, 3
    %v700 = vpop.permute.xlu0 %699
    %705 = vrot.lane.b32.xlu0 %v522, 4
    %v706 = vpop.permute.xlu0 %705
    %707 = vrot.lane.b32.xlu0 %v568, 4
    %v708 = vpop.permute.xlu0 %707
    %709 = vrot.lane.b32.xlu0 %v614, 4
    %v710 = vpop.permute.xlu0 %709
    %711 = vrot.lane.b32.xlu0 %v660, 4
    %v712 = vpop.permute.xlu0 %711
    %717 = vrot.lane.b32.xlu0 %v522, 5
    %v718 = vpop.permute.xlu0 %717
    %719 = vrot.lane.b32.xlu0 %v568, 5
    %v720 = vpop.permute.xlu0 %719
    %721 = vrot.lane.b32.xlu0 %v614, 5
    %v722 = vpop.permute.xlu0 %721
    %723 = vrot.lane.b32.xlu0 %v660, 5
    %v724 = vpop.permute.xlu0 %723
    %729 = vrot.lane.b32.xlu0 %v522, 6
    %v730 = vpop.permute.xlu0 %729
    %731 = vrot.lane.b32.xlu0 %v568, 6
    %v732 = vpop.permute.xlu0 %731
    %733 = vrot.lane.b32.xlu0 %v614, 6
    %v734 = vpop.permute.xlu0 %733
    %735 = vrot.lane.b32.xlu0 %v660, 6
    %v736 = vpop.permute.xlu0 %735
    %741 = vrot.lane.b32.xlu0 %v522, 7
    %v742 = vpop.permute.xlu0 %741
    %743 = vrot.lane.b32.xlu0 %v568, 7
    %v744 = vpop.permute.xlu0 %743
    %745 = vrot.lane.b32.xlu0 %v614, 7
    %v746 = vpop.permute.xlu0 %745
    %747 = vrot.lane.b32.xlu0 %v660, 7
    %v748 = vpop.permute.xlu0 %747
    %vm753 = vcmask 1040384
    %v754 = vsel %vm753, %v522, %v670
    %v755 = vsel %vm753, %v568, %v672
    %v756 = vsel %vm753, %v614, %v674
    %v757 = vsel %vm753, %v660, %v676
    %vm758 = vcmask 1041408
    %v759 = vsel %vm758, %v754, %v682
    %v760 = vsel %vm758, %v755, %v684
    %v761 = vsel %vm758, %v756, %v686
    %v762 = vsel %vm758, %v757, %v688
    %vm763 = vcmask 1042432
    %v764 = vsel %vm763, %v759, %v694
    %v765 = vsel %vm763, %v760, %v696
    %v766 = vsel %vm763, %v761, %v698
    %v767 = vsel %vm763, %v762, %v700
    %vm768 = vcmask 1043456
    %v769 = vsel %vm768, %v764, %v706
    %v770 = vsel %vm768, %v765, %v708
    %v771 = vsel %vm768, %v766, %v710
    %v772 = vsel %vm768, %v767, %v712
    %vm773 = vcmask 1044480
    %v774 = vsel %vm773, %v769, %v718
    %v775 = vsel %vm773, %v770, %v720
    %v776 = vsel %vm773, %v771, %v722
    %v777 = vsel %vm773, %v772, %v724
    %v778 = vsel %vm219, %v774, %v730
    %v779 = vsel %vm219, %v775, %v732
    %v780 = vsel %vm219, %v776, %v734
    %v781 = vsel %vm219, %v777, %v736
    %vm782 = vcmask 1046528
    %v783 = vsel %vm782, %v778, %v742
    %v784 = vsel %vm782, %v779, %v744
    %v785 = vsel %vm782, %v780, %v746
    %v786 = vsel %vm782, %v781, %v748
    %788 = vrot.lane.b32.xlu0 %v304, 64
    %v789 = vpop.permute.xlu0 %788
    %791 = vrot.lane.b32.xlu0 %v783, 121
    %v792 = vpop.permute.xlu0 %791
    %v795 = vsel %vm480, %v410, 0
    %v798 = vsel %vm480, %v789, 0
    %800 = vmatprep.subr.bf16.mxu0 0
    %801 = vmatpush1.bf16.xpose.msra.mxu0 %v798
    %802 = vmatprep.subr.bf16.mxu0 0
    %803 = vmatpush1.bf16.xpose.msra.mxu0 0
    %804 = vmatprep.subr.bf16.mxu0 0
    %805 = vmatpush1.bf16.xpose.msra.mxu0 0
    %806 = vmatprep.subr.bf16.mxu0 0
    %807 = vmatpush1.bf16.xpose.msra.mxu0 0
    %808 = vmatprep.subr.bf16.mxu0 0
    %809 = vmatpush1.bf16.xpose.msra.mxu0 0
    %810 = vmatprep.subr.bf16.mxu0 0
    %811 = vmatpush1.bf16.xpose.msra.mxu0 0
    %812 = vmatprep.subr.bf16.mxu0 0
    %813 = vmatpush1.bf16.xpose.msra.mxu0 0
    %814 = vmatprep.subr.bf16.mxu0 0
    %815 = vmatpush1.bf16.xpose.msra.mxu0 0
    %816 = vmatprep.subr.bf16.mxu0 0
    %817 = vmatpush1.bf16.xpose.msra.mxu0 0
    %818 = vmatprep.subr.bf16.mxu0 0
    %819 = vmatpush1.bf16.xpose.msra.mxu0 0
    %820 = vmatprep.subr.bf16.mxu0 0
    %821 = vmatpush1.bf16.xpose.msra.mxu0 0
    %822 = vmatprep.subr.bf16.mxu0 0
    %823 = vmatpush1.bf16.xpose.msra.mxu0 0
    %824 = vmatprep.subr.bf16.mxu0 0
    %825 = vmatpush1.bf16.xpose.msra.mxu0 0
    %826 = vmatprep.subr.bf16.mxu0 0
    %827 = vmatpush1.bf16.xpose.msra.mxu0 0
    %828 = vmatprep.subr.bf16.mxu0 0
    %829 = vmatpush1.bf16.xpose.msra.mxu0 0
    %830 = vmatprep.subr.bf16.mxu0 0
    %831 = vmatpush1.bf16.xpose.msra.mxu0 0
    %832 = vmatprep.mubr.bf16.mxu0 0
    %833 = vmatmul.mubr.bf16.gmra.mrb[0].mxu0 %v795
    %v834 = vpop.f32.mrb[0].mxu0
    %v835 = vadd.f32 %v792, %v834
    %v836 = vpop.f32.mrb[0].mxu0
    %v837 = vpop.f32.mrb[0].mxu0
    %v838 = vpop.f32.mrb[0].mxu0
    %839 = vdwg.mxu0
    %841 = vrot.lane.b32.xlu0 %v305, 64
    %v842 = vpop.permute.xlu0 %841
    %844 = vrot.lane.b32.xlu0 %v784, 121
    %v845 = vpop.permute.xlu0 %844
    %v848 = vsel %vm480, %v411, 0
    %v851 = vsel %vm480, %v842, 0
    %853 = vmatprep.subr.bf16.mxu0 0
    %854 = vmatpush1.bf16.xpose.msra.mxu0 %v851
    %855 = vmatprep.subr.bf16.mxu0 0
    %856 = vmatpush1.bf16.xpose.msra.mxu0 0
    %857 = vmatprep.subr.bf16.mxu0 0
    %858 = vmatpush1.bf16.xpose.msra.mxu0 0
    %859 = vmatprep.subr.bf16.mxu0 0
    %860 = vmatpush1.bf16.xpose.msra.mxu0 0
    %861 = vmatprep.subr.bf16.mxu0 0
    %862 = vmatpush1.bf16.xpose.msra.mxu0 0
    %863 = vmatprep.subr.bf16.mxu0 0
    %864 = vmatpush1.bf16.xpose.msra.mxu0 0
    %865 = vmatprep.subr.bf16.mxu0 0
    %866 = vmatpush1.bf16.xpose.msra.mxu0 0
    %867 = vmatprep.subr.bf16.mxu0 0
    %868 = vmatpush1.bf16.xpose.msra.mxu0 0
    %869 = vmatprep.subr.bf16.mxu0 0
    %870 = vmatpush1.bf16.xpose.msra.mxu0 0
    %871 = vmatprep.subr.bf16.mxu0 0
    %872 = vmatpush1.bf16.xpose.msra.mxu0 0
    %873 = vmatprep.subr.bf16.mxu0 0
    %874 = vmatpush1.bf16.xpose.msra.mxu0 0
    %875 = vmatprep.subr.bf16.mxu0 0
    %876 = vmatpush1.bf16.xpose.msra.mxu0 0
    %877 = vmatprep.subr.bf16.mxu0 0
    %878 = vmatpush1.bf16.xpose.msra.mxu0 0
    %879 = vmatprep.subr.bf16.mxu0 0
    %880 = vmatpush1.bf16.xpose.msra.mxu0 0
    %881 = vmatprep.subr.bf16.mxu0 0
    %882 = vmatpush1.bf16.xpose.msra.mxu0 0
    %883 = vmatprep.subr.bf16.mxu0 0
    %884 = vmatpush1.bf16.xpose.msra.mxu0 0
    %885 = vmatprep.mubr.bf16.mxu0 0
    %886 = vmatmul.mubr.bf16.gmra.mrb[0].mxu0 %v848
    %v887 = vpop.f32.mrb[0].mxu0
    %v888 = vadd.f32 %v845, %v887
    %v889 = vpop.f32.mrb[0].mxu0
    %v890 = vpop.f32.mrb[0].mxu0
    %v891 = vpop.f32.mrb[0].mxu0
    %892 = vdwg.mxu0
    %894 = vrot.lane.b32.xlu0 %v306, 64
    %v895 = vpop.permute.xlu0 %894
    %897 = vrot.lane.b32.xlu0 %v785, 121
    %v898 = vpop.permute.xlu0 %897
    %v901 = vsel %vm480, %v412, 0
    %v904 = vsel %vm480, %v895, 0
    %906 = vmatprep.subr.bf16.mxu0 0
    %907 = vmatpush1.bf16.xpose.msra.mxu0 %v904
    %908 = vmatprep.subr.bf16.mxu0 0
    %909 = vmatpush1.bf16.xpose.msra.mxu0 0
    %910 = vmatprep.subr.bf16.mxu0 0
    %911 = vmatpush1.bf16.xpose.msra.mxu0 0
    %912 = vmatprep.subr.bf16.mxu0 0
    %913 = vmatpush1.bf16.xpose.msra.mxu0 0
    %914 = vmatprep.subr.bf16.mxu0 0
    %915 = vmatpush1.bf16.xpose.msra.mxu0 0
    %916 = vmatprep.subr.bf16.mxu0 0
    %917 = vmatpush1.bf16.xpose.msra.mxu0 0
    %918 = vmatprep.subr.bf16.mxu0 0
    %919 = vmatpush1.bf16.xpose.msra.mxu0 0
    %920 = vmatprep.subr.bf16.mxu0 0
    %921 = vmatpush1.bf16.xpose.msra.mxu0 0
    %922 = vmatprep.subr.bf16.mxu0 0
    %923 = vmatpush1.bf16.xpose.msra.mxu0 0
    %924 = vmatprep.subr.bf16.mxu0 0
    %925 = vmatpush1.bf16.xpose.msra.mxu0 0
    %926 = vmatprep.subr.bf16.mxu0 0
    %927 = vmatpush1.bf16.xpose.msra.mxu0 0
    %928 = vmatprep.subr.bf16.mxu0 0
    %929 = vmatpush1.bf16.xpose.msra.mxu0 0
    %930 = vmatprep.subr.bf16.mxu0 0
    %931 = vmatpush1.bf16.xpose.msra.mxu0 0
    %932 = vmatprep.subr.bf16.mxu0 0
    %933 = vmatpush1.bf16.xpose.msra.mxu0 0
    %934 = vmatprep.subr.bf16.mxu0 0
    %935 = vmatpush1.bf16.xpose.msra.mxu0 0
    %936 = vmatprep.subr.bf16.mxu0 0
    %937 = vmatpush1.bf16.xpose.msra.mxu0 0
    %938 = vmatprep.mubr.bf16.mxu0 0
    %939 = vmatmul.mubr.bf16.gmra.mrb[0].mxu0 %v901
    %v940 = vpop.f32.mrb[0].mxu0
    %v941 = vadd.f32 %v898, %v940
    %v942 = vpop.f32.mrb[0].mxu0
    %v943 = vpop.f32.mrb[0].mxu0
    %v944 = vpop.f32.mrb[0].mxu0
    %945 = vdwg.mxu0
    %947 = vrot.lane.b32.xlu0 %v307, 64
    %v948 = vpop.permute.xlu0 %947
    %950 = vrot.lane.b32.xlu0 %v786, 121
    %v951 = vpop.permute.xlu0 %950
    %v954 = vsel %vm480, %v413, 0
    %v957 = vsel %vm480, %v948, 0
    %959 = vmatprep.subr.bf16.mxu0 0
    %960 = vmatpush1.bf16.xpose.msra.mxu0 %v957
    %961 = vmatprep.subr.bf16.mxu0 0
    %962 = vmatpush1.bf16.xpose.msra.mxu0 0
    %963 = vmatprep.subr.bf16.mxu0 0
    %964 = vmatpush1.bf16.xpose.msra.mxu0 0
    %965 = vmatprep.subr.bf16.mxu0 0
    %966 = vmatpush1.bf16.xpose.msra.mxu0 0
    %967 = vmatprep.subr.bf16.mxu0 0
    %968 = vmatpush1.bf16.xpose.msra.mxu0 0
    %969 = vmatprep.subr.bf16.mxu0 0
    %970 = vmatpush1.bf16.xpose.msra.mxu0 0
    %971 = vmatprep.subr.bf16.mxu0 0
    %972 = vmatpush1.bf16.xpose.msra.mxu0 0
    %973 = vmatprep.subr.bf16.mxu0 0
    %974 = vmatpush1.bf16.xpose.msra.mxu0 0
    %975 = vmatprep.subr.bf16.mxu0 0
    %976 = vmatpush1.bf16.xpose.msra.mxu0 0
    %977 = vmatprep.subr.bf16.mxu0 0
    %978 = vmatpush1.bf16.xpose.msra.mxu0 0
    %979 = vmatprep.subr.bf16.mxu0 0
    %980 = vmatpush1.bf16.xpose.msra.mxu0 0
    %981 = vmatprep.subr.bf16.mxu0 0
    %982 = vmatpush1.bf16.xpose.msra.mxu0 0
    %983 = vmatprep.subr.bf16.mxu0 0
    %984 = vmatpush1.bf16.xpose.msra.mxu0 0
    %985 = vmatprep.subr.bf16.mxu0 0
    %986 = vmatpush1.bf16.xpose.msra.mxu0 0
    %987 = vmatprep.subr.bf16.mxu0 0
    %988 = vmatpush1.bf16.xpose.msra.mxu0 0
    %989 = vmatprep.subr.bf16.mxu0 0
    %990 = vmatpush1.bf16.xpose.msra.mxu0 0
    %991 = vmatprep.mubr.bf16.mxu0 0
    %992 = vmatmul.mubr.bf16.gmra.mrb[0].mxu0 %v954
    %v993 = vpop.f32.mrb[0].mxu0
    %v994 = vadd.f32 %v951, %v993
    %v995 = vpop.f32.mrb[0].mxu0
    %v996 = vpop.f32.mrb[0].mxu0
    %v997 = vpop.f32.mrb[0].mxu0
    %998 = vdwg.mxu0
    %vm999 = vcmask 64512
    %v1000 = vsel %vm999, %v835, -inf
    %1001 = vmax.xlane.f32.xlu0 %v1000
    %v1002 = vpop.xlane.xlu0 %1001
    %v1003 = vsel %vm999, %v888, -inf
    %1004 = vmax.xlane.f32.xlu0 %v1003
    %v1005 = vpop.xlane.xlu0 %1004
    %v1006 = vsel %vm999, %v941, -inf
    %1007 = vmax.xlane.f32.xlu0 %v1006
    %v1008 = vpop.xlane.xlu0 %1007
    %v1009 = vsel %vm999, %v994, -inf
    %1010 = vmax.xlane.f32.xlu0 %v1009
    %v1011 = vpop.xlane.xlu0 %1010
    %v1012 = vsub.f32 %v835, %v1002
    %v1013 = vsub.f32 %v888, %v1005
    %v1014 = vsub.f32 %v941, %v1008
    %v1015 = vsub.f32 %v994, %v1011
    %v1016 = vmul.f32 %v1012, 1.442695
    %v1017 = vpow.pop %v1016
    %v1018 = vmul.f32 %v1013, 1.442695
    %v1019 = vpow.pop %v1018
    %v1020 = vmul.f32 %v1014, 1.442695
    %v1021 = vpow.pop %v1020
    %v1022 = vmul.f32 %v1015, 1.442695
    %v1023 = vpow.pop %v1022
    %v1024 = vsel %vm999, %v1017, 0.0
    %1025 = vadd.xlane.f32.xlu0 %v1024
    %v1026 = vpop.xlane.xlu0 %1025
    %v1027 = vsel %vm999, %v1019, 0.0
    %1028 = vadd.xlane.f32.xlu0 %v1027
    %v1029 = vpop.xlane.xlu0 %1028
    %v1030 = vsel %vm999, %v1021, 0.0
    %1031 = vadd.xlane.f32.xlu0 %v1030
    %v1032 = vpop.xlane.xlu0 %1031
    %v1033 = vsel %vm999, %v1023, 0.0
    %1034 = vadd.xlane.f32.xlu0 %v1033
    %v1035 = vpop.xlane.xlu0 %1034
    %v1036 = vrcp.pop %v1026
    %v1037 = vrcp.pop %v1029
    %v1038 = vrcp.pop %v1032
    %v1039 = vrcp.pop %v1035
    %v1040 = vmul.f32 %v1017, %v1036
    %v1041 = vmul.f32 %v1019, %v1037
    %v1042 = vmul.f32 %v1021, %v1038
    %v1043 = vmul.f32 %v1023, %v1039
    %v1044 = vpack.c.bf16 %v1040, %v1040
    %v1045 = vpack.c.bf16 %v1041, %v1041
    %v1046 = vpack.c.bf16 %v1042, %v1042
    %v1047 = vpack.c.bf16 %v1043, %v1043
    %v1049 = vsel %vm999, %v1044, 0
    %v1052 = vsel %vm768, %v328, 0
    %1054 = vmatprep.subr.bf16.mxu0 0
    %1055 = vmatpush1.bf16.msra.mxu0 %v1052
    %1056 = vmatprep.subr.bf16.mxu0 0
    %1057 = vmatpush1.bf16.msra.mxu0 0
    %1058 = vmatprep.subr.bf16.mxu0 0
    %1059 = vmatpush1.bf16.msra.mxu0 0
    %1060 = vmatprep.subr.bf16.mxu0 0
    %1061 = vmatpush1.bf16.msra.mxu0 0
    %1062 = vmatprep.subr.bf16.mxu0 0
    %1063 = vmatpush1.bf16.msra.mxu0 0
    %1064 = vmatprep.subr.bf16.mxu0 0
    %1065 = vmatpush1.bf16.msra.mxu0 0
    %1066 = vmatprep.subr.bf16.mxu0 0
    %1067 = vmatpush1.bf16.msra.mxu0 0
    %1068 = vmatprep.subr.bf16.mxu0 0
    %1069 = vmatpush1.bf16.msra.mxu0 0
    %1070 = vmatprep.subr.bf16.mxu0 0
    %1071 = vmatpush1.bf16.msra.mxu0 0
    %1072 = vmatprep.subr.bf16.mxu0 0
    %1073 = vmatpush1.bf16.msra.mxu0 0
    %1074 = vmatprep.subr.bf16.mxu0 0
    %1075 = vmatpush1.bf16.msra.mxu0 0
    %1076 = vmatprep.subr.bf16.mxu0 0
    %1077 = vmatpush1.bf16.msra.mxu0 0
    %1078 = vmatprep.subr.bf16.mxu0 0
    %1079 = vmatpush1.bf16.msra.mxu0 0
    %1080 = vmatprep.subr.bf16.mxu0 0
    %1081 = vmatpush1.bf16.msra.mxu0 0
    %1082 = vmatprep.subr.bf16.mxu0 0
    %1083 = vmatpush1.bf16.msra.mxu0 0
    %1084 = vmatprep.subr.bf16.mxu0 0
    %1085 = vmatpush1.bf16.msra.mxu0 0
    %1086 = vmatprep.mubr.bf16.mxu0 0
    %1087 = vmatmul.mubr.bf16.gmra.mrb[0].mxu0 %v1049
    %v1088 = vpop.f32.mrb[0].mxu0
    %v1089 = vadd.f32 0.0, %v1088
    %v1090 = vpop.f32.mrb[0].mxu0
    %v1091 = vpop.f32.mrb[0].mxu0
    %v1092 = vpop.f32.mrb[0].mxu0
    %1093 = vdwg.mxu0
    %v1095 = vsel %vm999, %v1045, 0
    %v1098 = vsel %vm768, %v329, 0
    %1100 = vmatprep.subr.bf16.mxu0 0
    %1101 = vmatpush1.bf16.msra.mxu0 %v1098
    %1102 = vmatprep.subr.bf16.mxu0 0
    %1103 = vmatpush1.bf16.msra.mxu0 0
    %1104 = vmatprep.subr.bf16.mxu0 0
    %1105 = vmatpush1.bf16.msra.mxu0 0
    %1106 = vmatprep.subr.bf16.mxu0 0
    %1107 = vmatpush1.bf16.msra.mxu0 0
    %1108 = vmatprep.subr.bf16.mxu0 0
    %1109 = vmatpush1.bf16.msra.mxu0 0
    %1110 = vmatprep.subr.bf16.mxu0 0
    %1111 = vmatpush1.bf16.msra.mxu0 0
    %1112 = vmatprep.subr.bf16.mxu0 0
    %1113 = vmatpush1.bf16.msra.mxu0 0
    %1114 = vmatprep.subr.bf16.mxu0 0
    %1115 = vmatpush1.bf16.msra.mxu0 0
    %1116 = vmatprep.subr.bf16.mxu0 0
    %1117 = vmatpush1.bf16.msra.mxu0 0
    %1118 = vmatprep.subr.bf16.mxu0 0
    %1119 = vmatpush1.bf16.msra.mxu0 0
    %1120 = vmatprep.subr.bf16.mxu0 0
    %1121 = vmatpush1.bf16.msra.mxu0 0
    %1122 = vmatprep.subr.bf16.mxu0 0
    %1123 = vmatpush1.bf16.msra.mxu0 0
    %1124 = vmatprep.subr.bf16.mxu0 0
    %1125 = vmatpush1.bf16.msra.mxu0 0
    %1126 = vmatprep.subr.bf16.mxu0 0
    %1127 = vmatpush1.bf16.msra.mxu0 0
    %1128 = vmatprep.subr.bf16.mxu0 0
    %1129 = vmatpush1.bf16.msra.mxu0 0
    %1130 = vmatprep.subr.bf16.mxu0 0
    %1131 = vmatpush1.bf16.msra.mxu0 0
    %1132 = vmatprep.mubr.bf16.mxu0 0
    %1133 = vmatmul.mubr.bf16.gmra.mrb[0].mxu0 %v1095
    %v1134 = vpop.f32.mrb[0].mxu0
    %v1135 = vadd.f32 0.0, %v1134
    %v1136 = vpop.f32.mrb[0].mxu0
    %v1137 = vpop.f32.mrb[0].mxu0
    %v1138 = vpop.f32.mrb[0].mxu0
    %1139 = vdwg.mxu0
    %v1141 = vsel %vm999, %v1046, 0
    %v1144 = vsel %vm768, %v330, 0
    %1146 = vmatprep.subr.bf16.mxu0 0
    %1147 = vmatpush1.bf16.msra.mxu0 %v1144
    %1148 = vmatprep.subr.bf16.mxu0 0
    %1149 = vmatpush1.bf16.msra.mxu0 0
    %1150 = vmatprep.subr.bf16.mxu0 0
    %1151 = vmatpush1.bf16.msra.mxu0 0
    %1152 = vmatprep.subr.bf16.mxu0 0
    %1153 = vmatpush1.bf16.msra.mxu0 0
    %1154 = vmatprep.subr.bf16.mxu0 0
    %1155 = vmatpush1.bf16.msra.mxu0 0
    %1156 = vmatprep.subr.bf16.mxu0 0
    %1157 = vmatpush1.bf16.msra.mxu0 0
    %1158 = vmatprep.subr.bf16.mxu0 0
    %1159 = vmatpush1.bf16.msra.mxu0 0
    %1160 = vmatprep.subr.bf16.mxu0 0
    %1161 = vmatpush1.bf16.msra.mxu0 0
    %1162 = vmatprep.subr.bf16.mxu0 0
    %1163 = vmatpush1.bf16.msra.mxu0 0
    %1164 = vmatprep.subr.bf16.mxu0 0
    %1165 = vmatpush1.bf16.msra.mxu0 0
    %1166 = vmatprep.subr.bf16.mxu0 0
    %1167 = vmatpush1.bf16.msra.mxu0 0
    %1168 = vmatprep.subr.bf16.mxu0 0
    %1169 = vmatpush1.bf16.msra.mxu0 0
    %1170 = vmatprep.subr.bf16.mxu0 0
    %1171 = vmatpush1.bf16.msra.mxu0 0
    %1172 = vmatprep.subr.bf16.mxu0 0
    %1173 = vmatpush1.bf16.msra.mxu0 0
    %1174 = vmatprep.subr.bf16.mxu0 0
    %1175 = vmatpush1.bf16.msra.mxu0 0
    %1176 = vmatprep.subr.bf16.mxu0 0
    %1177 = vmatpush1.bf16.msra.mxu0 0
    %1178 = vmatprep.mubr.bf16.mxu0 0
    %1179 = vmatmul.mubr.bf16.gmra.mrb[0].mxu0 %v1141
    %v1180 = vpop.f32.mrb[0].mxu0
    %v1181 = vadd.f32 0.0, %v1180
    %v1182 = vpop.f32.mrb[0].mxu0
    %v1183 = vpop.f32.mrb[0].mxu0
    %v1184 = vpop.f32.mrb[0].mxu0
    %1185 = vdwg.mxu0
    %v1187 = vsel %vm999, %v1047, 0
    %v1190 = vsel %vm768, %v331, 0
    %1192 = vmatprep.subr.bf16.mxu0 0
    %1193 = vmatpush1.bf16.msra.mxu0 %v1190
    %1194 = vmatprep.subr.bf16.mxu0 0
    %1195 = vmatpush1.bf16.msra.mxu0 0
    %1196 = vmatprep.subr.bf16.mxu0 0
    %1197 = vmatpush1.bf16.msra.mxu0 0
    %1198 = vmatprep.subr.bf16.mxu0 0
    %1199 = vmatpush1.bf16.msra.mxu0 0
    %1200 = vmatprep.subr.bf16.mxu0 0
    %1201 = vmatpush1.bf16.msra.mxu0 0
    %1202 = vmatprep.subr.bf16.mxu0 0
    %1203 = vmatpush1.bf16.msra.mxu0 0
    %1204 = vmatprep.subr.bf16.mxu0 0
    %1205 = vmatpush1.bf16.msra.mxu0 0
    %1206 = vmatprep.subr.bf16.mxu0 0
    %1207 = vmatpush1.bf16.msra.mxu0 0
    %1208 = vmatprep.subr.bf16.mxu0 0
    %1209 = vmatpush1.bf16.msra.mxu0 0
    %1210 = vmatprep.subr.bf16.mxu0 0
    %1211 = vmatpush1.bf16.msra.mxu0 0
    %1212 = vmatprep.subr.bf16.mxu0 0
    %1213 = vmatpush1.bf16.msra.mxu0 0
    %1214 = vmatprep.subr.bf16.mxu0 0
    %1215 = vmatpush1.bf16.msra.mxu0 0
    %1216 = vmatprep.subr.bf16.mxu0 0
    %1217 = vmatpush1.bf16.msra.mxu0 0
    %1218 = vmatprep.subr.bf16.mxu0 0
    %1219 = vmatpush1.bf16.msra.mxu0 0
    %1220 = vmatprep.subr.bf16.mxu0 0
    %1221 = vmatpush1.bf16.msra.mxu0 0
    %1222 = vmatprep.subr.bf16.mxu0 0
    %1223 = vmatpush1.bf16.msra.mxu0 0
    %1224 = vmatprep.mubr.bf16.mxu0 0
    %1225 = vmatmul.mubr.bf16.gmra.mrb[0].mxu0 %v1187
    %v1226 = vpop.f32.mrb[0].mxu0
    %v1227 = vadd.f32 0.0, %v1226
    %v1228 = vpop.f32.mrb[0].mxu0
    %v1229 = vpop.f32.mrb[0].mxu0
    %v1230 = vpop.f32.mrb[0].mxu0
    %1231 = vdwg.mxu0
    %v1232 = vpack.c.bf16 %v1089, %v1089
    %v1233 = vpack.c.bf16 %v1135, %v1135
    %v1234 = vpack.c.bf16 %v1181, %v1181
    %v1235 = vpack.c.bf16 %v1227, %v1227
    %v1238 = vunpack.c.l.b16 %v472
    %v1239 = vunpack.c.l.b16 %v473
    %v1240 = vpack.c.b16 %v1239, %v1238
    %v1242 = vsel %vm215, %v1232, 0
    %v1245 = vsel %vm219, %v1240, 0
    %1247 = vmatprep.subr.bf16.mxu0 0
    %1248 = vmatpush1.bf16.msra.mxu0 %v1245
    %1249 = vmatprep.subr.bf16.mxu0 0
    %1250 = vmatpush1.bf16.msra.mxu0 0
    %1251 = vmatprep.subr.bf16.mxu0 0
    %1252 = vmatpush1.bf16.msra.mxu0 0
    %1253 = vmatprep.subr.bf16.mxu0 0
    %1254 = vmatpush1.bf16.msra.mxu0 0
    %1255 = vmatprep.subr.bf16.mxu0 0
    %1256 = vmatpush1.bf16.msra.mxu0 0
    %1257 = vmatprep.subr.bf16.mxu0 0
    %1258 = vmatpush1.bf16.msra.mxu0 0
    %1259 = vmatprep.subr.bf16.mxu0 0
    %1260 = vmatpush1.bf16.msra.mxu0 0
    %1261 = vmatprep.subr.bf16.mxu0 0
    %1262 = vmatpush1.bf16.msra.mxu0 0
    %1263 = vmatprep.subr.bf16.mxu0 0
    %1264 = vmatpush1.bf16.msra.mxu0 0
    %1265 = vmatprep.subr.bf16.mxu0 0
    %1266 = vmatpush1.bf16.msra.mxu0 0
    %1267 = vmatprep.subr.bf16.mxu0 0
    %1268 = vmatpush1.bf16.msra.mxu0 0
    %1269 = vmatprep.subr.bf16.mxu0 0
    %1270 = vmatpush1.bf16.msra.mxu0 0
    %1271 = vmatprep.subr.bf16.mxu0 0
    %1272 = vmatpush1.bf16.msra.mxu0 0
    %1273 = vmatprep.subr.bf16.mxu0 0
    %1274 = vmatpush1.bf16.msra.mxu0 0
    %1275 = vmatprep.subr.bf16.mxu0 0
    %1276 = vmatpush1.bf16.msra.mxu0 0
    %1277 = vmatprep.subr.bf16.mxu0 0
    %1278 = vmatpush1.bf16.msra.mxu0 0
    %1279 = vmatprep.mubr.bf16.mxu0 0
    %1280 = vmatmul.mubr.bf16.gmra.mrb[0].mxu0 %v1242
    %v1281 = vpop.f32.mrb[0].mxu0
    %v1282 = vadd.f32 0.0, %v1281
    %v1283 = vpop.f32.mrb[0].mxu0
    %v1284 = vpop.f32.mrb[0].mxu0
    %v1285 = vpop.f32.mrb[0].mxu0
    %1286 = vdwg.mxu0
    %v1289 = vunpack.c.l.b16 %v474
    %v1290 = vunpack.c.l.b16 %v475
    %v1291 = vpack.c.b16 %v1290, %v1289
    %v1293 = vsel %vm215, %v1233, 0
    %v1296 = vsel %vm219, %v1291, 0
    %1298 = vmatprep.subr.bf16.mxu0 0
    %1299 = vmatpush1.bf16.msra.mxu0 %v1296
    %1300 = vmatprep.subr.bf16.mxu0 0
    %1301 = vmatpush1.bf16.msra.mxu0 0
    %1302 = vmatprep.subr.bf16.mxu0 0
    %1303 = vmatpush1.bf16.msra.mxu0 0
    %1304 = vmatprep.subr.bf16.mxu0 0
    %1305 = vmatpush1.bf16.msra.mxu0 0
    %1306 = vmatprep.subr.bf16.mxu0 0
    %1307 = vmatpush1.bf16.msra.mxu0 0
    %1308 = vmatprep.subr.bf16.mxu0 0
    %1309 = vmatpush1.bf16.msra.mxu0 0
    %1310 = vmatprep.subr.bf16.mxu0 0
    %1311 = vmatpush1.bf16.msra.mxu0 0
    %1312 = vmatprep.subr.bf16.mxu0 0
    %1313 = vmatpush1.bf16.msra.mxu0 0
    %1314 = vmatprep.subr.bf16.mxu0 0
    %1315 = vmatpush1.bf16.msra.mxu0 0
    %1316 = vmatprep.subr.bf16.mxu0 0
    %1317 = vmatpush1.bf16.msra.mxu0 0
    %1318 = vmatprep.subr.bf16.mxu0 0
    %1319 = vmatpush1.bf16.msra.mxu0 0
    %1320 = vmatprep.subr.bf16.mxu0 0
    %1321 = vmatpush1.bf16.msra.mxu0 0
    %1322 = vmatprep.subr.bf16.mxu0 0
    %1323 = vmatpush1.bf16.msra.mxu0 0
    %1324 = vmatprep.subr.bf16.mxu0 0
    %1325 = vmatpush1.bf16.msra.mxu0 0
    %1326 = vmatprep.subr.bf16.mxu0 0
    %1327 = vmatpush1.bf16.msra.mxu0 0
    %1328 = vmatprep.subr.bf16.mxu0 0
    %1329 = vmatpush1.bf16.msra.mxu0 0
    %1330 = vmatprep.mubr.bf16.mxu0 0
    %1331 = vmatmul.mubr.bf16.gmra.mrb[0].mxu0 %v1293
    %v1332 = vpop.f32.mrb[0].mxu0
    %v1333 = vadd.f32 0.0, %v1332
    %v1334 = vpop.f32.mrb[0].mxu0
    %v1335 = vpop.f32.mrb[0].mxu0
    %v1336 = vpop.f32.mrb[0].mxu0
    %1337 = vdwg.mxu0
    %v1340 = vunpack.c.l.b16 %v476
    %v1341 = vunpack.c.l.b16 %v477
    %v1342 = vpack.c.b16 %v1341, %v1340
    %v1344 = vsel %vm215, %v1234, 0
    %v1347 = vsel %vm219, %v1342, 0
    %1349 = vmatprep.subr.bf16.mxu0 0
    %1350 = vmatpush1.bf16.msra.mxu0 %v1347
    %1351 = vmatprep.subr.bf16.mxu0 0
    %1352 = vmatpush1.bf16.msra.mxu0 0
    %1353 = vmatprep.subr.bf16.mxu0 0
    %1354 = vmatpush1.bf16.msra.mxu0 0
    %1355 = vmatprep.subr.bf16.mxu0 0
    %1356 = vmatpush1.bf16.msra.mxu0 0
    %1357 = vmatprep.subr.bf16.mxu0 0
    %1358 = vmatpush1.bf16.msra.mxu0 0
    %1359 = vmatprep.subr.bf16.mxu0 0
    %1360 = vmatpush1.bf16.msra.mxu0 0
    %1361 = vmatprep.subr.bf16.mxu0 0
    %1362 = vmatpush1.bf16.msra.mxu0 0
    %1363 = vmatprep.subr.bf16.mxu0 0
    %1364 = vmatpush1.bf16.msra.mxu0 0
    %1365 = vmatprep.subr.bf16.mxu0 0
    %1366 = vmatpush1.bf16.msra.mxu0 0
    %1367 = vmatprep.subr.bf16.mxu0 0
    %1368 = vmatpush1.bf16.msra.mxu0 0
    %1369 = vmatprep.subr.bf16.mxu0 0
    %1370 = vmatpush1.bf16.msra.mxu0 0
    %1371 = vmatprep.subr.bf16.mxu0 0
    %1372 = vmatpush1.bf16.msra.mxu0 0
    %1373 = vmatprep.subr.bf16.mxu0 0
    %1374 = vmatpush1.bf16.msra.mxu0 0
    %1375 = vmatprep.subr.bf16.mxu0 0
    %1376 = vmatpush1.bf16.msra.mxu0 0
    %1377 = vmatprep.subr.bf16.mxu0 0
    %1378 = vmatpush1.bf16.msra.mxu0 0
    %1379 = vmatprep.subr.bf16.mxu0 0
    %1380 = vmatpush1.bf16.msra.mxu0 0
    %1381 = vmatprep.mubr.bf16.mxu0 0
    %1382 = vmatmul.mubr.bf16.gmra.mrb[0].mxu0 %v1344
    %v1383 = vpop.f32.mrb[0].mxu0
    %v1384 = vadd.f32 0.0, %v1383
    %v1385 = vpop.f32.mrb[0].mxu0
    %v1386 = vpop.f32.mrb[0].mxu0
    %v1387 = vpop.f32.mrb[0].mxu0
    %1388 = vdwg.mxu0
    %v1391 = vunpack.c.l.b16 %v478
    %v1392 = vunpack.c.l.b16 %v479
    %v1393 = vpack.c.b16 %v1392, %v1391
    %v1395 = vsel %vm215, %v1235, 0
    %v1398 = vsel %vm219, %v1393, 0
    %1400 = vmatprep.subr.bf16.mxu0 0
    %1401 = vmatpush1.bf16.msra.mxu0 %v1398
    %1402 = vmatprep.subr.bf16.mxu0 0
    %1403 = vmatpush1.bf16.msra.mxu0 0
    %1404 = vmatprep.subr.bf16.mxu0 0
    %1405 = vmatpush1.bf16.msra.mxu0 0
    %1406 = vmatprep.subr.bf16.mxu0 0
    %1407 = vmatpush1.bf16.msra.mxu0 0
    %1408 = vmatprep.subr.bf16.mxu0 0
    %1409 = vmatpush1.bf16.msra.mxu0 0
    %1410 = vmatprep.subr.bf16.mxu0 0
    %1411 = vmatpush1.bf16.msra.mxu0 0
    %1412 = vmatprep.subr.bf16.mxu0 0
    %1413 = vmatpush1.bf16.msra.mxu0 0
    %1414 = vmatprep.subr.bf16.mxu0 0
    %1415 = vmatpush1.bf16.msra.mxu0 0
    %1416 = vmatprep.subr.bf16.mxu0 0
    %1417 = vmatpush1.bf16.msra.mxu0 0
    %1418 = vmatprep.subr.bf16.mxu0 0
    %1419 = vmatpush1.bf16.msra.mxu0 0
    %1420 = vmatprep.subr.bf16.mxu0 0
    %1421 = vmatpush1.bf16.msra.mxu0 0
    %1422 = vmatprep.subr.bf16.mxu0 0
    %1423 = vmatpush1.bf16.msra.mxu0 0
    %1424 = vmatprep.subr.bf16.mxu0 0
    %1425 = vmatpush1.bf16.msra.mxu0 0
    %1426 = vmatprep.subr.bf16.mxu0 0
    %1427 = vmatpush1.bf16.msra.mxu0 0
    %1428 = vmatprep.subr.bf16.mxu0 0
    %1429 = vmatpush1.bf16.msra.mxu0 0
    %1430 = vmatprep.subr.bf16.mxu0 0
    %1431 = vmatpush1.bf16.msra.mxu0 0
    %1432 = vmatprep.mubr.bf16.mxu0 0
    %1433 = vmatmul.mubr.bf16.gmra.mrb[0].mxu0 %v1395
    %v1434 = vpop.f32.mrb[0].mxu0
    %v1435 = vadd.f32 0.0, %v1434
    %v1436 = vpop.f32.mrb[0].mxu0
    %v1437 = vpop.f32.mrb[0].mxu0
    %v1438 = vpop.f32.mrb[0].mxu0
    %1439 = vdwg.mxu0
    %v1440 = vsel %vm72, %v1282, 0.0
    %v1441 = vsel %vm72, %v1333, 0.0
    %v1442 = vadd.f32 %v1440, %v1441
    %v1443 = vsel %vm72, %v1384, 0.0
    %v1444 = vadd.f32 %v1442, %v1443
    %v1445 = vsel %vm72, %v1435, 0.0
    %v1446 = vadd.f32 %v1444, %v1445
    %v1448 = vrot.slane %v468, 4
    %v1450 = vsel %vm480, %v1448, 0
    %1452 = vmatprep.subr.bf16.mxu0 0
    %1453 = vmatpush1.bf16.xpose.msra.mxu0 %v485
    %1454 = vmatprep.subr.bf16.mxu0 0
    %1455 = vmatpush1.bf16.xpose.msra.mxu0 0
    %1456 = vmatprep.subr.bf16.mxu0 0
    %1457 = vmatpush1.bf16.xpose.msra.mxu0 0
    %1458 = vmatprep.subr.bf16.mxu0 0
    %1459 = vmatpush1.bf16.xpose.msra.mxu0 0
    %1460 = vmatprep.subr.bf16.mxu0 0
    %1461 = vmatpush1.bf16.xpose.msra.mxu0 0
    %1462 = vmatprep.subr.bf16.mxu0 0
    %1463 = vmatpush1.bf16.xpose.msra.mxu0 0
    %1464 = vmatprep.subr.bf16.mxu0 0
    %1465 = vmatpush1.bf16.xpose.msra.mxu0 0
    %1466 = vmatprep.subr.bf16.mxu0 0
    %1467 = vmatpush1.bf16.xpose.msra.mxu0 0
    %1468 = vmatprep.subr.bf16.mxu0 0
    %1469 = vmatpush1.bf16.xpose.msra.mxu0 0
    %1470 = vmatprep.subr.bf16.mxu0 0
    %1471 = vmatpush1.bf16.xpose.msra.mxu0 0
    %1472 = vmatprep.subr.bf16.mxu0 0
    %1473 = vmatpush1.bf16.xpose.msra.mxu0 0
    %1474 = vmatprep.subr.bf16.mxu0 0
    %1475 = vmatpush1.bf16.xpose.msra.mxu0 0
    %1476 = vmatprep.subr.bf16.mxu0 0
    %1477 = vmatpush1.bf16.xpose.msra.mxu0 0
    %1478 = vmatprep.subr.bf16.mxu0 0
    %1479 = vmatpush1.bf16.xpose.msra.mxu0 0
    %1480 = vmatprep.subr.bf16.mxu0 0
    %1481 = vmatpush1.bf16.xpose.msra.mxu0 0
    %1482 = vmatprep.subr.bf16.mxu0 0
    %1483 = vmatpush1.bf16.xpose.msra.mxu0 0
    %1484 = vmatprep.mubr.bf16.mxu0 0
    %1485 = vmatmul.mubr.bf16.gmra.mrb[0].mxu0 %v1450
    %v1486 = vpop.f32.mrb[0].mxu0
    %v1487 = vadd.f32 0.0, %v1486
    %v1488 = vpop.f32.mrb[0].mxu0
    %v1489 = vpop.f32.mrb[0].mxu0
    %v1490 = vpop.f32.mrb[0].mxu0
    %1491 = vdwg.mxu0
    %v1493 = vrot.slane %v469, 4
    %v1495 = vsel %vm480, %v1493, 0
    %1497 = vmatprep.subr.bf16.mxu0 0
    %1498 = vmatpush1.bf16.xpose.msra.mxu0 %v531
    %1499 = vmatprep.subr.bf16.mxu0 0
    %1500 = vmatpush1.bf16.xpose.msra.mxu0 0
    %1501 = vmatprep.subr.bf16.mxu0 0
    %1502 = vmatpush1.bf16.xpose.msra.mxu0 0
    %1503 = vmatprep.subr.bf16.mxu0 0
    %1504 = vmatpush1.bf16.xpose.msra.mxu0 0
    %1505 = vmatprep.subr.bf16.mxu0 0
    %1506 = vmatpush1.bf16.xpose.msra.mxu0 0
    %1507 = vmatprep.subr.bf16.mxu0 0
    %1508 = vmatpush1.bf16.xpose.msra.mxu0 0
    %1509 = vmatprep.subr.bf16.mxu0 0
    %1510 = vmatpush1.bf16.xpose.msra.mxu0 0
    %1511 = vmatprep.subr.bf16.mxu0 0
    %1512 = vmatpush1.bf16.xpose.msra.mxu0 0
    %1513 = vmatprep.subr.bf16.mxu0 0
    %1514 = vmatpush1.bf16.xpose.msra.mxu0 0
    %1515 = vmatprep.subr.bf16.mxu0 0
    %1516 = vmatpush1.bf16.xpose.msra.mxu0 0
    %1517 = vmatprep.subr.bf16.mxu0 0
    %1518 = vmatpush1.bf16.xpose.msra.mxu0 0
    %1519 = vmatprep.subr.bf16.mxu0 0
    %1520 = vmatpush1.bf16.xpose.msra.mxu0 0
    %1521 = vmatprep.subr.bf16.mxu0 0
    %1522 = vmatpush1.bf16.xpose.msra.mxu0 0
    %1523 = vmatprep.subr.bf16.mxu0 0
    %1524 = vmatpush1.bf16.xpose.msra.mxu0 0
    %1525 = vmatprep.subr.bf16.mxu0 0
    %1526 = vmatpush1.bf16.xpose.msra.mxu0 0
    %1527 = vmatprep.subr.bf16.mxu0 0
    %1528 = vmatpush1.bf16.xpose.msra.mxu0 0
    %1529 = vmatprep.mubr.bf16.mxu0 0
    %1530 = vmatmul.mubr.bf16.gmra.mrb[0].mxu0 %v1495
    %v1531 = vpop.f32.mrb[0].mxu0
    %v1532 = vadd.f32 0.0, %v1531
    %v1533 = vpop.f32.mrb[0].mxu0
    %v1534 = vpop.f32.mrb[0].mxu0
    %v1535 = vpop.f32.mrb[0].mxu0
    %1536 = vdwg.mxu0
    %v1538 = vrot.slane %v470, 4
    %v1540 = vsel %vm480, %v1538, 0
    %1542 = vmatprep.subr.bf16.mxu0 0
    %1543 = vmatpush1.bf16.xpose.msra.mxu0 %v577
    %1544 = vmatprep.subr.bf16.mxu0 0
    %1545 = vmatpush1.bf16.xpose.msra.mxu0 0
    %1546 = vmatprep.subr.bf16.mxu0 0
    %1547 = vmatpush1.bf16.xpose.msra.mxu0 0
    %1548 = vmatprep.subr.bf16.mxu0 0
    %1549 = vmatpush1.bf16.xpose.msra.mxu0 0
    %1550 = vmatprep.subr.bf16.mxu0 0
    %1551 = vmatpush1.bf16.xpose.msra.mxu0 0
    %1552 = vmatprep.subr.bf16.mxu0 0
    %1553 = vmatpush1.bf16.xpose.msra.mxu0 0
    %1554 = vmatprep.subr.bf16.mxu0 0
    %1555 = vmatpush1.bf16.xpose.msra.mxu0 0
    %1556 = vmatprep.subr.bf16.mxu0 0
    %1557 = vmatpush1.bf16.xpose.msra.mxu0 0
    %1558 = vmatprep.subr.bf16.mxu0 0
    %1559 = vmatpush1.bf16.xpose.msra.mxu0 0
    %1560 = vmatprep.subr.bf16.mxu0 0
    %1561 = vmatpush1.bf16.xpose.msra.mxu0 0
    %1562 = vmatprep.subr.bf16.mxu0 0
    %1563 = vmatpush1.bf16.xpose.msra.mxu0 0
    %1564 = vmatprep.subr.bf16.mxu0 0
    %1565 = vmatpush1.bf16.xpose.msra.mxu0 0
    %1566 = vmatprep.subr.bf16.mxu0 0
    %1567 = vmatpush1.bf16.xpose.msra.mxu0 0
    %1568 = vmatprep.subr.bf16.mxu0 0
    %1569 = vmatpush1.bf16.xpose.msra.mxu0 0
    %1570 = vmatprep.subr.bf16.mxu0 0
    %1571 = vmatpush1.bf16.xpose.msra.mxu0 0
    %1572 = vmatprep.subr.bf16.mxu0 0
    %1573 = vmatpush1.bf16.xpose.msra.mxu0 0
    %1574 = vmatprep.mubr.bf16.mxu0 0
    %1575 = vmatmul.mubr.bf16.gmra.mrb[0].mxu0 %v1540
    %v1576 = vpop.f32.mrb[0].mxu0
    %v1577 = vadd.f32 0.0, %v1576
    %v1578 = vpop.f32.mrb[0].mxu0
    %v1579 = vpop.f32.mrb[0].mxu0
    %v1580 = vpop.f32.mrb[0].mxu0
    %1581 = vdwg.mxu0
    %v1583 = vrot.slane %v471, 4
    %v1585 = vsel %vm480, %v1583, 0
    %1587 = vmatprep.subr.bf16.mxu0 0
    %1588 = vmatpush1.bf16.xpose.msra.mxu0 %v623
    %1589 = vmatprep.subr.bf16.mxu0 0
    %1590 = vmatpush1.bf16.xpose.msra.mxu0 0
    %1591 = vmatprep.subr.bf16.mxu0 0
    %1592 = vmatpush1.bf16.xpose.msra.mxu0 0
    %1593 = vmatprep.subr.bf16.mxu0 0
    %1594 = vmatpush1.bf16.xpose.msra.mxu0 0
    %1595 = vmatprep.subr.bf16.mxu0 0
    %1596 = vmatpush1.bf16.xpose.msra.mxu0 0
    %1597 = vmatprep.subr.bf16.mxu0 0
    %1598 = vmatpush1.bf16.xpose.msra.mxu0 0
    %1599 = vmatprep.subr.bf16.mxu0 0
    %1600 = vmatpush1.bf16.xpose.msra.mxu0 0
    %1601 = vmatprep.subr.bf16.mxu0 0
    %1602 = vmatpush1.bf16.xpose.msra.mxu0 0
    %1603 = vmatprep.subr.bf16.mxu0 0
    %1604 = vmatpush1.bf16.xpose.msra.mxu0 0
    %1605 = vmatprep.subr.bf16.mxu0 0
    %1606 = vmatpush1.bf16.xpose.msra.mxu0 0
    %1607 = vmatprep.subr.bf16.mxu0 0
    %1608 = vmatpush1.bf16.xpose.msra.mxu0 0
    %1609 = vmatprep.subr.bf16.mxu0 0
    %1610 = vmatpush1.bf16.xpose.msra.mxu0 0
    %1611 = vmatprep.subr.bf16.mxu0 0
    %1612 = vmatpush1.bf16.xpose.msra.mxu0 0
    %1613 = vmatprep.subr.bf16.mxu0 0
    %1614 = vmatpush1.bf16.xpose.msra.mxu0 0
    %1615 = vmatprep.subr.bf16.mxu0 0
    %1616 = vmatpush1.bf16.xpose.msra.mxu0 0
    %1617 = vmatprep.subr.bf16.mxu0 0
    %1618 = vmatpush1.bf16.xpose.msra.mxu0 0
    %1619 = vmatprep.mubr.bf16.mxu0 0
    %1620 = vmatmul.mubr.bf16.gmra.mrb[0].mxu0 %v1585
    %v1621 = vpop.f32.mrb[0].mxu0
    %v1622 = vadd.f32 0.0, %v1621
    %v1623 = vpop.f32.mrb[0].mxu0
    %v1624 = vpop.f32.mrb[0].mxu0
    %v1625 = vpop.f32.mrb[0].mxu0
    %1626 = vdwg.mxu0
    %1631 = vrot.lane.b32.xlu0 %v1487, 1
    %v1632 = vpop.permute.xlu0 %1631
    %1633 = vrot.lane.b32.xlu0 %v1532, 1
    %v1634 = vpop.permute.xlu0 %1633
    %1635 = vrot.lane.b32.xlu0 %v1577, 1
    %v1636 = vpop.permute.xlu0 %1635
    %1637 = vrot.lane.b32.xlu0 %v1622, 1
    %v1638 = vpop.permute.xlu0 %1637
    %1643 = vrot.lane.b32.xlu0 %v1487, 2
    %v1644 = vpop.permute.xlu0 %1643
    %1645 = vrot.lane.b32.xlu0 %v1532, 2
    %v1646 = vpop.permute.xlu0 %1645
    %1647 = vrot.lane.b32.xlu0 %v1577, 2
    %v1648 = vpop.permute.xlu0 %1647
    %1649 = vrot.lane.b32.xlu0 %v1622, 2
    %v1650 = vpop.permute.xlu0 %1649
    %1655 = vrot.lane.b32.xlu0 %v1487, 3
    %v1656 = vpop.permute.xlu0 %1655
    %1657 = vrot.lane.b32.xlu0 %v1532, 3
    %v1658 = vpop.permute.xlu0 %1657
    %1659 = vrot.lane.b32.xlu0 %v1577, 3
    %v1660 = vpop.permute.xlu0 %1659
    %1661 = vrot.lane.b32.xlu0 %v1622, 3
    %v1662 = vpop.permute.xlu0 %1661
    %1667 = vrot.lane.b32.xlu0 %v1487, 4
    %v1668 = vpop.permute.xlu0 %1667
    %1669 = vrot.lane.b32.xlu0 %v1532, 4
    %v1670 = vpop.permute.xlu0 %1669
    %1671 = vrot.lane.b32.xlu0 %v1577, 4
    %v1672 = vpop.permute.xlu0 %1671
    %1673 = vrot.lane.b32.xlu0 %v1622, 4
    %v1674 = vpop.permute.xlu0 %1673
    %1679 = vrot.lane.b32.xlu0 %v1487, 5
    %v1680 = vpop.permute.xlu0 %1679
    %1681 = vrot.lane.b32.xlu0 %v1532, 5
    %v1682 = vpop.permute.xlu0 %1681
    %1683 = vrot.lane.b32.xlu0 %v1577, 5
    %v1684 = vpop.permute.xlu0 %1683
    %1685 = vrot.lane.b32.xlu0 %v1622, 5
    %v1686 = vpop.permute.xlu0 %1685
    %1691 = vrot.lane.b32.xlu0 %v1487, 6
    %v1692 = vpop.permute.xlu0 %1691
    %1693 = vrot.lane.b32.xlu0 %v1532, 6
    %v1694 = vpop.permute.xlu0 %1693
    %1695 = vrot.lane.b32.xlu0 %v1577, 6
    %v1696 = vpop.permute.xlu0 %1695
    %1697 = vrot.lane.b32.xlu0 %v1622, 6
    %v1698 = vpop.permute.xlu0 %1697
    %1703 = vrot.lane.b32.xlu0 %v1487, 7
    %v1704 = vpop.permute.xlu0 %1703
    %1705 = vrot.lane.b32.xlu0 %v1532, 7
    %v1706 = vpop.permute.xlu0 %1705
    %1707 = vrot.lane.b32.xlu0 %v1577, 7
    %v1708 = vpop.permute.xlu0 %1707
    %1709 = vrot.lane.b32.xlu0 %v1622, 7
    %v1710 = vpop.permute.xlu0 %1709
    %v1715 = vsel %vm753, %v1487, %v1632
    %v1716 = vsel %vm753, %v1532, %v1634
    %v1717 = vsel %vm753, %v1577, %v1636
    %v1718 = vsel %vm753, %v1622, %v1638
    %v1719 = vsel %vm758, %v1715, %v1644
    %v1720 = vsel %vm758, %v1716, %v1646
    %v1721 = vsel %vm758, %v1717, %v1648
    %v1722 = vsel %vm758, %v1718, %v1650
    %v1723 = vsel %vm763, %v1719, %v1656
    %v1724 = vsel %vm763, %v1720, %v1658
    %v1725 = vsel %vm763, %v1721, %v1660
    %v1726 = vsel %vm763, %v1722, %v1662
    %v1727 = vsel %vm768, %v1723, %v1668
    %v1728 = vsel %vm768, %v1724, %v1670
    %v1729 = vsel %vm768, %v1725, %v1672
    %v1730 = vsel %vm768, %v1726, %v1674
    %v1731 = vsel %vm773, %v1727, %v1680
    %v1732 = vsel %vm773, %v1728, %v1682
    %v1733 = vsel %vm773, %v1729, %v1684
    %v1734 = vsel %vm773, %v1730, %v1686
    %v1735 = vsel %vm219, %v1731, %v1692
    %v1736 = vsel %vm219, %v1732, %v1694
    %v1737 = vsel %vm219, %v1733, %v1696
    %v1738 = vsel %vm219, %v1734, %v1698
    %v1739 = vsel %vm782, %v1735, %v1704
    %v1740 = vsel %vm782, %v1736, %v1706
    %v1741 = vsel %vm782, %v1737, %v1708
    %v1742 = vsel %vm782, %v1738, %v1710
    %v1744 = vrot.slane %v410, 4
    %v1745 = vrot.slane %v304, 4
    %1746 = vrot.lane.b32.xlu0 %v1745, 64
    %v1747 = vpop.permute.xlu0 %1746
    %1749 = vrot.lane.b32.xlu0 %v1739, 121
    %v1750 = vpop.permute.xlu0 %1749
    %v1753 = vsel %vm480, %v1744, 0
    %v1756 = vsel %vm480, %v1747, 0
    %1758 = vmatprep.subr.bf16.mxu0 0
    %1759 = vmatpush1.bf16.xpose.msra.mxu0 %v1756
    %1760 = vmatprep.subr.bf16.mxu0 0
    %1761 = vmatpush1.bf16.xpose.msra.mxu0 0
    %1762 = vmatprep.subr.bf16.mxu0 0
    %1763 = vmatpush1.bf16.xpose.msra.mxu0 0
    %1764 = vmatprep.subr.bf16.mxu0 0
    %1765 = vmatpush1.bf16.xpose.msra.mxu0 0
    %1766 = vmatprep.subr.bf16.mxu0 0
    %1767 = vmatpush1.bf16.xpose.msra.mxu0 0
    %1768 = vmatprep.subr.bf16.mxu0 0
    %1769 = vmatpush1.bf16.xpose.msra.mxu0 0
    %1770 = vmatprep.subr.bf16.mxu0 0
    %1771 = vmatpush1.bf16.xpose.msra.mxu0 0
    %1772 = vmatprep.subr.bf16.mxu0 0
    %1773 = vmatpush1.bf16.xpose.msra.mxu0 0
    %1774 = vmatprep.subr.bf16.mxu0 0
    %1775 = vmatpush1.bf16.xpose.msra.mxu0 0
    %1776 = vmatprep.subr.bf16.mxu0 0
    %1777 = vmatpush1.bf16.xpose.msra.mxu0 0
    %1778 = vmatprep.subr.bf16.mxu0 0
    %1779 = vmatpush1.bf16.xpose.msra.mxu0 0
    %1780 = vmatprep.subr.bf16.mxu0 0
    %1781 = vmatpush1.bf16.xpose.msra.mxu0 0
    %1782 = vmatprep.subr.bf16.mxu0 0
    %1783 = vmatpush1.bf16.xpose.msra.mxu0 0
    %1784 = vmatprep.subr.bf16.mxu0 0
    %1785 = vmatpush1.bf16.xpose.msra.mxu0 0
    %1786 = vmatprep.subr.bf16.mxu0 0
    %1787 = vmatpush1.bf16.xpose.msra.mxu0 0
    %1788 = vmatprep.subr.bf16.mxu0 0
    %1789 = vmatpush1.bf16.xpose.msra.mxu0 0
    %1790 = vmatprep.mubr.bf16.mxu0 0
    %1791 = vmatmul.mubr.bf16.gmra.mrb[0].mxu0 %v1753
    %v1792 = vpop.f32.mrb[0].mxu0
    %v1793 = vadd.f32 %v1750, %v1792
    %v1794 = vpop.f32.mrb[0].mxu0
    %v1795 = vpop.f32.mrb[0].mxu0
    %v1796 = vpop.f32.mrb[0].mxu0
    %1797 = vdwg.mxu0
    %v1799 = vrot.slane %v411, 4
    %v1800 = vrot.slane %v305, 4
    %1801 = vrot.lane.b32.xlu0 %v1800, 64
    %v1802 = vpop.permute.xlu0 %1801
    %1804 = vrot.lane.b32.xlu0 %v1740, 121
    %v1805 = vpop.permute.xlu0 %1804
    %v1808 = vsel %vm480, %v1799, 0
    %v1811 = vsel %vm480, %v1802, 0
    %1813 = vmatprep.subr.bf16.mxu0 0
    %1814 = vmatpush1.bf16.xpose.msra.mxu0 %v1811
    %1815 = vmatprep.subr.bf16.mxu0 0
    %1816 = vmatpush1.bf16.xpose.msra.mxu0 0
    %1817 = vmatprep.subr.bf16.mxu0 0
    %1818 = vmatpush1.bf16.xpose.msra.mxu0 0
    %1819 = vmatprep.subr.bf16.mxu0 0
    %1820 = vmatpush1.bf16.xpose.msra.mxu0 0
    %1821 = vmatprep.subr.bf16.mxu0 0
    %1822 = vmatpush1.bf16.xpose.msra.mxu0 0
    %1823 = vmatprep.subr.bf16.mxu0 0
    %1824 = vmatpush1.bf16.xpose.msra.mxu0 0
    %1825 = vmatprep.subr.bf16.mxu0 0
    %1826 = vmatpush1.bf16.xpose.msra.mxu0 0
    %1827 = vmatprep.subr.bf16.mxu0 0
    %1828 = vmatpush1.bf16.xpose.msra.mxu0 0
    %1829 = vmatprep.subr.bf16.mxu0 0
    %1830 = vmatpush1.bf16.xpose.msra.mxu0 0
    %1831 = vmatprep.subr.bf16.mxu0 0
    %1832 = vmatpush1.bf16.xpose.msra.mxu0 0
    %1833 = vmatprep.subr.bf16.mxu0 0
    %1834 = vmatpush1.bf16.xpose.msra.mxu0 0
    %1835 = vmatprep.subr.bf16.mxu0 0
    %1836 = vmatpush1.bf16.xpose.msra.mxu0 0
    %1837 = vmatprep.subr.bf16.mxu0 0
    %1838 = vmatpush1.bf16.xpose.msra.mxu0 0
    %1839 = vmatprep.subr.bf16.mxu0 0
    %1840 = vmatpush1.bf16.xpose.msra.mxu0 0
    %1841 = vmatprep.subr.bf16.mxu0 0
    %1842 = vmatpush1.bf16.xpose.msra.mxu0 0
    %1843 = vmatprep.subr.bf16.mxu0 0
    %1844 = vmatpush1.bf16.xpose.msra.mxu0 0
    %1845 = vmatprep.mubr.bf16.mxu0 0
    %1846 = vmatmul.mubr.bf16.gmra.mrb[0].mxu0 %v1808
    %v1847 = vpop.f32.mrb[0].mxu0
    %v1848 = vadd.f32 %v1805, %v1847
    %v1849 = vpop.f32.mrb[0].mxu0
    %v1850 = vpop.f32.mrb[0].mxu0
    %v1851 = vpop.f32.mrb[0].mxu0
    %1852 = vdwg.mxu0
    %v1854 = vrot.slane %v412, 4
    %v1855 = vrot.slane %v306, 4
    %1856 = vrot.lane.b32.xlu0 %v1855, 64
    %v1857 = vpop.permute.xlu0 %1856
    %1859 = vrot.lane.b32.xlu0 %v1741, 121
    %v1860 = vpop.permute.xlu0 %1859
    %v1863 = vsel %vm480, %v1854, 0
    %v1866 = vsel %vm480, %v1857, 0
    %1868 = vmatprep.subr.bf16.mxu0 0
    %1869 = vmatpush1.bf16.xpose.msra.mxu0 %v1866
    %1870 = vmatprep.subr.bf16.mxu0 0
    %1871 = vmatpush1.bf16.xpose.msra.mxu0 0
    %1872 = vmatprep.subr.bf16.mxu0 0
    %1873 = vmatpush1.bf16.xpose.msra.mxu0 0
    %1874 = vmatprep.subr.bf16.mxu0 0
    %1875 = vmatpush1.bf16.xpose.msra.mxu0 0
    %1876 = vmatprep.subr.bf16.mxu0 0
    %1877 = vmatpush1.bf16.xpose.msra.mxu0 0
    %1878 = vmatprep.subr.bf16.mxu0 0
    %1879 = vmatpush1.bf16.xpose.msra.mxu0 0
    %1880 = vmatprep.subr.bf16.mxu0 0
    %1881 = vmatpush1.bf16.xpose.msra.mxu0 0
    %1882 = vmatprep.subr.bf16.mxu0 0
    %1883 = vmatpush1.bf16.xpose.msra.mxu0 0
    %1884 = vmatprep.subr.bf16.mxu0 0
    %1885 = vmatpush1.bf16.xpose.msra.mxu0 0
    %1886 = vmatprep.subr.bf16.mxu0 0
    %1887 = vmatpush1.bf16.xpose.msra.mxu0 0
    %1888 = vmatprep.subr.bf16.mxu0 0
    %1889 = vmatpush1.bf16.xpose.msra.mxu0 0
    %1890 = vmatprep.subr.bf16.mxu0 0
    %1891 = vmatpush1.bf16.xpose.msra.mxu0 0
    %1892 = vmatprep.subr.bf16.mxu0 0
    %1893 = vmatpush1.bf16.xpose.msra.mxu0 0
    %1894 = vmatprep.subr.bf16.mxu0 0
    %1895 = vmatpush1.bf16.xpose.msra.mxu0 0
    %1896 = vmatprep.subr.bf16.mxu0 0
    %1897 = vmatpush1.bf16.xpose.msra.mxu0 0
    %1898 = vmatprep.subr.bf16.mxu0 0
    %1899 = vmatpush1.bf16.xpose.msra.mxu0 0
    %1900 = vmatprep.mubr.bf16.mxu0 0
    %1901 = vmatmul.mubr.bf16.gmra.mrb[0].mxu0 %v1863
    %v1902 = vpop.f32.mrb[0].mxu0
    %v1903 = vadd.f32 %v1860, %v1902
    %v1904 = vpop.f32.mrb[0].mxu0
    %v1905 = vpop.f32.mrb[0].mxu0
    %v1906 = vpop.f32.mrb[0].mxu0
    %1907 = vdwg.mxu0
    %v1909 = vrot.slane %v413, 4
    %v1910 = vrot.slane %v307, 4
    %1911 = vrot.lane.b32.xlu0 %v1910, 64
    %v1912 = vpop.permute.xlu0 %1911
    %1914 = vrot.lane.b32.xlu0 %v1742, 121
    %v1915 = vpop.permute.xlu0 %1914
    %v1918 = vsel %vm480, %v1909, 0
    %v1921 = vsel %vm480, %v1912, 0
    %1923 = vmatprep.subr.bf16.mxu0 0
    %1924 = vmatpush1.bf16.xpose.msra.mxu0 %v1921
    %1925 = vmatprep.subr.bf16.mxu0 0
    %1926 = vmatpush1.bf16.xpose.msra.mxu0 0
    %1927 = vmatprep.subr.bf16.mxu0 0
    %1928 = vmatpush1.bf16.xpose.msra.mxu0 0
    %1929 = vmatprep.subr.bf16.mxu0 0
    %1930 = vmatpush1.bf16.xpose.msra.mxu0 0
    %1931 = vmatprep.subr.bf16.mxu0 0
    %1932 = vmatpush1.bf16.xpose.msra.mxu0 0
    %1933 = vmatprep.subr.bf16.mxu0 0
    %1934 = vmatpush1.bf16.xpose.msra.mxu0 0
    %1935 = vmatprep.subr.bf16.mxu0 0
    %1936 = vmatpush1.bf16.xpose.msra.mxu0 0
    %1937 = vmatprep.subr.bf16.mxu0 0
    %1938 = vmatpush1.bf16.xpose.msra.mxu0 0
    %1939 = vmatprep.subr.bf16.mxu0 0
    %1940 = vmatpush1.bf16.xpose.msra.mxu0 0
    %1941 = vmatprep.subr.bf16.mxu0 0
    %1942 = vmatpush1.bf16.xpose.msra.mxu0 0
    %1943 = vmatprep.subr.bf16.mxu0 0
    %1944 = vmatpush1.bf16.xpose.msra.mxu0 0
    %1945 = vmatprep.subr.bf16.mxu0 0
    %1946 = vmatpush1.bf16.xpose.msra.mxu0 0
    %1947 = vmatprep.subr.bf16.mxu0 0
    %1948 = vmatpush1.bf16.xpose.msra.mxu0 0
    %1949 = vmatprep.subr.bf16.mxu0 0
    %1950 = vmatpush1.bf16.xpose.msra.mxu0 0
    %1951 = vmatprep.subr.bf16.mxu0 0
    %1952 = vmatpush1.bf16.xpose.msra.mxu0 0
    %1953 = vmatprep.subr.bf16.mxu0 0
    %1954 = vmatpush1.bf16.xpose.msra.mxu0 0
    %1955 = vmatprep.mubr.bf16.mxu0 0
    %1956 = vmatmul.mubr.bf16.gmra.mrb[0].mxu0 %v1918
    %v1957 = vpop.f32.mrb[0].mxu0
    %v1958 = vadd.f32 %v1915, %v1957
    %v1959 = vpop.f32.mrb[0].mxu0
    %v1960 = vpop.f32.mrb[0].mxu0
    %v1961 = vpop.f32.mrb[0].mxu0
    %1962 = vdwg.mxu0
    %v1963 = vsel %vm999, %v1793, -inf
    %1964 = vmax.xlane.f32.xlu0 %v1963
    %v1965 = vpop.xlane.xlu0 %1964
    %v1966 = vsel %vm999, %v1848, -inf
    %1967 = vmax.xlane.f32.xlu0 %v1966
    %v1968 = vpop.xlane.xlu0 %1967
    %v1969 = vsel %vm999, %v1903, -inf
    %1970 = vmax.xlane.f32.xlu0 %v1969
    %v1971 = vpop.xlane.xlu0 %1970
    %v1972 = vsel %vm999, %v1958, -inf
    %1973 = vmax.xlane.f32.xlu0 %v1972
    %v1974 = vpop.xlane.xlu0 %1973
    %v1975 = vsub.f32 %v1793, %v1965
    %v1976 = vsub.f32 %v1848, %v1968
    %v1977 = vsub.f32 %v1903, %v1971
    %v1978 = vsub.f32 %v1958, %v1974
    %v1979 = vmul.f32 %v1975, 1.442695
    %v1980 = vpow.pop %v1979
    %v1981 = vmul.f32 %v1976, 1.442695
    %v1982 = vpow.pop %v1981
    %v1983 = vmul.f32 %v1977, 1.442695
    %v1984 = vpow.pop %v1983
    %v1985 = vmul.f32 %v1978, 1.442695
    %v1986 = vpow.pop %v1985
    %v1987 = vsel %vm999, %v1980, 0.0
    %1988 = vadd.xlane.f32.xlu0 %v1987
    %v1989 = vpop.xlane.xlu0 %1988
    %v1990 = vsel %vm999, %v1982, 0.0
    %1991 = vadd.xlane.f32.xlu0 %v1990
    %v1992 = vpop.xlane.xlu0 %1991
    %v1993 = vsel %vm999, %v1984, 0.0
    %1994 = vadd.xlane.f32.xlu0 %v1993
    %v1995 = vpop.xlane.xlu0 %1994
    %v1996 = vsel %vm999, %v1986, 0.0
    %1997 = vadd.xlane.f32.xlu0 %v1996
    %v1998 = vpop.xlane.xlu0 %1997
    %v1999 = vrcp.pop %v1989
    %v2000 = vrcp.pop %v1992
    %v2001 = vrcp.pop %v1995
    %v2002 = vrcp.pop %v1998
    %v2003 = vmul.f32 %v1980, %v1999
    %v2004 = vmul.f32 %v1982, %v2000
    %v2005 = vmul.f32 %v1984, %v2001
    %v2006 = vmul.f32 %v1986, %v2002
    %v2007 = vpack.c.bf16 %v2003, %v2003
    %v2008 = vpack.c.bf16 %v2004, %v2004
    %v2009 = vpack.c.bf16 %v2005, %v2005
    %v2010 = vpack.c.bf16 %v2006, %v2006
    %v2012 = vrot.slane %v328, 4
    %v2014 = vsel %vm999, %v2007, 0
    %v2017 = vsel %vm768, %v2012, 0
    %2019 = vmatprep.subr.bf16.mxu0 0
    %2020 = vmatpush1.bf16.msra.mxu0 %v2017
    %2021 = vmatprep.subr.bf16.mxu0 0
    %2022 = vmatpush1.bf16.msra.mxu0 0
    %2023 = vmatprep.subr.bf16.mxu0 0
    %2024 = vmatpush1.bf16.msra.mxu0 0
    %2025 = vmatprep.subr.bf16.mxu0 0
    %2026 = vmatpush1.bf16.msra.mxu0 0
    %2027 = vmatprep.subr.bf16.mxu0 0
    %2028 = vmatpush1.bf16.msra.mxu0 0
    %2029 = vmatprep.subr.bf16.mxu0 0
    %2030 = vmatpush1.bf16.msra.mxu0 0
    %2031 = vmatprep.subr.bf16.mxu0 0
    %2032 = vmatpush1.bf16.msra.mxu0 0
    %2033 = vmatprep.subr.bf16.mxu0 0
    %2034 = vmatpush1.bf16.msra.mxu0 0
    %2035 = vmatprep.subr.bf16.mxu0 0
    %2036 = vmatpush1.bf16.msra.mxu0 0
    %2037 = vmatprep.subr.bf16.mxu0 0
    %2038 = vmatpush1.bf16.msra.mxu0 0
    %2039 = vmatprep.subr.bf16.mxu0 0
    %2040 = vmatpush1.bf16.msra.mxu0 0
    %2041 = vmatprep.subr.bf16.mxu0 0
    %2042 = vmatpush1.bf16.msra.mxu0 0
    %2043 = vmatprep.subr.bf16.mxu0 0
    %2044 = vmatpush1.bf16.msra.mxu0 0
    %2045 = vmatprep.subr.bf16.mxu0 0
    %2046 = vmatpush1.bf16.msra.mxu0 0
    %2047 = vmatprep.subr.bf16.mxu0 0
    %2048 = vmatpush1.bf16.msra.mxu0 0
    %2049 = vmatprep.subr.bf16.mxu0 0
    %2050 = vmatpush1.bf16.msra.mxu0 0
    %2051 = vmatprep.mubr.bf16.mxu0 0
    %2052 = vmatmul.mubr.bf16.gmra.mrb[0].mxu0 %v2014
    %v2053 = vpop.f32.mrb[0].mxu0
    %v2054 = vadd.f32 0.0, %v2053
    %v2055 = vpop.f32.mrb[0].mxu0
    %v2056 = vpop.f32.mrb[0].mxu0
    %v2057 = vpop.f32.mrb[0].mxu0
    %2058 = vdwg.mxu0
    %v2060 = vrot.slane %v329, 4
    %v2062 = vsel %vm999, %v2008, 0
    %v2065 = vsel %vm768, %v2060, 0
    %2067 = vmatprep.subr.bf16.mxu0 0
    %2068 = vmatpush1.bf16.msra.mxu0 %v2065
    %2069 = vmatprep.subr.bf16.mxu0 0
    %2070 = vmatpush1.bf16.msra.mxu0 0
    %2071 = vmatprep.subr.bf16.mxu0 0
    %2072 = vmatpush1.bf16.msra.mxu0 0
    %2073 = vmatprep.subr.bf16.mxu0 0
    %2074 = vmatpush1.bf16.msra.mxu0 0
    %2075 = vmatprep.subr.bf16.mxu0 0
    %2076 = vmatpush1.bf16.msra.mxu0 0
    %2077 = vmatprep.subr.bf16.mxu0 0
    %2078 = vmatpush1.bf16.msra.mxu0 0
    %2079 = vmatprep.subr.bf16.mxu0 0
    %2080 = vmatpush1.bf16.msra.mxu0 0
    %2081 = vmatprep.subr.bf16.mxu0 0
    %2082 = vmatpush1.bf16.msra.mxu0 0
    %2083 = vmatprep.subr.bf16.mxu0 0
    %2084 = vmatpush1.bf16.msra.mxu0 0
    %2085 = vmatprep.subr.bf16.mxu0 0
    %2086 = vmatpush1.bf16.msra.mxu0 0
    %2087 = vmatprep.subr.bf16.mxu0 0
    %2088 = vmatpush1.bf16.msra.mxu0 0
    %2089 = vmatprep.subr.bf16.mxu0 0
    %2090 = vmatpush1.bf16.msra.mxu0 0
    %2091 = vmatprep.subr.bf16.mxu0 0
    %2092 = vmatpush1.bf16.msra.mxu0 0
    %2093 = vmatprep.subr.bf16.mxu0 0
    %2094 = vmatpush1.bf16.msra.mxu0 0
    %2095 = vmatprep.subr.bf16.mxu0 0
    %2096 = vmatpush1.bf16.msra.mxu0 0
    %2097 = vmatprep.subr.bf16.mxu0 0
    %2098 = vmatpush1.bf16.msra.mxu0 0
    %2099 = vmatprep.mubr.bf16.mxu0 0
    %2100 = vmatmul.mubr.bf16.gmra.mrb[0].mxu0 %v2062
    %v2101 = vpop.f32.mrb[0].mxu0
    %v2102 = vadd.f32 0.0, %v2101
    %v2103 = vpop.f32.mrb[0].mxu0
    %v2104 = vpop.f32.mrb[0].mxu0
    %v2105 = vpop.f32.mrb[0].mxu0
    %2106 = vdwg.mxu0
    %v2108 = vrot.slane %v330, 4
    %v2110 = vsel %vm999, %v2009, 0
    %v2113 = vsel %vm768, %v2108, 0
    %2115 = vmatprep.subr.bf16.mxu0 0
    %2116 = vmatpush1.bf16.msra.mxu0 %v2113
    %2117 = vmatprep.subr.bf16.mxu0 0
    %2118 = vmatpush1.bf16.msra.mxu0 0
    %2119 = vmatprep.subr.bf16.mxu0 0
    %2120 = vmatpush1.bf16.msra.mxu0 0
    %2121 = vmatprep.subr.bf16.mxu0 0
    %2122 = vmatpush1.bf16.msra.mxu0 0
    %2123 = vmatprep.subr.bf16.mxu0 0
    %2124 = vmatpush1.bf16.msra.mxu0 0
    %2125 = vmatprep.subr.bf16.mxu0 0
    %2126 = vmatpush1.bf16.msra.mxu0 0
    %2127 = vmatprep.subr.bf16.mxu0 0
    %2128 = vmatpush1.bf16.msra.mxu0 0
    %2129 = vmatprep.subr.bf16.mxu0 0
    %2130 = vmatpush1.bf16.msra.mxu0 0
    %2131 = vmatprep.subr.bf16.mxu0 0
    %2132 = vmatpush1.bf16.msra.mxu0 0
    %2133 = vmatprep.subr.bf16.mxu0 0
    %2134 = vmatpush1.bf16.msra.mxu0 0
    %2135 = vmatprep.subr.bf16.mxu0 0
    %2136 = vmatpush1.bf16.msra.mxu0 0
    %2137 = vmatprep.subr.bf16.mxu0 0
    %2138 = vmatpush1.bf16.msra.mxu0 0
    %2139 = vmatprep.subr.bf16.mxu0 0
    %2140 = vmatpush1.bf16.msra.mxu0 0
    %2141 = vmatprep.subr.bf16.mxu0 0
    %2142 = vmatpush1.bf16.msra.mxu0 0
    %2143 = vmatprep.subr.bf16.mxu0 0
    %2144 = vmatpush1.bf16.msra.mxu0 0
    %2145 = vmatprep.subr.bf16.mxu0 0
    %2146 = vmatpush1.bf16.msra.mxu0 0
    %2147 = vmatprep.mubr.bf16.mxu0 0
    %2148 = vmatmul.mubr.bf16.gmra.mrb[0].mxu0 %v2110
    %v2149 = vpop.f32.mrb[0].mxu0
    %v2150 = vadd.f32 0.0, %v2149
    %v2151 = vpop.f32.mrb[0].mxu0
    %v2152 = vpop.f32.mrb[0].mxu0
    %v2153 = vpop.f32.mrb[0].mxu0
    %2154 = vdwg.mxu0
    %v2156 = vrot.slane %v331, 4
    %v2158 = vsel %vm999, %v2010, 0
    %v2161 = vsel %vm768, %v2156, 0
    %2163 = vmatprep.subr.bf16.mxu0 0
    %2164 = vmatpush1.bf16.msra.mxu0 %v2161
    %2165 = vmatprep.subr.bf16.mxu0 0
    %2166 = vmatpush1.bf16.msra.mxu0 0
    %2167 = vmatprep.subr.bf16.mxu0 0
    %2168 = vmatpush1.bf16.msra.mxu0 0
    %2169 = vmatprep.subr.bf16.mxu0 0
    %2170 = vmatpush1.bf16.msra.mxu0 0
    %2171 = vmatprep.subr.bf16.mxu0 0
    %2172 = vmatpush1.bf16.msra.mxu0 0
    %2173 = vmatprep.subr.bf16.mxu0 0
    %2174 = vmatpush1.bf16.msra.mxu0 0
    %2175 = vmatprep.subr.bf16.mxu0 0
    %2176 = vmatpush1.bf16.msra.mxu0 0
    %2177 = vmatprep.subr.bf16.mxu0 0
    %2178 = vmatpush1.bf16.msra.mxu0 0
    %2179 = vmatprep.subr.bf16.mxu0 0
    %2180 = vmatpush1.bf16.msra.mxu0 0
    %2181 = vmatprep.subr.bf16.mxu0 0
    %2182 = vmatpush1.bf16.msra.mxu0 0
    %2183 = vmatprep.subr.bf16.mxu0 0
    %2184 = vmatpush1.bf16.msra.mxu0 0
    %2185 = vmatprep.subr.bf16.mxu0 0
    %2186 = vmatpush1.bf16.msra.mxu0 0
    %2187 = vmatprep.subr.bf16.mxu0 0
    %2188 = vmatpush1.bf16.msra.mxu0 0
    %2189 = vmatprep.subr.bf16.mxu0 0
    %2190 = vmatpush1.bf16.msra.mxu0 0
    %2191 = vmatprep.subr.bf16.mxu0 0
    %2192 = vmatpush1.bf16.msra.mxu0 0
    %2193 = vmatprep.subr.bf16.mxu0 0
    %2194 = vmatpush1.bf16.msra.mxu0 0
    %2195 = vmatprep.mubr.bf16.mxu0 0
    %2196 = vmatmul.mubr.bf16.gmra.mrb[0].mxu0 %v2158
    %v2197 = vpop.f32.mrb[0].mxu0
    %v2198 = vadd.f32 0.0, %v2197
    %v2199 = vpop.f32.mrb[0].mxu0
    %v2200 = vpop.f32.mrb[0].mxu0
    %v2201 = vpop.f32.mrb[0].mxu0
    %2202 = vdwg.mxu0
    %v2203 = vpack.c.bf16 %v2054, %v2054
    %v2204 = vpack.c.bf16 %v2102, %v2102
    %v2205 = vpack.c.bf16 %v2150, %v2150
    %v2206 = vpack.c.bf16 %v2198, %v2198
    %v2208 = vsel %vm215, %v2203, 0
    %2210 = vmatprep.subr.bf16.mxu0 0
    %2211 = vmatpush1.bf16.msra.mxu0 %v1245
    %2212 = vmatprep.subr.bf16.mxu0 0
    %2213 = vmatpush1.bf16.msra.mxu0 0
    %2214 = vmatprep.subr.bf16.mxu0 0
    %2215 = vmatpush1.bf16.msra.mxu0 0
    %2216 = vmatprep.subr.bf16.mxu0 0
    %2217 = vmatpush1.bf16.msra.mxu0 0
    %2218 = vmatprep.subr.bf16.mxu0 0
    %2219 = vmatpush1.bf16.msra.mxu0 0
    %2220 = vmatprep.subr.bf16.mxu0 0
    %2221 = vmatpush1.bf16.msra.mxu0 0
    %2222 = vmatprep.subr.bf16.mxu0 0
    %2223 = vmatpush1.bf16.msra.mxu0 0
    %2224 = vmatprep.subr.bf16.mxu0 0
    %2225 = vmatpush1.bf16.msra.mxu0 0
    %2226 = vmatprep.subr.bf16.mxu0 0
    %2227 = vmatpush1.bf16.msra.mxu0 0
    %2228 = vmatprep.subr.bf16.mxu0 0
    %2229 = vmatpush1.bf16.msra.mxu0 0
    %2230 = vmatprep.subr.bf16.mxu0 0
    %2231 = vmatpush1.bf16.msra.mxu0 0
    %2232 = vmatprep.subr.bf16.mxu0 0
    %2233 = vmatpush1.bf16.msra.mxu0 0
    %2234 = vmatprep.subr.bf16.mxu0 0
    %2235 = vmatpush1.bf16.msra.mxu0 0
    %2236 = vmatprep.subr.bf16.mxu0 0
    %2237 = vmatpush1.bf16.msra.mxu0 0
    %2238 = vmatprep.subr.bf16.mxu0 0
    %2239 = vmatpush1.bf16.msra.mxu0 0
    %2240 = vmatprep.subr.bf16.mxu0 0
    %2241 = vmatpush1.bf16.msra.mxu0 0
    %2242 = vmatprep.mubr.bf16.mxu0 0
    %2243 = vmatmul.mubr.bf16.gmra.mrb[0].mxu0 %v2208
    %v2244 = vpop.f32.mrb[0].mxu0
    %v2245 = vadd.f32 0.0, %v2244
    %v2246 = vpop.f32.mrb[0].mxu0
    %v2247 = vpop.f32.mrb[0].mxu0
    %v2248 = vpop.f32.mrb[0].mxu0
    %2249 = vdwg.mxu0
    %v2251 = vsel %vm215, %v2204, 0
    %2253 = vmatprep.subr.bf16.mxu0 0
    %2254 = vmatpush1.bf16.msra.mxu0 %v1296
    %2255 = vmatprep.subr.bf16.mxu0 0
    %2256 = vmatpush1.bf16.msra.mxu0 0
    %2257 = vmatprep.subr.bf16.mxu0 0
    %2258 = vmatpush1.bf16.msra.mxu0 0
    %2259 = vmatprep.subr.bf16.mxu0 0
    %2260 = vmatpush1.bf16.msra.mxu0 0
    %2261 = vmatprep.subr.bf16.mxu0 0
    %2262 = vmatpush1.bf16.msra.mxu0 0
    %2263 = vmatprep.subr.bf16.mxu0 0
    %2264 = vmatpush1.bf16.msra.mxu0 0
    %2265 = vmatprep.subr.bf16.mxu0 0
    %2266 = vmatpush1.bf16.msra.mxu0 0
    %2267 = vmatprep.subr.bf16.mxu0 0
    %2268 = vmatpush1.bf16.msra.mxu0 0
    %2269 = vmatprep.subr.bf16.mxu0 0
    %2270 = vmatpush1.bf16.msra.mxu0 0
    %2271 = vmatprep.subr.bf16.mxu0 0
    %2272 = vmatpush1.bf16.msra.mxu0 0
    %2273 = vmatprep.subr.bf16.mxu0 0
    %2274 = vmatpush1.bf16.msra.mxu0 0
    %2275 = vmatprep.subr.bf16.mxu0 0
    %2276 = vmatpush1.bf16.msra.mxu0 0
    %2277 = vmatprep.subr.bf16.mxu0 0
    %2278 = vmatpush1.bf16.msra.mxu0 0
    %2279 = vmatprep.subr.bf16.mxu0 0
    %2280 = vmatpush1.bf16.msra.mxu0 0
    %2281 = vmatprep.subr.bf16.mxu0 0
    %2282 = vmatpush1.bf16.msra.mxu0 0
    %2283 = vmatprep.subr.bf16.mxu0 0
    %2284 = vmatpush1.bf16.msra.mxu0 0
    %2285 = vmatprep.mubr.bf16.mxu0 0
    %2286 = vmatmul.mubr.bf16.gmra.mrb[0].mxu0 %v2251
    %v2287 = vpop.f32.mrb[0].mxu0
    %v2288 = vadd.f32 0.0, %v2287
    %v2289 = vpop.f32.mrb[0].mxu0
    %v2290 = vpop.f32.mrb[0].mxu0
    %v2291 = vpop.f32.mrb[0].mxu0
    %2292 = vdwg.mxu0
    %v2294 = vsel %vm215, %v2205, 0
    %2296 = vmatprep.subr.bf16.mxu0 0
    %2297 = vmatpush1.bf16.msra.mxu0 %v1347
    %2298 = vmatprep.subr.bf16.mxu0 0
    %2299 = vmatpush1.bf16.msra.mxu0 0
    %2300 = vmatprep.subr.bf16.mxu0 0
    %2301 = vmatpush1.bf16.msra.mxu0 0
    %2302 = vmatprep.subr.bf16.mxu0 0
    %2303 = vmatpush1.bf16.msra.mxu0 0
    %2304 = vmatprep.subr.bf16.mxu0 0
    %2305 = vmatpush1.bf16.msra.mxu0 0
    %2306 = vmatprep.subr.bf16.mxu0 0
    %2307 = vmatpush1.bf16.msra.mxu0 0
    %2308 = vmatprep.subr.bf16.mxu0 0
    %2309 = vmatpush1.bf16.msra.mxu0 0
    %2310 = vmatprep.subr.bf16.mxu0 0
    %2311 = vmatpush1.bf16.msra.mxu0 0
    %2312 = vmatprep.subr.bf16.mxu0 0
    %2313 = vmatpush1.bf16.msra.mxu0 0
    %2314 = vmatprep.subr.bf16.mxu0 0
    %2315 = vmatpush1.bf16.msra.mxu0 0
    %2316 = vmatprep.subr.bf16.mxu0 0
    %2317 = vmatpush1.bf16.msra.mxu0 0
    %2318 = vmatprep.subr.bf16.mxu0 0
    %2319 = vmatpush1.bf16.msra.mxu0 0
    %2320 = vmatprep.subr.bf16.mxu0 0
    %2321 = vmatpush1.bf16.msra.mxu0 0
    %2322 = vmatprep.subr.bf16.mxu0 0
    %2323 = vmatpush1.bf16.msra.mxu0 0
    %2324 = vmatprep.subr.bf16.mxu0 0
    %2325 = vmatpush1.bf16.msra.mxu0 0
    %2326 = vmatprep.subr.bf16.mxu0 0
    %2327 = vmatpush1.bf16.msra.mxu0 0
    %2328 = vmatprep.mubr.bf16.mxu0 0
    %2329 = vmatmul.mubr.bf16.gmra.mrb[0].mxu0 %v2294
    %v2330 = vpop.f32.mrb[0].mxu0
    %v2331 = vadd.f32 0.0, %v2330
    %v2332 = vpop.f32.mrb[0].mxu0
    %v2333 = vpop.f32.mrb[0].mxu0
    %v2334 = vpop.f32.mrb[0].mxu0
    %2335 = vdwg.mxu0
    %v2337 = vsel %vm215, %v2206, 0
    %2339 = vmatprep.subr.bf16.mxu0 0
    %2340 = vmatpush1.bf16.msra.mxu0 %v1398
    %2341 = vmatprep.subr.bf16.mxu0 0
    %2342 = vmatpush1.bf16.msra.mxu0 0
    %2343 = vmatprep.subr.bf16.mxu0 0
    %2344 = vmatpush1.bf16.msra.mxu0 0
    %2345 = vmatprep.subr.bf16.mxu0 0
    %2346 = vmatpush1.bf16.msra.mxu0 0
    %2347 = vmatprep.subr.bf16.mxu0 0
    %2348 = vmatpush1.bf16.msra.mxu0 0
    %2349 = vmatprep.subr.bf16.mxu0 0
    %2350 = vmatpush1.bf16.msra.mxu0 0
    %2351 = vmatprep.subr.bf16.mxu0 0
    %2352 = vmatpush1.bf16.msra.mxu0 0
    %2353 = vmatprep.subr.bf16.mxu0 0
    %2354 = vmatpush1.bf16.msra.mxu0 0
    %2355 = vmatprep.subr.bf16.mxu0 0
    %2356 = vmatpush1.bf16.msra.mxu0 0
    %2357 = vmatprep.subr.bf16.mxu0 0
    %2358 = vmatpush1.bf16.msra.mxu0 0
    %2359 = vmatprep.subr.bf16.mxu0 0
    %2360 = vmatpush1.bf16.msra.mxu0 0
    %2361 = vmatprep.subr.bf16.mxu0 0
    %2362 = vmatpush1.bf16.msra.mxu0 0
    %2363 = vmatprep.subr.bf16.mxu0 0
    %2364 = vmatpush1.bf16.msra.mxu0 0
    %2365 = vmatprep.subr.bf16.mxu0 0
    %2366 = vmatpush1.bf16.msra.mxu0 0
    %2367 = vmatprep.subr.bf16.mxu0 0
    %2368 = vmatpush1.bf16.msra.mxu0 0
    %2369 = vmatprep.subr.bf16.mxu0 0
    %2370 = vmatpush1.bf16.msra.mxu0 0
    %2371 = vmatprep.mubr.bf16.mxu0 0
    %2372 = vmatmul.mubr.bf16.gmra.mrb[0].mxu0 %v2337
    %v2373 = vpop.f32.mrb[0].mxu0
    %v2374 = vadd.f32 0.0, %v2373
    %v2375 = vpop.f32.mrb[0].mxu0
    %v2376 = vpop.f32.mrb[0].mxu0
    %v2377 = vpop.f32.mrb[0].mxu0
    %2378 = vdwg.mxu0
    %v2379 = vsel %vm72, %v2245, 0.0
    %v2380 = vsel %vm72, %v2288, 0.0
    %v2381 = vadd.f32 %v2379, %v2380
    %v2382 = vsel %vm72, %v2331, 0.0
    %v2383 = vadd.f32 %v2381, %v2382
    %v2384 = vsel %vm72, %v2374, 0.0
    %v2385 = vadd.f32 %v2383, %v2384
    %v2386 = vld [vmem:[#allocation2] sm:$0x1]
    %v2388 = vlaneseq
    %v2389 = vshrl.u32 %v2388, 7
    %v2390 = vsub.s32 0, %v2389
    %v2391 = vrot.slane %v2386, %v2390
    %v2393 = vadd.f32 %v1446, %v2391
    %v2394 = vadd.f32 %v2385, %v2391
    %v2395 = vadd.f32 %v67, %v2393
    %v2396 = vadd.f32 %v69, %v2394
    %v2397 = vld [vmem:[%s10] sm:$0x1]
    %v2398 = vld [vmem:[%s11] sm:$0x1]
    %v2399 = vsel %vm72, %v2395, 0.0
    %2400 = vadd.xlane.f32.xlu0 %v2399
    %v2401 = vpop.xlane.xlu0 %2400
    %v2402 = vsel %vm72, %v2396, 0.0
    %2403 = vadd.xlane.f32.xlu0 %v2402
    %v2404 = vpop.xlane.xlu0 %2403
    %v2405 = vmul.f32 %v2401, %v79
    %v2406 = vmul.f32 %v2404, %v79
    %v2407 = vsub.f32 %v2395, %v2405
    %v2408 = vsub.f32 %v2396, %v2406
    %v2409 = vmul.f32 %v2407, %v2407
    %v2410 = vmul.f32 %v2408, %v2408
    %v2411 = vsel %vm72, %v2409, 0.0
    %2412 = vadd.xlane.f32.xlu0 %v2411
    %v2413 = vpop.xlane.xlu0 %2412
    %v2414 = vsel %vm72, %v2410, 0.0
    %2415 = vadd.xlane.f32.xlu0 %v2414
    %v2416 = vpop.xlane.xlu0 %2415
    %v2417 = vmul.f32 %v2413, %v79
    %v2418 = vmul.f32 %v2416, %v79
    %v2419 = vadd.f32 %v2417, 1e-05
    %v2420 = vadd.f32 %v2418, 1e-05
    %v2421 = vrsqrt.pop %v2419
    %v2422 = vrsqrt.pop %v2420
    %v2423 = vmul.f32 %v2407, %v2421
    %v2424 = vmul.f32 %v2408, %v2422
    %v2426 = vlaneseq
    %v2427 = vshrl.u32 %v2426, 7
    %v2428 = vsub.s32 0, %v2427
    %v2429 = vrot.slane %v2397, %v2428
    %v2431 = vmul.f32 %v2423, %v2429
    %v2432 = vmul.f32 %v2424, %v2429
    %v2434 = vlaneseq
    %v2435 = vshrl.u32 %v2434, 7
    %v2436 = vsub.s32 0, %v2435
    %v2437 = vrot.slane %v2398, %v2436
    %v2439 = vadd.f32 %v2431, %v2437
    %v2440 = vadd.f32 %v2432, %v2437
    %v2441 = vpack.c.bf16 %v2440, %v2439
    %v2442 = vld [vmem:[%s12] sm:$0xf]
    %v2443 = vld [vmem:[%s12 + $0x4] sm:$0xf]
    %v2444 = vld [vmem:[%s12 + $0x8] sm:$0xf]
    %v2445 = vld [vmem:[%s12 + $0xc] sm:$0xf]
    %v2446 = vld [vmem:[%s12 + $0x10] sm:$0xf]
    %v2447 = vld [vmem:[%s12 + $0x14] sm:$0xf]
    %v2448 = vld [vmem:[%s13] sm:$0x1]
    %v2450 = vlaneseq
    %v2451 = vshrl.u32 %v2450, 7
    %v2452 = vsub.s32 0, %v2451
    %v2453 = vrot.slane %v2448, %v2452
    %v2461 = vunpack.c.l.b16 %v2442
    %v2462 = vunpack.c.l.b16 %v2443
    %v2463 = vunpack.c.l.b16 %v2444
    %v2464 = vunpack.c.l.b16 %v2445
    %v2465 = vunpack.c.l.b16 %v2446
    %v2466 = vunpack.c.l.b16 %v2447
    %v2467 = vpack.c.b16 %v2462, %v2461
    %v2468 = vpack.c.b16 %v2464, %v2463
    %v2469 = vpack.c.b16 %v2466, %v2465
    %v2474 = vsel %vm72, %v2441, 0
    %2476 = vmatprep.subr.bf16.mxu0 0
    %2477 = vmatpush1.bf16.msra.mxu0 %v2467
    %2478 = vmatprep.subr.bf16.mxu0 0
    %2479 = vmatpush1.bf16.msra.mxu0 %v2468
    %2480 = vmatprep.subr.bf16.mxu0 0
    %2481 = vmatpush1.bf16.msra.mxu0 %v2469
    %2482 = vmatprep.subr.bf16.mxu0 0
    %2483 = vmatpush1.bf16.msra.mxu0 0
    %2484 = vmatprep.subr.bf16.mxu0 0
    %2485 = vmatpush1.bf16.msra.mxu0 0
    %2486 = vmatprep.subr.bf16.mxu0 0
    %2487 = vmatpush1.bf16.msra.mxu0 0
    %2488 = vmatprep.subr.bf16.mxu0 0
    %2489 = vmatpush1.bf16.msra.mxu0 0
    %2490 = vmatprep.subr.bf16.mxu0 0
    %2491 = vmatpush1.bf16.msra.mxu0 0
    %2492 = vmatprep.subr.bf16.mxu0 0
    %2493 = vmatpush1.bf16.msra.mxu0 0
    %2494 = vmatprep.subr.bf16.mxu0 0
    %2495 = vmatpush1.bf16.msra.mxu0 0
    %2496 = vmatprep.subr.bf16.mxu0 0
    %2497 = vmatpush1.bf16.msra.mxu0 0
    %2498 = vmatprep.subr.bf16.mxu0 0
    %2499 = vmatpush1.bf16.msra.mxu0 0
    %2500 = vmatprep.subr.bf16.mxu0 0
    %2501 = vmatpush1.bf16.msra.mxu0 0
    %2502 = vmatprep.subr.bf16.mxu0 0
    %2503 = vmatpush1.bf16.msra.mxu0 0
    %2504 = vmatprep.subr.bf16.mxu0 0
    %2505 = vmatpush1.bf16.msra.mxu0 0
    %2506 = vmatprep.subr.bf16.mxu0 0
    %2507 = vmatpush1.bf16.msra.mxu0 0
    %2508 = vmatprep.mubr.bf16.mxu0 0
    %2509 = vmatmul.mubr.bf16.gmra.mrb[0].mxu0 %v2474
    %v2510 = vpop.f32.mrb[0].mxu0
    %v2511 = vadd.f32 %v2453, %v2510
    %v2512 = vpop.f32.mrb[0].mxu0
    %v2513 = vpop.f32.mrb[0].mxu0
    %v2514 = vadd.f32 %v2453, %v2513
    %v2515 = vpop.f32.mrb[0].mxu0
    %2516 = vdwg.mxu0
    %v2517 = vmax.f32 %v2511, 0.0
    %v2518 = vmax.f32 %v2514, 0.0
    %v2519 = vpack.c.bf16 %v2518, %v2517
    %v2520 = vld [vmem:[%s14] sm:$0xf]
    %v2521 = vld [vmem:[%s14 + $0x4] sm:$0xf]
    %v2522 = vld [vmem:[%s14 + $0x8] sm:$0xf]
    %v2523 = vld [vmem:[%s14 + $0xc] sm:$0xf]
    %v2524 = vld [vmem:[%s14 + $0x10] sm:$0xf]
    %v2525 = vld [vmem:[%s14 + $0x14] sm:$0xf]
    %v2526 = vld [vmem:[%s14 + $0x18] sm:$0xf]
    %v2527 = vld [vmem:[%s14 + $0x1c] sm:$0xf]
    %v2528 = vld [vmem:[%s14 + $0x20] sm:$0xf]
    %v2529 = vld [vmem:[%s14 + $0x24] sm:$0xf]
    %v2530 = vld [vmem:[%s14 + $0x28] sm:$0xf]
    %v2531 = vld [vmem:[%s14 + $0x2c] sm:$0xf]
    %v2532 = vld [vmem:[%s15] sm:$0x1]
    %v2534 = vlaneseq
    %v2535 = vshrl.u32 %v2534, 7
    %v2536 = vsub.s32 0, %v2535
    %v2537 = vrot.slane %v2532, %v2536
    %v2551 = vunpack.c.l.b16 %v2520
    %v2552 = vunpack.c.l.b16 %v2521
    %v2553 = vunpack.c.l.b16 %v2522
    %v2554 = vunpack.c.l.b16 %v2523
    %v2555 = vunpack.c.l.b16 %v2524
    %v2556 = vunpack.c.l.b16 %v2525
    %v2557 = vunpack.c.l.b16 %v2526
    %v2558 = vunpack.c.l.b16 %v2527
    %v2559 = vunpack.c.l.b16 %v2528
    %v2560 = vunpack.c.l.b16 %v2529
    %v2561 = vunpack.c.l.b16 %v2530
    %v2562 = vunpack.c.l.b16 %v2531
    %v2563 = vpack.c.b16 %v2552, %v2551
    %v2564 = vpack.c.b16 %v2554, %v2553
    %v2565 = vpack.c.b16 %v2556, %v2555
    %v2566 = vpack.c.b16 %v2558, %v2557
    %v2567 = vpack.c.b16 %v2560, %v2559
    %v2568 = vpack.c.b16 %v2562, %v2561
    %vm2575 = vcmask 785408
    %v2577 = vsel %vm2575, %v2519, 0
    %2579 = vmatprep.subr.bf16.mxu0 0
    %2580 = vmatpush1.bf16.msra.mxu0 %v2563
    %2581 = vmatprep.subr.bf16.mxu0 0
    %2582 = vmatpush1.bf16.msra.mxu0 %v2564
    %2583 = vmatprep.subr.bf16.mxu0 0
    %2584 = vmatpush1.bf16.msra.mxu0 %v2565
    %2585 = vmatprep.subr.bf16.mxu0 0
    %2586 = vmatpush1.bf16.msra.mxu0 %v2566
    %2587 = vmatprep.subr.bf16.mxu0 0
    %2588 = vmatpush1.bf16.msra.mxu0 %v2567
    %2589 = vmatprep.subr.bf16.mxu0 0
    %2590 = vmatpush1.bf16.msra.mxu0 %v2568
    %2591 = vmatprep.subr.bf16.mxu0 0
    %2592 = vmatpush1.bf16.msra.mxu0 0
    %2593 = vmatprep.subr.bf16.mxu0 0
    %2594 = vmatpush1.bf16.msra.mxu0 0
    %2595 = vmatprep.subr.bf16.mxu0 0
    %2596 = vmatpush1.bf16.msra.mxu0 0
    %2597 = vmatprep.subr.bf16.mxu0 0
    %2598 = vmatpush1.bf16.msra.mxu0 0
    %2599 = vmatprep.subr.bf16.mxu0 0
    %2600 = vmatpush1.bf16.msra.mxu0 0
    %2601 = vmatprep.subr.bf16.mxu0 0
    %2602 = vmatpush1.bf16.msra.mxu0 0
    %2603 = vmatprep.subr.bf16.mxu0 0
    %2604 = vmatpush1.bf16.msra.mxu0 0
    %2605 = vmatprep.subr.bf16.mxu0 0
    %2606 = vmatpush1.bf16.msra.mxu0 0
    %2607 = vmatprep.subr.bf16.mxu0 0
    %2608 = vmatpush1.bf16.msra.mxu0 0
    %2609 = vmatprep.subr.bf16.mxu0 0
    %2610 = vmatpush1.bf16.msra.mxu0 0
    %2611 = vmatprep.mubr.bf16.mxu0 0
    %2612 = vmatmul.mubr.bf16.gmra.mrb[0].mxu0 %v2577
    %v2613 = vpop.f32.mrb[0].mxu0
    %v2614 = vadd.f32 %v2537, %v2613
    %v2615 = vpop.f32.mrb[0].mxu0
    %v2616 = vpop.f32.mrb[0].mxu0
    %v2617 = vadd.f32 %v2537, %v2616
    %v2618 = vpop.f32.mrb[0].mxu0
    %2619 = vdwg.mxu0
    %v2620 = vadd.f32 %v2395, %v2614
    %v2621 = vadd.f32 %v2396, %v2617
    %2622 = vst.msk [vmem:[#allocation5] sm:$0xff] %vm72, %v2620
    %s2623 = scalar_lea.vmem [#allocation5], 8
    %2624 = vst.msk [vmem:[%s2623] sm:$0xff] %vm72, %v2621
    // Predicated region
    $region70: #{tpu_custom_call.1} parent=1 // pred_check
      _
    $region71: #{tpu_custom_call.1} parent=1 // pred_check_branch
      %2626 = sbr.rel (0) target = $region73
    $region72: #{tpu_custom_call.1} parent=1 // pred_region
      %s2628 = ssub.s32 256, 256
      %2629 = vsyncadd [#allocation4], %s2628
      %s2630 = sshll.u32 [#allocation5], 4
      %s2631 = int_to_ptr.vmem [resolvable:$true] %s2630
      %2636 = dma.vmem_to_hbm [thread:$0]  %s2631, 256, %s16, [#allocation4], 128, 128, 8
    $region73: #{tpu_custom_call.1} parent=1 // pred_fallthru
      _
    // Predicated region
    $region74: #{tpu_custom_call.1} parent=1 // pred_check
      _
    $region75: #{tpu_custom_call.1} parent=1 // pred_check_branch
      %2638 = sbr.rel (0) target = $region77
    $region76: #{tpu_custom_call.1} parent=1 // pred_region
      %2639 = dma.done [#allocation4], 256
    $region77: #{tpu_custom_call.1} parent=1 // pred_fallthru
      _
    %2640 = vsyncpa [#allocation3], 1
    %2641 = vsyncpa [#allocation4], 1

</llo_original>
